<compile_context>
chip_gen: v5e
topology: v5e:2x2
jax: 0.10.0
libtpu: 0.0.40
codegen_flags: <defaults>
</compile_context>

<pallas_src>
import functools

import jax
import jax.numpy as jnp
from jax import lax
from jax.experimental import pallas as pl
from jax.experimental.pallas import tpu as pltpu


def _encoder_layer_kernel(
    xq_ref,                      # (1, TQ, D) f32  query-row tile (also the residual path)
    xkv_ref,                     # (1, S,  D) bf16 full sequence (source of K / V)
    wqT_ref, wkT_ref, wvT_ref,   # (D, D) bf16, pre-transposed (x @ W); scale folded into wq
    bq_ref, bk_ref, bv_ref,      # (1, D) f32 (bq pre-scaled)
    woT_ref, bo_ref,             # (D, D) bf16 pre-transposed, (1, D) f32
    g1_ref, be1_ref,             # LayerNorm1 gamma/beta (1, D) f32
    w1T_ref, b1_ref,             # (D, F) bf16 pre-transposed, (1, F) f32
    w2T_ref, b2_ref,             # (F, D) bf16 pre-transposed, (1, D) f32
    g2_ref, be2_ref,             # LayerNorm2 gamma/beta (1, D) f32
    o_ref,                       # (1, TQ, D) f32
    k_sc, v_sc,                  # (S, D) bf16 VMEM scratch: K / V projections (per batch)
    attn_sc,                     # (TQ, D) f32 VMEM scratch: per-head outputs pre-W_o
    *, nhead,
):
    f32 = jnp.float32
    bf16 = jnp.bfloat16

    # ---- K/V projections: once per batch. qi is the innermost ("arbitrary") grid axis,
    #      so qi == 0 runs first for every batch and the scratch persists for qi > 0. ----
    @pl.when(pl.program_id(1) == 0)
    def _():
        xkv = xkv_ref[0]                                                     # (S, D) bf16
        k = jnp.dot(xkv, wkT_ref[...], preferred_element_type=f32) + bk_ref[...]
        v = jnp.dot(xkv, wvT_ref[...], preferred_element_type=f32) + bv_ref[...]
        k_sc[...] = k.astype(bf16)
        v_sc[...] = v.astype(bf16)

    xq = xq_ref[0]                                                           # (TQ, D) f32
    TQ, D = xq.shape
    hd = D // nhead

    # ---- Q projection for this tile (1/sqrt(hd) already folded into wq/bq) ----
    q = jnp.dot(xq.astype(bf16), wqT_ref[...], preferred_element_type=f32) + bq_ref[...]
    q_b = q.astype(bf16)                 # cast once, not per head
    k_b = k_sc[...]                      # (S, D) bf16
    v_b = v_sc[...]                      # (S, D) bf16

    # ---- per-head attention; write head outputs into attn_sc, one W_o matmul after ----
    for h in range(nhead):               # static unroll over heads (small nhead)
        sl = slice(h * hd, (h + 1) * hd)
        # contract last axes of both operands -> no (S, hd) transpose materialized
        scores = lax.dot_general(q_b[:, sl], k_b[:, sl], (((1,), (1,)), ((), ())),
                                 preferred_element_type=f32)                 # (TQ, S)
        scores = scores - jnp.max(scores, axis=-1, keepdims=True)
        p = jnp.exp(scores)
        # approx reciprocal -> EUP slot, ~1e-3 rel. error on the softmax denominator
        p = p * pl.reciprocal(jnp.sum(p, axis=-1, keepdims=True), approx=True)
        attn_sc[:, sl] = jnp.dot(p.astype(bf16), v_b[:, sl],
                                 preferred_element_type=f32)                 # (TQ, hd)

    # single full-depth W_o contraction (much better MXU fill than per-head hd-deep matmuls)
    attn = jnp.dot(attn_sc[...].astype(bf16), woT_ref[...],
                   preferred_element_type=f32) + bo_ref[...]

    # ---- residual + LayerNorm 1 (f32) ----
    x1 = xq + attn
    mu1 = jnp.mean(x1, axis=-1, keepdims=True)
    var1 = jnp.mean((x1 - mu1) ** 2, axis=-1, keepdims=True)
    x1n = (x1 - mu1) * lax.rsqrt(var1 + 1e-5) * g1_ref[...] + be1_ref[...]

    # ---- feed-forward: relu(x1n @ W1^T + b1) @ W2^T + b2 ----
    h1 = jnp.dot(x1n.astype(bf16), w1T_ref[...], preferred_element_type=f32) + b1_ref[...]
    h1 = jnp.maximum(h1, 0.0)
    ff = jnp.dot(h1.astype(bf16), w2T_ref[...], preferred_element_type=f32) + b2_ref[...]

    # ---- residual + LayerNorm 2 (f32) ----
    x2 = x1n + ff
    mu2 = jnp.mean(x2, axis=-1, keepdims=True)
    var2 = jnp.mean((x2 - mu2) ** 2, axis=-1, keepdims=True)
    out = (x2 - mu2) * lax.rsqrt(var2 + 1e-5) * g2_ref[...] + be2_ref[...]

    o_ref[0] = out.astype(o_ref.dtype)


def prepare_params(params, nhead):
    """Hoisted weight prep: transpose + bf16-cast once, reuse across forward calls.
    Folds the 1/sqrt(hd) attention scale into wq/bq."""
    D = params["wq"].shape[0]
    hd = D // nhead
    scale = 1.0 / (hd ** 0.5)
    bf16, f32 = jnp.bfloat16, jnp.float32
    return {
        "wqT": (params["wq"] * scale).T.astype(bf16),
        "wkT": params["wk"].T.astype(bf16),
        "wvT": params["wv"].T.astype(bf16),
        "woT": params["wo"].T.astype(bf16),
        "w1T": params["w1"].T.astype(bf16),
        "w2T": params["w2"].T.astype(bf16),
        "bq": (params["bq"] * scale).astype(f32),
        "bk": params["bk"].astype(f32),
        "bv": params["bv"].astype(f32),
        "bo": params["bo"].astype(f32),
        "b1": params["b1"].astype(f32),
        "b2": params["b2"].astype(f32),
        "g1": params["ln1_g"].astype(f32), "be1": params["ln1_b"].astype(f32),
        "g2": params["ln2_g"].astype(f32), "be2": params["ln2_b"].astype(f32),
    }


def _default_q_tile():
    # v6e/v7x MXU is 2x256^2 -> 256-row query tiles; v5e (4x128^2, bandwidth-bound) -> 128.
    try:
        kind = jax.devices()[0].device_kind.lower()
        if "v5 lite" in kind or "v5e" in kind or "v5litepod" in kind:
            return 128
    except Exception:
        pass
    return 256


def transformer_encoder_layer_bsd(x_bsd, prep, nhead, *, q_tile=None,
                                  vmem_limit_bytes=48 << 20,
                                  single_buffer_weights=True):
    """Core entry point. x_bsd: [B, S, D] float32, prep = prepare_params(...).
    Returns [B, S, D] float32."""
    B, S, D = x_bsd.shape
    F = prep["w1T"].shape[1]
    assert D % nhead == 0

    if q_tile is None:
        q_tile = _default_q_tile()
    # Query-tile size: full S for short sequences, otherwise a multiple-of-8 tile.
    # NOTE: when S % TQ != 0 the padded rows of the last tile run softmax/LN on pad data;
    # those rows are discarded on write-back (row-wise ops, no cross-row contamination).
    TQ = S if S <= q_tile else max(8, (q_tile // 8) * 8)
    nq = pl.cdiv(S, TQ)

    # bf16 K/V source: only ever an MXU operand -> halves its DMA + resident VMEM.
    x_kv = x_bsd.astype(jnp.bfloat16)

    # Constant-index blocks (weights/biases/LN params) never change -> single-buffer them.
    const_mode = {}
    if single_buffer_weights and hasattr(pl, "Buffered"):
        const_mode = dict(pipeline_mode=pl.Buffered(1))

    def const(shape):
        return pl.BlockSpec(shape, lambda *_: (0,) * len(shape), **const_mode)

    in_specs = [
        pl.BlockSpec((1, TQ, D), lambda b, qi: (b, qi, 0)),   # query tile of x (residual)
        pl.BlockSpec((1, S, D), lambda b, qi: (b, 0, 0)),     # full sequence (K/V source)
        const((D, D)), const((D, D)), const((D, D)),          # wqT wkT wvT
        const((1, D)), const((1, D)), const((1, D)),          # bq bk bv
        const((D, D)), const((1, D)),                         # woT bo
        const((1, D)), const((1, D)),                         # ln1 gamma/beta
        const((D, F)), const((1, F)),                         # w1T b1
        const((F, D)), const((1, D)),                         # w2T b2
        const((1, D)), const((1, D)),                         # ln2 gamma/beta
    ]

    scratch_shapes = [
        pltpu.VMEM((S, D), jnp.bfloat16),    # K projection (per batch)
        pltpu.VMEM((S, D), jnp.bfloat16),    # V projection (per batch)
        pltpu.VMEM((TQ, D), jnp.float32),    # per-head attention outputs (pre W_o)
    ]

    # Advisory cost estimate (K/V projections counted once per batch, not per query tile).
    flops = int(B * (6 * S * D * D        # q/k/v projections
                     + 4 * S * S * D      # scores + p@v over all heads
                     + 2 * S * D * D      # W_o
                     + 4 * S * D * F))    # FFN
    transcendentals = int(B * nhead * S * S + 4 * B * S)
    bytes_accessed = int(4 * B * S * D          # xq in (f32)
                         + 2 * B * S * D        # xkv in (bf16)
                         + 4 * B * S * D        # out (f32)
                         + 2 * (4 * D * D + 2 * D * F))   # bf16 weights
    cost = pl.CostEstimate(flops=flops, transcendentals=transcendentals,
                           bytes_accessed=bytes_accessed)

    out = pl.pallas_call(
        functools.partial(_encoder_layer_kernel, nhead=nhead),
        out_shape=jax.ShapeDtypeStruct((B, S, D), jnp.float32),
        grid=(B, nq),
        in_specs=in_specs,
        out_specs=pl.BlockSpec((1, TQ, D), lambda b, qi: (b, qi, 0)),
        scratch_shapes=scratch_shapes,
        compiler_params=pltpu.CompilerParams(
            # batch axis can shard across cores; qi must stay "arbitrary" (K/V scratch
            # computed at qi == 0 is reused by qi > 0 of the same batch).
            dimension_semantics=("parallel", "arbitrary"),
            vmem_limit_bytes=vmem_limit_bytes,
        ),
        cost_estimate=cost,
    )(
        x_bsd, x_kv,
        prep["wqT"], prep["wkT"], prep["wvT"],
        prep["bq"], prep["bk"], prep["bv"],
        prep["woT"], prep["bo"],
        prep["g1"], prep["be1"],
        prep["w1T"], prep["b1"],
        prep["w2T"], prep["b2"],
        prep["g2"], prep["be2"],
    )
    return out


def transformer_encoder_layer(src_sbd, params, nhead, *, prep=None, **kwargs):
    """PyTorch convention: src_sbd [S, B, D] -> [S, B, D].
    Pass `prep=prepare_params(params, nhead)` to hoist weight transpose/cast out of the
    forward path. If the caller can supply [B, S, D], use transformer_encoder_layer_bsd
    directly and skip the two full-activation HBM transposes."""
    if prep is None:
        prep = prepare_params(params, nhead)
    x = jnp.transpose(src_sbd, (1, 0, 2))                 # (B, S, D)
    out = transformer_encoder_layer_bsd(x, prep, nhead, **kwargs)
    return jnp.transpose(out, (1, 0, 2))                  # back to (S, B, D)


def _reference(src_sbd, params, nhead):
    """Pure-JAX f32 reference with identical semantics (for validation)."""
    S, B, D = src_sbd.shape
    hd = D // nhead
    scale = 1.0 / (hd ** 0.5)
    x = jnp.transpose(src_sbd, (1, 0, 2)).astype(jnp.float32)   # (B, S, D)

    q = jnp.einsum("bsd,ed->bse", x, params["wq"]) + params["bq"]
    k = jnp.einsum("bsd,ed->bse", x, params["wk"]) + params["bk"]
    v = jnp.einsum("bsd,ed->bse", x, params["wv"]) + params["bv"]
    q = q.reshape(B, S, nhead, hd).transpose(0, 2, 1, 3) * scale
    k = k.reshape(B, S, nhead, hd).transpose(0, 2, 1, 3)
    v = v.reshape(B, S, nhead, hd).transpose(0, 2, 1, 3)
    scores = jnp.einsum("bhqd,bhkd->bhqk", q, k)
    p = jax.nn.softmax(scores, axis=-1)
    attn = jnp.einsum("bhqk,bhkd->bhqd", p, v).transpose(0, 2, 1, 3).reshape(B, S, D)
    attn = jnp.einsum("bsd,ed->bse", attn, params["wo"]) + params["bo"]

    def ln(z, g, b):
        mu = jnp.mean(z, -1, keepdims=True)
        var = jnp.mean((z - mu) ** 2, -1, keepdims=True)
        return (z - mu) * jax.lax.rsqrt(var + 1e-5) * g + b

    x1 = ln(x + attn, params["ln1_g"], params["ln1_b"])
    ff = jnp.maximum(jnp.einsum("bsd,fd->bsf", x1, params["w1"]) + params["b1"], 0.0)
    ff = jnp.einsum("bsf,df->bsd", ff, params["w2"]) + params["b2"]
    out = ln(x1 + ff, params["ln2_g"], params["ln2_b"])
    return jnp.transpose(out, (1, 0, 2))


def make_params(key, d_model, dim_feedforward):
    ks = jax.random.split(key, 8)
    s = 0.05
    return {
        "wq": jax.random.normal(ks[0], (d_model, d_model), jnp.float32) * s,
        "wk": jax.random.normal(ks[1], (d_model, d_model), jnp.float32) * s,
        "wv": jax.random.normal(ks[2], (d_model, d_model), jnp.float32) * s,
        "bq": jax.random.normal(ks[3], (1, d_model), jnp.float32) * s,
        "bk": jnp.zeros((1, d_model), jnp.float32),
        "bv": jnp.zeros((1, d_model), jnp.float32),
        "wo": jax.random.normal(ks[4], (d_model, d_model), jnp.float32) * s,
        "bo": jnp.zeros((1, d_model), jnp.float32),
        "ln1_g": jnp.ones((1, d_model), jnp.float32),
        "ln1_b": jnp.zeros((1, d_model), jnp.float32),
        "w1": jax.random.normal(ks[5], (dim_feedforward, d_model), jnp.float32) * s,
        "b1": jax.random.normal(ks[6], (1, dim_feedforward), jnp.float32) * s,
        "w2": jax.random.normal(ks[7], (d_model, dim_feedforward), jnp.float32) * s,
        "b2": jnp.zeros((1, d_model), jnp.float32),
        "ln2_g": jnp.ones((1, d_model), jnp.float32),
        "ln2_b": jnp.zeros((1, d_model), jnp.float32),
    }


if __name__ == "__main__":
    S, B, D, H, FF = 8, 2, 32, 4, 64
    key = jax.random.PRNGKey(0)
    k_src, k_par = jax.random.split(key)
    src = jax.random.normal(k_src, (S, B, D), jnp.float32)   # [src_len, batch, embed_dim]
    params = make_params(k_par, D, FF)

    # Hoisted weight prep: do the transpose + bf16 cast once, reuse for every forward call.
    prep = prepare_params(params, H)

    try:
        out = jax.block_until_ready(transformer_encoder_layer(src, params, H, prep=prep))
    except Exception:
        # pipeline_mode=pl.Buffered(1) may be unsupported on older JAX versions;
        # fall back to default double-buffered weight blocks (same numerics).
        out = jax.block_until_ready(
            transformer_encoder_layer(src, params, H, prep=prep,
                                      single_buffer_weights=False))

    ref = _reference(src, params, H)
    assert out.shape == (S, B, D)
    # bf16 MXU operands + approx reciprocal -> relaxed tolerance vs f32 reference.
    assert jnp.allclose(out, ref, atol=2e-2, rtol=2e-2), "mismatch vs JAX reference"
    print("KERNEL_OK")
</pallas_src>

<mosaic_0001>
module attributes {stable_mosaic.version = 11 : i64} {
  func.func @_encoder_layer_kernel(%arg0: i32, %arg1: i32, %arg2: memref<1x8x32xf32, #tpu.memory_space<vmem>>, %arg3: memref<1x8x32xbf16, #tpu.memory_space<vmem>>, %arg4: memref<32x32xbf16, #tpu.memory_space<vmem>>, %arg5: memref<32x32xbf16, #tpu.memory_space<vmem>>, %arg6: memref<32x32xbf16, #tpu.memory_space<vmem>>, %arg7: memref<1x32xf32, #tpu.memory_space<vmem>>, %arg8: memref<1x32xf32, #tpu.memory_space<vmem>>, %arg9: memref<1x32xf32, #tpu.memory_space<vmem>>, %arg10: memref<32x32xbf16, #tpu.memory_space<vmem>>, %arg11: memref<1x32xf32, #tpu.memory_space<vmem>>, %arg12: memref<1x32xf32, #tpu.memory_space<vmem>>, %arg13: memref<1x32xf32, #tpu.memory_space<vmem>>, %arg14: memref<32x64xbf16, #tpu.memory_space<vmem>>, %arg15: memref<1x64xf32, #tpu.memory_space<vmem>>, %arg16: memref<64x32xbf16, #tpu.memory_space<vmem>>, %arg17: memref<1x32xf32, #tpu.memory_space<vmem>>, %arg18: memref<1x32xf32, #tpu.memory_space<vmem>>, %arg19: memref<1x32xf32, #tpu.memory_space<vmem>>, %arg20: memref<1x8x32xf32, #tpu.memory_space<vmem>>, %arg21: memref<8x32xbf16, #tpu.memory_space<vmem>>, %arg22: memref<8x32xbf16, #tpu.memory_space<vmem>>, %arg23: memref<8x32xf32, #tpu.memory_space<vmem>>) attributes {dimension_semantics = [#tpu.dimension_semantics<parallel>, #tpu.dimension_semantics<arbitrary>], iteration_bounds = array<i64: 2, 1>, scalar_prefetch = 0 : i64, scratch_operands = 3 : i64, tpu.core_type = #tpu.core_type<tc>, window_params = [{transform_indices = @transform_0, window_bounds = array<i64: 1, 8, 32>}, {transform_indices = @transform_1, window_bounds = array<i64: 1, 8, 32>}, {pipeline_mode = #tpu.pipeline_mode<synchronous>, transform_indices = @transform_2, window_bounds = array<i64: 32, 32>}, {pipeline_mode = #tpu.pipeline_mode<synchronous>, transform_indices = @transform_3, window_bounds = array<i64: 32, 32>}, {pipeline_mode = #tpu.pipeline_mode<synchronous>, transform_indices = @transform_4, window_bounds = array<i64: 32, 32>}, {pipeline_mode = #tpu.pipeline_mode<synchronous>, transform_indices = @transform_5, window_bounds = array<i64: 1, 32>}, {pipeline_mode = #tpu.pipeline_mode<synchronous>, transform_indices = @transform_6, window_bounds = array<i64: 1, 32>}, {pipeline_mode = #tpu.pipeline_mode<synchronous>, transform_indices = @transform_7, window_bounds = array<i64: 1, 32>}, {pipeline_mode = #tpu.pipeline_mode<synchronous>, transform_indices = @transform_8, window_bounds = array<i64: 32, 32>}, {pipeline_mode = #tpu.pipeline_mode<synchronous>, transform_indices = @transform_9, window_bounds = array<i64: 1, 32>}, {pipeline_mode = #tpu.pipeline_mode<synchronous>, transform_indices = @transform_10, window_bounds = array<i64: 1, 32>}, {pipeline_mode = #tpu.pipeline_mode<synchronous>, transform_indices = @transform_11, window_bounds = array<i64: 1, 32>}, {pipeline_mode = #tpu.pipeline_mode<synchronous>, transform_indices = @transform_12, window_bounds = array<i64: 32, 64>}, {pipeline_mode = #tpu.pipeline_mode<synchronous>, transform_indices = @transform_13, window_bounds = array<i64: 1, 64>}, {pipeline_mode = #tpu.pipeline_mode<synchronous>, transform_indices = @transform_14, window_bounds = array<i64: 64, 32>}, {pipeline_mode = #tpu.pipeline_mode<synchronous>, transform_indices = @transform_15, window_bounds = array<i64: 1, 32>}, {pipeline_mode = #tpu.pipeline_mode<synchronous>, transform_indices = @transform_16, window_bounds = array<i64: 1, 32>}, {pipeline_mode = #tpu.pipeline_mode<synchronous>, transform_indices = @transform_17, window_bounds = array<i64: 1, 32>}, {transform_indices = @transform_18, window_bounds = array<i64: 1, 8, 32>}]} {
    %c0_i32 = arith.constant 0 : i32
    %0 = arith.cmpi eq, %arg1, %c0_i32 : i32
    %1 = arith.extui %0 : i1 to i32
    %c0_i32_0 = arith.constant 0 : i32
    %2 = arith.cmpi ne, %1, %c0_i32_0 : i32
    scf.if %2 {
      %c0_71 = arith.constant 0 : index
      %c0_72 = arith.constant 0 : index
      %c0_73 = arith.constant 0 : index
      %156 = vector.load %arg3[%c0_71, %c0_72, %c0_73] : memref<1x8x32xbf16, #tpu.memory_space<vmem>>, vector<1x8x32xbf16>
      %157 = vector.shape_cast %156 : vector<1x8x32xbf16> to vector<8x32xbf16>
      %c0_74 = arith.constant 0 : index
      %c0_75 = arith.constant 0 : index
      %158 = vector.load %arg5[%c0_74, %c0_75] : memref<32x32xbf16, #tpu.memory_space<vmem>>, vector<32x32xbf16>
      %cst_76 = arith.constant dense<0.000000e+00> : vector<8x32xf32>
      %159 = tpu.matmul %157, %158, %cst_76 {dimension_numbers = #tpu.dot_dimension_numbers<[1], [0], [0], [1], [0, 0, 1, 1], [], []>} : vector<8x32xbf16>, vector<32x32xbf16>, vector<8x32xf32> -> vector<8x32xf32>
      %c0_77 = arith.constant 0 : index
      %c0_78 = arith.constant 0 : index
      %160 = vector.load %arg8[%c0_77, %c0_78] : memref<1x32xf32, #tpu.memory_space<vmem>>, vector<1x32xf32>
      %161 = vector.broadcast %160 : vector<1x32xf32> to vector<8x32xf32>
      %162 = arith.addf %159, %161 : vector<8x32xf32>
      %c0_79 = arith.constant 0 : index
      %c0_80 = arith.constant 0 : index
      %163 = vector.load %arg6[%c0_79, %c0_80] : memref<32x32xbf16, #tpu.memory_space<vmem>>, vector<32x32xbf16>
      %cst_81 = arith.constant dense<0.000000e+00> : vector<8x32xf32>
      %164 = tpu.matmul %157, %163, %cst_81 {dimension_numbers = #tpu.dot_dimension_numbers<[1], [0], [0], [1], [0, 0, 1, 1], [], []>} : vector<8x32xbf16>, vector<32x32xbf16>, vector<8x32xf32> -> vector<8x32xf32>
      %c0_82 = arith.constant 0 : index
      %c0_83 = arith.constant 0 : index
      %165 = vector.load %arg9[%c0_82, %c0_83] : memref<1x32xf32, #tpu.memory_space<vmem>>, vector<1x32xf32>
      %166 = vector.broadcast %165 : vector<1x32xf32> to vector<8x32xf32>
      %167 = arith.addf %164, %166 : vector<8x32xf32>
      %168 = arith.truncf %162 : vector<8x32xf32> to vector<8x32xbf16>
      %c0_84 = arith.constant 0 : index
      %c0_85 = arith.constant 0 : index
      %169 = vector.load %arg21[%c0_84, %c0_85] : memref<8x32xbf16, #tpu.memory_space<vmem>>, vector<8x32xbf16>
      tpu.vector_store %arg21[%c0_84, %c0_85], %168 {strides = array<i32>} : memref<8x32xbf16, #tpu.memory_space<vmem>>, vector<8x32xbf16>,
      %170 = arith.truncf %167 : vector<8x32xf32> to vector<8x32xbf16>
      %c0_86 = arith.constant 0 : index
      %c0_87 = arith.constant 0 : index
      %171 = vector.load %arg22[%c0_86, %c0_87] : memref<8x32xbf16, #tpu.memory_space<vmem>>, vector<8x32xbf16>
      tpu.vector_store %arg22[%c0_86, %c0_87], %170 {strides = array<i32>} : memref<8x32xbf16, #tpu.memory_space<vmem>>, vector<8x32xbf16>,
    } else {
    }
    %c0 = arith.constant 0 : index
    %c0_1 = arith.constant 0 : index
    %c0_2 = arith.constant 0 : index
    %3 = vector.load %arg2[%c0, %c0_1, %c0_2] : memref<1x8x32xf32, #tpu.memory_space<vmem>>, vector<1x8x32xf32>
    %4 = vector.shape_cast %3 : vector<1x8x32xf32> to vector<8x32xf32>
    %5 = arith.truncf %4 : vector<8x32xf32> to vector<8x32xbf16>
    %c0_3 = arith.constant 0 : index
    %c0_4 = arith.constant 0 : index
    %6 = vector.load %arg4[%c0_3, %c0_4] : memref<32x32xbf16, #tpu.memory_space<vmem>>, vector<32x32xbf16>
    %cst = arith.constant dense<0.000000e+00> : vector<8x32xf32>
    %7 = tpu.matmul %5, %6, %cst {dimension_numbers = #tpu.dot_dimension_numbers<[1], [0], [0], [1], [0, 0, 1, 1], [], []>} : vector<8x32xbf16>, vector<32x32xbf16>, vector<8x32xf32> -> vector<8x32xf32>
    %c0_5 = arith.constant 0 : index
    %c0_6 = arith.constant 0 : index
    %8 = vector.load %arg7[%c0_5, %c0_6] : memref<1x32xf32, #tpu.memory_space<vmem>>, vector<1x32xf32>
    %9 = vector.broadcast %8 : vector<1x32xf32> to vector<8x32xf32>
    %10 = arith.addf %7, %9 : vector<8x32xf32>
    %11 = arith.truncf %10 : vector<8x32xf32> to vector<8x32xbf16>
    %c0_7 = arith.constant 0 : index
    %c0_8 = arith.constant 0 : index
    %12 = vector.load %arg21[%c0_7, %c0_8] : memref<8x32xbf16, #tpu.memory_space<vmem>>, vector<8x32xbf16>
    %c0_9 = arith.constant 0 : index
    %c0_10 = arith.constant 0 : index
    %13 = vector.load %arg22[%c0_9, %c0_10] : memref<8x32xbf16, #tpu.memory_space<vmem>>, vector<8x32xbf16>
    %14 = vector.extract_strided_slice %11 {offsets = [0, 0], sizes = [8, 8], strides = [1, 1]} : vector<8x32xbf16> to vector<8x8xbf16>
    %15 = vector.extract_strided_slice %12 {offsets = [0, 0], sizes = [8, 8], strides = [1, 1]} : vector<8x32xbf16> to vector<8x8xbf16>
    %cst_11 = arith.constant dense<0.000000e+00> : vector<8x8xf32>
    %16 = tpu.matmul %14, %15, %cst_11 {dimension_numbers = #tpu.dot_dimension_numbers<[1], [1], [0], [0], [0, 0, 1, 0], [], []>} : vector<8x8xbf16>, vector<8x8xbf16>, vector<8x8xf32> -> vector<8x8xf32>
    %cst_12 = arith.constant dense<0xFF800000> : vector<8xf32>
    %17 = vector.multi_reduction <maximumf>, %16, %cst_12 [1] : vector<8x8xf32> to vector<8xf32>
    %18 = vector.shape_cast %17 : vector<8xf32> to vector<8x1xf32>
    %19 = vector.broadcast %18 : vector<8x1xf32> to vector<8x8xf32>
    %20 = arith.subf %16, %19 : vector<8x8xf32>
    %21 = math.exp %20 : vector<8x8xf32>
    %cst_13 = arith.constant dense<0.000000e+00> : vector<8xf32>
    %22 = vector.multi_reduction <add>, %21, %cst_13 [1] : vector<8x8xf32> to vector<8xf32>
    %23 = vector.shape_cast %22 : vector<8xf32> to vector<8x1xf32>
    %24 = tpu.reciprocal %23 {approx = true} : vector<8x1xf32> -> vector<8x1xf32>
    %25 = vector.broadcast %24 : vector<8x1xf32> to vector<8x8xf32>
    %26 = arith.mulf %21, %25 : vector<8x8xf32>
    %27 = arith.truncf %26 : vector<8x8xf32> to vector<8x8xbf16>
    %28 = vector.extract_strided_slice %13 {offsets = [0, 0], sizes = [8, 8], strides = [1, 1]} : vector<8x32xbf16> to vector<8x8xbf16>
    %cst_14 = arith.constant dense<0.000000e+00> : vector<8x8xf32>
    %29 = tpu.matmul %27, %28, %cst_14 {dimension_numbers = #tpu.dot_dimension_numbers<[1], [0], [0], [1], [0, 0, 1, 1], [], []>} : vector<8x8xbf16>, vector<8x8xbf16>, vector<8x8xf32> -> vector<8x8xf32>
    %c0_15 = arith.constant 0 : index
    %c0_16 = arith.constant 0 : index
    %30 = vector.load %arg23[%c0_15, %c0_16] : memref<8x32xf32, #tpu.memory_space<vmem>>, vector<8x8xf32>
    tpu.vector_store %arg23[%c0_15, %c0_16], %29 {strides = array<i32>} : memref<8x32xf32, #tpu.memory_space<vmem>>, vector<8x8xf32>,
    %31 = vector.extract_strided_slice %11 {offsets = [0, 8], sizes = [8, 8], strides = [1, 1]} : vector<8x32xbf16> to vector<8x8xbf16>
    %32 = vector.extract_strided_slice %12 {offsets = [0, 8], sizes = [8, 8], strides = [1, 1]} : vector<8x32xbf16> to vector<8x8xbf16>
    %cst_17 = arith.constant dense<0.000000e+00> : vector<8x8xf32>
    %33 = tpu.matmul %31, %32, %cst_17 {dimension_numbers = #tpu.dot_dimension_numbers<[1], [1], [0], [0], [0, 0, 1, 0], [], []>} : vector<8x8xbf16>, vector<8x8xbf16>, vector<8x8xf32> -> vector<8x8xf32>
    %cst_18 = arith.constant dense<0xFF800000> : vector<8xf32>
    %34 = vector.multi_reduction <maximumf>, %33, %cst_18 [1] : vector<8x8xf32> to vector<8xf32>
    %35 = vector.shape_cast %34 : vector<8xf32> to vector<8x1xf32>
    %36 = vector.broadcast %35 : vector<8x1xf32> to vector<8x8xf32>
    %37 = arith.subf %33, %36 : vector<8x8xf32>
    %38 = math.exp %37 : vector<8x8xf32>
    %cst_19 = arith.constant dense<0.000000e+00> : vector<8xf32>
    %39 = vector.multi_reduction <add>, %38, %cst_19 [1] : vector<8x8xf32> to vector<8xf32>
    %40 = vector.shape_cast %39 : vector<8xf32> to vector<8x1xf32>
    %41 = tpu.reciprocal %40 {approx = true} : vector<8x1xf32> -> vector<8x1xf32>
    %42 = vector.broadcast %41 : vector<8x1xf32> to vector<8x8xf32>
    %43 = arith.mulf %38, %42 : vector<8x8xf32>
    %44 = arith.truncf %43 : vector<8x8xf32> to vector<8x8xbf16>
    %45 = vector.extract_strided_slice %13 {offsets = [0, 8], sizes = [8, 8], strides = [1, 1]} : vector<8x32xbf16> to vector<8x8xbf16>
    %cst_20 = arith.constant dense<0.000000e+00> : vector<8x8xf32>
    %46 = tpu.matmul %44, %45, %cst_20 {dimension_numbers = #tpu.dot_dimension_numbers<[1], [0], [0], [1], [0, 0, 1, 1], [], []>} : vector<8x8xbf16>, vector<8x8xbf16>, vector<8x8xf32> -> vector<8x8xf32>
    %c0_21 = arith.constant 0 : index
    %c8 = arith.constant 8 : index
    %47 = vector.load %arg23[%c0_21, %c8] : memref<8x32xf32, #tpu.memory_space<vmem>>, vector<8x8xf32>
    tpu.vector_store %arg23[%c0_21, %c8], %46 {strides = array<i32>} : memref<8x32xf32, #tpu.memory_space<vmem>>, vector<8x8xf32>,
    %48 = vector.extract_strided_slice %11 {offsets = [0, 16], sizes = [8, 8], strides = [1, 1]} : vector<8x32xbf16> to vector<8x8xbf16>
    %49 = vector.extract_strided_slice %12 {offsets = [0, 16], sizes = [8, 8], strides = [1, 1]} : vector<8x32xbf16> to vector<8x8xbf16>
    %cst_22 = arith.constant dense<0.000000e+00> : vector<8x8xf32>
    %50 = tpu.matmul %48, %49, %cst_22 {dimension_numbers = #tpu.dot_dimension_numbers<[1], [1], [0], [0], [0, 0, 1, 0], [], []>} : vector<8x8xbf16>, vector<8x8xbf16>, vector<8x8xf32> -> vector<8x8xf32>
    %cst_23 = arith.constant dense<0xFF800000> : vector<8xf32>
    %51 = vector.multi_reduction <maximumf>, %50, %cst_23 [1] : vector<8x8xf32> to vector<8xf32>
    %52 = vector.shape_cast %51 : vector<8xf32> to vector<8x1xf32>
    %53 = vector.broadcast %52 : vector<8x1xf32> to vector<8x8xf32>
    %54 = arith.subf %50, %53 : vector<8x8xf32>
    %55 = math.exp %54 : vector<8x8xf32>
    %cst_24 = arith.constant dense<0.000000e+00> : vector<8xf32>
    %56 = vector.multi_reduction <add>, %55, %cst_24 [1] : vector<8x8xf32> to vector<8xf32>
    %57 = vector.shape_cast %56 : vector<8xf32> to vector<8x1xf32>
    %58 = tpu.reciprocal %57 {approx = true} : vector<8x1xf32> -> vector<8x1xf32>
    %59 = vector.broadcast %58 : vector<8x1xf32> to vector<8x8xf32>
    %60 = arith.mulf %55, %59 : vector<8x8xf32>
    %61 = arith.truncf %60 : vector<8x8xf32> to vector<8x8xbf16>
    %62 = vector.extract_strided_slice %13 {offsets = [0, 16], sizes = [8, 8], strides = [1, 1]} : vector<8x32xbf16> to vector<8x8xbf16>
    %cst_25 = arith.constant dense<0.000000e+00> : vector<8x8xf32>
    %63 = tpu.matmul %61, %62, %cst_25 {dimension_numbers = #tpu.dot_dimension_numbers<[1], [0], [0], [1], [0, 0, 1, 1], [], []>} : vector<8x8xbf16>, vector<8x8xbf16>, vector<8x8xf32> -> vector<8x8xf32>
    %c0_26 = arith.constant 0 : index
    %c16 = arith.constant 16 : index
    %64 = vector.load %arg23[%c0_26, %c16] : memref<8x32xf32, #tpu.memory_space<vmem>>, vector<8x8xf32>
    tpu.vector_store %arg23[%c0_26, %c16], %63 {strides = array<i32>} : memref<8x32xf32, #tpu.memory_space<vmem>>, vector<8x8xf32>,
    %65 = vector.extract_strided_slice %11 {offsets = [0, 24], sizes = [8, 8], strides = [1, 1]} : vector<8x32xbf16> to vector<8x8xbf16>
    %66 = vector.extract_strided_slice %12 {offsets = [0, 24], sizes = [8, 8], strides = [1, 1]} : vector<8x32xbf16> to vector<8x8xbf16>
    %cst_27 = arith.constant dense<0.000000e+00> : vector<8x8xf32>
    %67 = tpu.matmul %65, %66, %cst_27 {dimension_numbers = #tpu.dot_dimension_numbers<[1], [1], [0], [0], [0, 0, 1, 0], [], []>} : vector<8x8xbf16>, vector<8x8xbf16>, vector<8x8xf32> -> vector<8x8xf32>
    %cst_28 = arith.constant dense<0xFF800000> : vector<8xf32>
    %68 = vector.multi_reduction <maximumf>, %67, %cst_28 [1] : vector<8x8xf32> to vector<8xf32>
    %69 = vector.shape_cast %68 : vector<8xf32> to vector<8x1xf32>
    %70 = vector.broadcast %69 : vector<8x1xf32> to vector<8x8xf32>
    %71 = arith.subf %67, %70 : vector<8x8xf32>
    %72 = math.exp %71 : vector<8x8xf32>
    %cst_29 = arith.constant dense<0.000000e+00> : vector<8xf32>
    %73 = vector.multi_reduction <add>, %72, %cst_29 [1] : vector<8x8xf32> to vector<8xf32>
    %74 = vector.shape_cast %73 : vector<8xf32> to vector<8x1xf32>
    %75 = tpu.reciprocal %74 {approx = true} : vector<8x1xf32> -> vector<8x1xf32>
    %76 = vector.broadcast %75 : vector<8x1xf32> to vector<8x8xf32>
    %77 = arith.mulf %72, %76 : vector<8x8xf32>
    %78 = arith.truncf %77 : vector<8x8xf32> to vector<8x8xbf16>
    %79 = vector.extract_strided_slice %13 {offsets = [0, 24], sizes = [8, 8], strides = [1, 1]} : vector<8x32xbf16> to vector<8x8xbf16>
    %cst_30 = arith.constant dense<0.000000e+00> : vector<8x8xf32>
    %80 = tpu.matmul %78, %79, %cst_30 {dimension_numbers = #tpu.dot_dimension_numbers<[1], [0], [0], [1], [0, 0, 1, 1], [], []>} : vector<8x8xbf16>, vector<8x8xbf16>, vector<8x8xf32> -> vector<8x8xf32>
    %c0_31 = arith.constant 0 : index
    %c24 = arith.constant 24 : index
    %81 = vector.load %arg23[%c0_31, %c24] : memref<8x32xf32, #tpu.memory_space<vmem>>, vector<8x8xf32>
    tpu.vector_store %arg23[%c0_31, %c24], %80 {strides = array<i32>} : memref<8x32xf32, #tpu.memory_space<vmem>>, vector<8x8xf32>,
    %c0_32 = arith.constant 0 : index
    %c0_33 = arith.constant 0 : index
    %82 = vector.load %arg23[%c0_32, %c0_33] : memref<8x32xf32, #tpu.memory_space<vmem>>, vector<8x32xf32>
    %83 = arith.truncf %82 : vector<8x32xf32> to vector<8x32xbf16>
    %c0_34 = arith.constant 0 : index
    %c0_35 = arith.constant 0 : index
    %84 = vector.load %arg10[%c0_34, %c0_35] : memref<32x32xbf16, #tpu.memory_space<vmem>>, vector<32x32xbf16>
    %cst_36 = arith.constant dense<0.000000e+00> : vector<8x32xf32>
    %85 = tpu.matmul %83, %84, %cst_36 {dimension_numbers = #tpu.dot_dimension_numbers<[1], [0], [0], [1], [0, 0, 1, 1], [], []>} : vector<8x32xbf16>, vector<32x32xbf16>, vector<8x32xf32> -> vector<8x32xf32>
    %c0_37 = arith.constant 0 : index
    %c0_38 = arith.constant 0 : index
    %86 = vector.load %arg11[%c0_37, %c0_38] : memref<1x32xf32, #tpu.memory_space<vmem>>, vector<1x32xf32>
    %87 = vector.broadcast %86 : vector<1x32xf32> to vector<8x32xf32>
    %88 = arith.addf %85, %87 : vector<8x32xf32>
    %89 = arith.addf %4, %88 : vector<8x32xf32>
    %cst_39 = arith.constant dense<0.000000e+00> : vector<8xf32>
    %90 = vector.multi_reduction <add>, %89, %cst_39 [1] : vector<8x32xf32> to vector<8xf32>
    %91 = vector.shape_cast %90 : vector<8xf32> to vector<8x1xf32>
    %cst_40 = arith.constant 3.200000e+01 : f32
    %92 = vector.broadcast %cst_40 : f32 to vector<8x1xf32>
    %93 = arith.divf %91, %92 : vector<8x1xf32>
    %94 = vector.broadcast %93 : vector<8x1xf32> to vector<8x32xf32>
    %95 = arith.subf %89, %94 : vector<8x32xf32>
    %96 = arith.mulf %95, %95 : vector<8x32xf32>
    %cst_41 = arith.constant dense<0.000000e+00> : vector<8xf32>
    %97 = vector.multi_reduction <add>, %96, %cst_41 [1] : vector<8x32xf32> to vector<8xf32>
    %98 = vector.shape_cast %97 : vector<8xf32> to vector<8x1xf32>
    %cst_42 = arith.constant 3.200000e+01 : f32
    %99 = vector.broadcast %cst_42 : f32 to vector<8x1xf32>
    %100 = arith.divf %98, %99 : vector<8x1xf32>
    %101 = vector.broadcast %93 : vector<8x1xf32> to vector<8x32xf32>
    %102 = arith.subf %89, %101 : vector<8x32xf32>
    %cst_43 = arith.constant 9.99999974E-6 : f32
    %103 = vector.broadcast %cst_43 : f32 to vector<8x1xf32>
    %104 = arith.addf %100, %103 : vector<8x1xf32>
    %105 = math.rsqrt %104 : vector<8x1xf32>
    %106 = vector.broadcast %105 : vector<8x1xf32> to vector<8x32xf32>
    %107 = arith.mulf %102, %106 : vector<8x32xf32>
    %c0_44 = arith.constant 0 : index
    %c0_45 = arith.constant 0 : index
    %108 = vector.load %arg12[%c0_44, %c0_45] : memref<1x32xf32, #tpu.memory_space<vmem>>, vector<1x32xf32>
    %109 = vector.broadcast %108 : vector<1x32xf32> to vector<8x32xf32>
    %110 = arith.mulf %107, %109 : vector<8x32xf32>
    %c0_46 = arith.constant 0 : index
    %c0_47 = arith.constant 0 : index
    %111 = vector.load %arg13[%c0_46, %c0_47] : memref<1x32xf32, #tpu.memory_space<vmem>>, vector<1x32xf32>
    %112 = vector.broadcast %111 : vector<1x32xf32> to vector<8x32xf32>
    %113 = arith.addf %110, %112 : vector<8x32xf32>
    %114 = arith.truncf %113 : vector<8x32xf32> to vector<8x32xbf16>
    %c0_48 = arith.constant 0 : index
    %c0_49 = arith.constant 0 : index
    %115 = vector.load %arg14[%c0_48, %c0_49] : memref<32x64xbf16, #tpu.memory_space<vmem>>, vector<32x64xbf16>
    %cst_50 = arith.constant dense<0.000000e+00> : vector<8x64xf32>
    %116 = tpu.matmul %114, %115, %cst_50 {dimension_numbers = #tpu.dot_dimension_numbers<[1], [0], [0], [1], [0, 0, 1, 1], [], []>} : vector<8x32xbf16>, vector<32x64xbf16>, vector<8x64xf32> -> vector<8x64xf32>
    %c0_51 = arith.constant 0 : index
    %c0_52 = arith.constant 0 : index
    %117 = vector.load %arg15[%c0_51, %c0_52] : memref<1x64xf32, #tpu.memory_space<vmem>>, vector<1x64xf32>
    %118 = vector.broadcast %117 : vector<1x64xf32> to vector<8x64xf32>
    %119 = arith.addf %116, %118 : vector<8x64xf32>
    %cst_53 = arith.constant 0.000000e+00 : f32
    %120 = vector.broadcast %cst_53 : f32 to vector<8x64xf32>
    %121 = arith.maximumf %119, %120 : vector<8x64xf32>
    %122 = arith.truncf %121 : vector<8x64xf32> to vector<8x64xbf16>
    %c0_54 = arith.constant 0 : index
    %c0_55 = arith.constant 0 : index
    %123 = vector.load %arg16[%c0_54, %c0_55] : memref<64x32xbf16, #tpu.memory_space<vmem>>, vector<64x32xbf16>
    %cst_56 = arith.constant dense<0.000000e+00> : vector<8x32xf32>
    %124 = tpu.matmul %122, %123, %cst_56 {dimension_numbers = #tpu.dot_dimension_numbers<[1], [0], [0], [1], [0, 0, 1, 1], [], []>} : vector<8x64xbf16>, vector<64x32xbf16>, vector<8x32xf32> -> vector<8x32xf32>
    %c0_57 = arith.constant 0 : index
    %c0_58 = arith.constant 0 : index
    %125 = vector.load %arg17[%c0_57, %c0_58] : memref<1x32xf32, #tpu.memory_space<vmem>>, vector<1x32xf32>
    %126 = vector.broadcast %125 : vector<1x32xf32> to vector<8x32xf32>
    %127 = arith.addf %124, %126 : vector<8x32xf32>
    %128 = arith.addf %113, %127 : vector<8x32xf32>
    %cst_59 = arith.constant dense<0.000000e+00> : vector<8xf32>
    %129 = vector.multi_reduction <add>, %128, %cst_59 [1] : vector<8x32xf32> to vector<8xf32>
    %130 = vector.shape_cast %129 : vector<8xf32> to vector<8x1xf32>
    %cst_60 = arith.constant 3.200000e+01 : f32
    %131 = vector.broadcast %cst_60 : f32 to vector<8x1xf32>
    %132 = arith.divf %130, %131 : vector<8x1xf32>
    %133 = vector.broadcast %132 : vector<8x1xf32> to vector<8x32xf32>
    %134 = arith.subf %128, %133 : vector<8x32xf32>
    %135 = arith.mulf %134, %134 : vector<8x32xf32>
    %cst_61 = arith.constant dense<0.000000e+00> : vector<8xf32>
    %136 = vector.multi_reduction <add>, %135, %cst_61 [1] : vector<8x32xf32> to vector<8xf32>
    %137 = vector.shape_cast %136 : vector<8xf32> to vector<8x1xf32>
    %cst_62 = arith.constant 3.200000e+01 : f32
    %138 = vector.broadcast %cst_62 : f32 to vector<8x1xf32>
    %139 = arith.divf %137, %138 : vector<8x1xf32>
    %140 = vector.broadcast %132 : vector<8x1xf32> to vector<8x32xf32>
    %141 = arith.subf %128, %140 : vector<8x32xf32>
    %cst_63 = arith.constant 9.99999974E-6 : f32
    %142 = vector.broadcast %cst_63 : f32 to vector<8x1xf32>
    %143 = arith.addf %139, %142 : vector<8x1xf32>
    %144 = math.rsqrt %143 : vector<8x1xf32>
    %145 = vector.broadcast %144 : vector<8x1xf32> to vector<8x32xf32>
    %146 = arith.mulf %141, %145 : vector<8x32xf32>
    %c0_64 = arith.constant 0 : index
    %c0_65 = arith.constant 0 : index
    %147 = vector.load %arg18[%c0_64, %c0_65] : memref<1x32xf32, #tpu.memory_space<vmem>>, vector<1x32xf32>
    %148 = vector.broadcast %147 : vector<1x32xf32> to vector<8x32xf32>
    %149 = arith.mulf %146, %148 : vector<8x32xf32>
    %c0_66 = arith.constant 0 : index
    %c0_67 = arith.constant 0 : index
    %150 = vector.load %arg19[%c0_66, %c0_67] : memref<1x32xf32, #tpu.memory_space<vmem>>, vector<1x32xf32>
    %151 = vector.broadcast %150 : vector<1x32xf32> to vector<8x32xf32>
    %152 = arith.addf %149, %151 : vector<8x32xf32>
    %c0_68 = arith.constant 0 : index
    %c0_69 = arith.constant 0 : index
    %c0_70 = arith.constant 0 : index
    %153 = vector.load %arg20[%c0_68, %c0_69, %c0_70] : memref<1x8x32xf32, #tpu.memory_space<vmem>>, vector<1x8x32xf32>
    %154 = vector.shape_cast %153 : vector<1x8x32xf32> to vector<8x32xf32>
    %155 = vector.shape_cast %152 : vector<8x32xf32> to vector<1x8x32xf32>
    tpu.vector_store %arg20[%c0_68, %c0_69, %c0_70], %155 {strides = array<i32>} : memref<1x8x32xf32, #tpu.memory_space<vmem>>, vector<1x8x32xf32>,
    return
  }
  func.func @transform_0(%arg0: i32, %arg1: i32) -> (i32, i32, i32) {
    %c0_i32 = arith.constant 0 : i32
    %c0_i32_0 = arith.constant 0 : i32
    return %arg0, %arg1, %c0_i32 : i32, i32, i32
  }
  func.func @transform_1(%arg0: i32, %arg1: i32) -> (i32, i32, i32) {
    %c0_i32 = arith.constant 0 : i32
    %c0_i32_0 = arith.constant 0 : i32
    %c0_i32_1 = arith.constant 0 : i32
    return %arg0, %c0_i32, %c0_i32_0 : i32, i32, i32
  }
  func.func @transform_2(%arg0: i32, %arg1: i32) -> (i32, i32) {
    %c0_i32 = arith.constant 0 : i32
    %c0_i32_0 = arith.constant 0 : i32
    %c0_i32_1 = arith.constant 0 : i32
    return %c0_i32, %c0_i32_0 : i32, i32
  }
  func.func @transform_3(%arg0: i32, %arg1: i32) -> (i32, i32) {
    %c0_i32 = arith.constant 0 : i32
    %c0_i32_0 = arith.constant 0 : i32
    %c0_i32_1 = arith.constant 0 : i32
    return %c0_i32, %c0_i32_0 : i32, i32
  }
  func.func @transform_4(%arg0: i32, %arg1: i32) -> (i32, i32) {
    %c0_i32 = arith.constant 0 : i32
    %c0_i32_0 = arith.constant 0 : i32
    %c0_i32_1 = arith.constant 0 : i32
    return %c0_i32, %c0_i32_0 : i32, i32
  }
  func.func @transform_5(%arg0: i32, %arg1: i32) -> (i32, i32) {
    %c0_i32 = arith.constant 0 : i32
    %c0_i32_0 = arith.constant 0 : i32
    %c0_i32_1 = arith.constant 0 : i32
    return %c0_i32, %c0_i32_0 : i32, i32
  }
  func.func @transform_6(%arg0: i32, %arg1: i32) -> (i32, i32) {
    %c0_i32 = arith.constant 0 : i32
    %c0_i32_0 = arith.constant 0 : i32
    %c0_i32_1 = arith.constant 0 : i32
    return %c0_i32, %c0_i32_0 : i32, i32
  }
  func.func @transform_7(%arg0: i32, %arg1: i32) -> (i32, i32) {
    %c0_i32 = arith.constant 0 : i32
    %c0_i32_0 = arith.constant 0 : i32
    %c0_i32_1 = arith.constant 0 : i32
    return %c0_i32, %c0_i32_0 : i32, i32
  }
  func.func @transform_8(%arg0: i32, %arg1: i32) -> (i32, i32) {
    %c0_i32 = arith.constant 0 : i32
    %c0_i32_0 = arith.constant 0 : i32
    %c0_i32_1 = arith.constant 0 : i32
    return %c0_i32, %c0_i32_0 : i32, i32
  }
  func.func @transform_9(%arg0: i32, %arg1: i32) -> (i32, i32) {
    %c0_i32 = arith.constant 0 : i32
    %c0_i32_0 = arith.constant 0 : i32
    %c0_i32_1 = arith.constant 0 : i32
    return %c0_i32, %c0_i32_0 : i32, i32
  }
  func.func @transform_10(%arg0: i32, %arg1: i32) -> (i32, i32) {
    %c0_i32 = arith.constant 0 : i32
    %c0_i32_0 = arith.constant 0 : i32
    %c0_i32_1 = arith.constant 0 : i32
    return %c0_i32, %c0_i32_0 : i32, i32
  }
  func.func @transform_11(%arg0: i32, %arg1: i32) -> (i32, i32) {
    %c0_i32 = arith.constant 0 : i32
    %c0_i32_0 = arith.constant 0 : i32
    %c0_i32_1 = arith.constant 0 : i32
    return %c0_i32, %c0_i32_0 : i32, i32
  }
  func.func @transform_12(%arg0: i32, %arg1: i32) -> (i32, i32) {
    %c0_i32 = arith.constant 0 : i32
    %c0_i32_0 = arith.constant 0 : i32
    %c0_i32_1 = arith.constant 0 : i32
    return %c0_i32, %c0_i32_0 : i32, i32
  }
  func.func @transform_13(%arg0: i32, %arg1: i32) -> (i32, i32) {
    %c0_i32 = arith.constant 0 : i32
    %c0_i32_0 = arith.constant 0 : i32
    %c0_i32_1 = arith.constant 0 : i32
    return %c0_i32, %c0_i32_0 : i32, i32
  }
  func.func @transform_14(%arg0: i32, %arg1: i32) -> (i32, i32) {
    %c0_i32 = arith.constant 0 : i32
    %c0_i32_0 = arith.constant 0 : i32
    %c0_i32_1 = arith.constant 0 : i32
    return %c0_i32, %c0_i32_0 : i32, i32
  }
  func.func @transform_15(%arg0: i32, %arg1: i32) -> (i32, i32) {
    %c0_i32 = arith.constant 0 : i32
    %c0_i32_0 = arith.constant 0 : i32
    %c0_i32_1 = arith.constant 0 : i32
    return %c0_i32, %c0_i32_0 : i32, i32
  }
  func.func @transform_16(%arg0: i32, %arg1: i32) -> (i32, i32) {
    %c0_i32 = arith.constant 0 : i32
    %c0_i32_0 = arith.constant 0 : i32
    %c0_i32_1 = arith.constant 0 : i32
    return %c0_i32, %c0_i32_0 : i32, i32
  }
  func.func @transform_17(%arg0: i32, %arg1: i32) -> (i32, i32) {
    %c0_i32 = arith.constant 0 : i32
    %c0_i32_0 = arith.constant 0 : i32
    %c0_i32_1 = arith.constant 0 : i32
    return %c0_i32, %c0_i32_0 : i32, i32
  }
  func.func @transform_18(%arg0: i32, %arg1: i32) -> (i32, i32, i32) {
    %c0_i32 = arith.constant 0 : i32
    %c0_i32_0 = arith.constant 0 : i32
    return %arg0, %arg1, %c0_i32 : i32, i32, i32
  }
}

module attributes {stable_mosaic.version = 11 : i64} {
  func.func @_encoder_layer_kernel(%arg0: i32, %arg1: i32, %arg2: memref<1x8x32xf32, #tpu.memory_space<vmem>>, %arg3: memref<1x8x32xbf16, #tpu.memory_space<vmem>>, %arg4: memref<32x32xbf16, #tpu.memory_space<vmem>>, %arg5: memref<32x32xbf16, #tpu.memory_space<vmem>>, %arg6: memref<32x32xbf16, #tpu.memory_space<vmem>>, %arg7: memref<1x32xf32, #tpu.memory_space<vmem>>, %arg8: memref<1x32xf32, #tpu.memory_space<vmem>>, %arg9: memref<1x32xf32, #tpu.memory_space<vmem>>, %arg10: memref<32x32xbf16, #tpu.memory_space<vmem>>, %arg11: memref<1x32xf32, #tpu.memory_space<vmem>>, %arg12: memref<1x32xf32, #tpu.memory_space<vmem>>, %arg13: memref<1x32xf32, #tpu.memory_space<vmem>>, %arg14: memref<32x64xbf16, #tpu.memory_space<vmem>>, %arg15: memref<1x64xf32, #tpu.memory_space<vmem>>, %arg16: memref<64x32xbf16, #tpu.memory_space<vmem>>, %arg17: memref<1x32xf32, #tpu.memory_space<vmem>>, %arg18: memref<1x32xf32, #tpu.memory_space<vmem>>, %arg19: memref<1x32xf32, #tpu.memory_space<vmem>>, %arg20: memref<1x8x32xf32, #tpu.memory_space<vmem>>, %arg21: memref<8x32xbf16, #tpu.memory_space<vmem>>, %arg22: memref<8x32xbf16, #tpu.memory_space<vmem>>, %arg23: memref<8x32xf32, #tpu.memory_space<vmem>>) attributes {dimension_semantics = [#tpu.dimension_semantics<parallel>, #tpu.dimension_semantics<arbitrary>], iteration_bounds = array<i64: 2, 1>, scalar_prefetch = 0 : i64, scratch_operands = 3 : i64, tpu.core_type = #tpu.core_type<tc>, window_params = [{transform_indices = @transform_0, window_bounds = array<i64: 1, 8, 32>}, {transform_indices = @transform_1, window_bounds = array<i64: 1, 8, 32>}, {pipeline_mode = #tpu.pipeline_mode<synchronous>, transform_indices = @transform_2, window_bounds = array<i64: 32, 32>}, {pipeline_mode = #tpu.pipeline_mode<synchronous>, transform_indices = @transform_3, window_bounds = array<i64: 32, 32>}, {pipeline_mode = #tpu.pipeline_mode<synchronous>, transform_indices = @transform_4, window_bounds = array<i64: 32, 32>}, {pipeline_mode = #tpu.pipeline_mode<synchronous>, transform_indices = @transform_5, window_bounds = array<i64: 1, 32>}, {pipeline_mode = #tpu.pipeline_mode<synchronous>, transform_indices = @transform_6, window_bounds = array<i64: 1, 32>}, {pipeline_mode = #tpu.pipeline_mode<synchronous>, transform_indices = @transform_7, window_bounds = array<i64: 1, 32>}, {pipeline_mode = #tpu.pipeline_mode<synchronous>, transform_indices = @transform_8, window_bounds = array<i64: 32, 32>}, {pipeline_mode = #tpu.pipeline_mode<synchronous>, transform_indices = @transform_9, window_bounds = array<i64: 1, 32>}, {pipeline_mode = #tpu.pipeline_mode<synchronous>, transform_indices = @transform_10, window_bounds = array<i64: 1, 32>}, {pipeline_mode = #tpu.pipeline_mode<synchronous>, transform_indices = @transform_11, window_bounds = array<i64: 1, 32>}, {pipeline_mode = #tpu.pipeline_mode<synchronous>, transform_indices = @transform_12, window_bounds = array<i64: 32, 64>}, {pipeline_mode = #tpu.pipeline_mode<synchronous>, transform_indices = @transform_13, window_bounds = array<i64: 1, 64>}, {pipeline_mode = #tpu.pipeline_mode<synchronous>, transform_indices = @transform_14, window_bounds = array<i64: 64, 32>}, {pipeline_mode = #tpu.pipeline_mode<synchronous>, transform_indices = @transform_15, window_bounds = array<i64: 1, 32>}, {pipeline_mode = #tpu.pipeline_mode<synchronous>, transform_indices = @transform_16, window_bounds = array<i64: 1, 32>}, {pipeline_mode = #tpu.pipeline_mode<synchronous>, transform_indices = @transform_17, window_bounds = array<i64: 1, 32>}, {transform_indices = @transform_18, window_bounds = array<i64: 1, 8, 32>}]} {
    %c0_i32 = arith.constant 0 : i32
    %0 = arith.cmpi eq, %arg1, %c0_i32 : i32
    %1 = arith.extui %0 : i1 to i32
    %c0_i32_0 = arith.constant 0 : i32
    %2 = arith.cmpi ne, %1, %c0_i32_0 : i32
    scf.if %2 {
      %c0_71 = arith.constant 0 : index
      %c0_72 = arith.constant 0 : index
      %c0_73 = arith.constant 0 : index
      %156 = vector.load %arg3[%c0_71, %c0_72, %c0_73] : memref<1x8x32xbf16, #tpu.memory_space<vmem>>, vector<1x8x32xbf16>
      %157 = vector.shape_cast %156 : vector<1x8x32xbf16> to vector<8x32xbf16>
      %c0_74 = arith.constant 0 : index
      %c0_75 = arith.constant 0 : index
      %158 = vector.load %arg5[%c0_74, %c0_75] : memref<32x32xbf16, #tpu.memory_space<vmem>>, vector<32x32xbf16>
      %cst_76 = arith.constant dense<0.000000e+00> : vector<8x32xf32>
      %159 = tpu.matmul %157, %158, %cst_76 {dimension_numbers = #tpu.dot_dimension_numbers<[1], [0], [0], [1], [0, 0, 1, 1], [], []>} : vector<8x32xbf16>, vector<32x32xbf16>, vector<8x32xf32> -> vector<8x32xf32>
      %c0_77 = arith.constant 0 : index
      %c0_78 = arith.constant 0 : index
      %160 = vector.load %arg8[%c0_77, %c0_78] : memref<1x32xf32, #tpu.memory_space<vmem>>, vector<1x32xf32>
      %161 = vector.broadcast %160 : vector<1x32xf32> to vector<8x32xf32>
      %162 = arith.addf %159, %161 : vector<8x32xf32>
      %c0_79 = arith.constant 0 : index
      %c0_80 = arith.constant 0 : index
      %163 = vector.load %arg6[%c0_79, %c0_80] : memref<32x32xbf16, #tpu.memory_space<vmem>>, vector<32x32xbf16>
      %cst_81 = arith.constant dense<0.000000e+00> : vector<8x32xf32>
      %164 = tpu.matmul %157, %163, %cst_81 {dimension_numbers = #tpu.dot_dimension_numbers<[1], [0], [0], [1], [0, 0, 1, 1], [], []>} : vector<8x32xbf16>, vector<32x32xbf16>, vector<8x32xf32> -> vector<8x32xf32>
      %c0_82 = arith.constant 0 : index
      %c0_83 = arith.constant 0 : index
      %165 = vector.load %arg9[%c0_82, %c0_83] : memref<1x32xf32, #tpu.memory_space<vmem>>, vector<1x32xf32>
      %166 = vector.broadcast %165 : vector<1x32xf32> to vector<8x32xf32>
      %167 = arith.addf %164, %166 : vector<8x32xf32>
      %168 = arith.truncf %162 : vector<8x32xf32> to vector<8x32xbf16>
      %c0_84 = arith.constant 0 : index
      %c0_85 = arith.constant 0 : index
      %169 = vector.load %arg21[%c0_84, %c0_85] : memref<8x32xbf16, #tpu.memory_space<vmem>>, vector<8x32xbf16>
      tpu.vector_store %arg21[%c0_84, %c0_85], %168 {strides = array<i32>} : memref<8x32xbf16, #tpu.memory_space<vmem>>, vector<8x32xbf16>,
      %170 = arith.truncf %167 : vector<8x32xf32> to vector<8x32xbf16>
      %c0_86 = arith.constant 0 : index
      %c0_87 = arith.constant 0 : index
      %171 = vector.load %arg22[%c0_86, %c0_87] : memref<8x32xbf16, #tpu.memory_space<vmem>>, vector<8x32xbf16>
      tpu.vector_store %arg22[%c0_86, %c0_87], %170 {strides = array<i32>} : memref<8x32xbf16, #tpu.memory_space<vmem>>, vector<8x32xbf16>,
    } else {
    }
    %c0 = arith.constant 0 : index
    %c0_1 = arith.constant 0 : index
    %c0_2 = arith.constant 0 : index
    %3 = vector.load %arg2[%c0, %c0_1, %c0_2] : memref<1x8x32xf32, #tpu.memory_space<vmem>>, vector<1x8x32xf32>
    %4 = vector.shape_cast %3 : vector<1x8x32xf32> to vector<8x32xf32>
    %5 = arith.truncf %4 : vector<8x32xf32> to vector<8x32xbf16>
    %c0_3 = arith.constant 0 : index
    %c0_4 = arith.constant 0 : index
    %6 = vector.load %arg4[%c0_3, %c0_4] : memref<32x32xbf16, #tpu.memory_space<vmem>>, vector<32x32xbf16>
    %cst = arith.constant dense<0.000000e+00> : vector<8x32xf32>
    %7 = tpu.matmul %5, %6, %cst {dimension_numbers = #tpu.dot_dimension_numbers<[1], [0], [0], [1], [0, 0, 1, 1], [], []>} : vector<8x32xbf16>, vector<32x32xbf16>, vector<8x32xf32> -> vector<8x32xf32>
    %c0_5 = arith.constant 0 : index
    %c0_6 = arith.constant 0 : index
    %8 = vector.load %arg7[%c0_5, %c0_6] : memref<1x32xf32, #tpu.memory_space<vmem>>, vector<1x32xf32>
    %9 = vector.broadcast %8 : vector<1x32xf32> to vector<8x32xf32>
    %10 = arith.addf %7, %9 : vector<8x32xf32>
    %11 = arith.truncf %10 : vector<8x32xf32> to vector<8x32xbf16>
    %c0_7 = arith.constant 0 : index
    %c0_8 = arith.constant 0 : index
    %12 = vector.load %arg21[%c0_7, %c0_8] : memref<8x32xbf16, #tpu.memory_space<vmem>>, vector<8x32xbf16>
    %c0_9 = arith.constant 0 : index
    %c0_10 = arith.constant 0 : index
    %13 = vector.load %arg22[%c0_9, %c0_10] : memref<8x32xbf16, #tpu.memory_space<vmem>>, vector<8x32xbf16>
    %14 = vector.extract_strided_slice %11 {offsets = [0, 0], sizes = [8, 8], strides = [1, 1]} : vector<8x32xbf16> to vector<8x8xbf16>
    %15 = vector.extract_strided_slice %12 {offsets = [0, 0], sizes = [8, 8], strides = [1, 1]} : vector<8x32xbf16> to vector<8x8xbf16>
    %cst_11 = arith.constant dense<0.000000e+00> : vector<8x8xf32>
    %16 = tpu.matmul %14, %15, %cst_11 {dimension_numbers = #tpu.dot_dimension_numbers<[1], [1], [0], [0], [0, 0, 1, 0], [], []>} : vector<8x8xbf16>, vector<8x8xbf16>, vector<8x8xf32> -> vector<8x8xf32>
    %cst_12 = arith.constant dense<0xFF800000> : vector<8xf32>
    %17 = vector.multi_reduction <maximumf>, %16, %cst_12 [1] : vector<8x8xf32> to vector<8xf32>
    %18 = vector.shape_cast %17 : vector<8xf32> to vector<8x1xf32>
    %19 = vector.broadcast %18 : vector<8x1xf32> to vector<8x8xf32>
    %20 = arith.subf %16, %19 : vector<8x8xf32>
    %21 = math.exp %20 : vector<8x8xf32>
    %cst_13 = arith.constant dense<0.000000e+00> : vector<8xf32>
    %22 = vector.multi_reduction <add>, %21, %cst_13 [1] : vector<8x8xf32> to vector<8xf32>
    %23 = vector.shape_cast %22 : vector<8xf32> to vector<8x1xf32>
    %24 = tpu.reciprocal %23 {approx = true} : vector<8x1xf32> -> vector<8x1xf32>
    %25 = vector.broadcast %24 : vector<8x1xf32> to vector<8x8xf32>
    %26 = arith.mulf %21, %25 : vector<8x8xf32>
    %27 = arith.truncf %26 : vector<8x8xf32> to vector<8x8xbf16>
    %28 = vector.extract_strided_slice %13 {offsets = [0, 0], sizes = [8, 8], strides = [1, 1]} : vector<8x32xbf16> to vector<8x8xbf16>
    %cst_14 = arith.constant dense<0.000000e+00> : vector<8x8xf32>
    %29 = tpu.matmul %27, %28, %cst_14 {dimension_numbers = #tpu.dot_dimension_numbers<[1], [0], [0], [1], [0, 0, 1, 1], [], []>} : vector<8x8xbf16>, vector<8x8xbf16>, vector<8x8xf32> -> vector<8x8xf32>
    %c0_15 = arith.constant 0 : index
    %c0_16 = arith.constant 0 : index
    %30 = vector.load %arg23[%c0_15, %c0_16] : memref<8x32xf32, #tpu.memory_space<vmem>>, vector<8x8xf32>
    tpu.vector_store %arg23[%c0_15, %c0_16], %29 {strides = array<i32>} : memref<8x32xf32, #tpu.memory_space<vmem>>, vector<8x8xf32>,
    %31 = vector.extract_strided_slice %11 {offsets = [0, 8], sizes = [8, 8], strides = [1, 1]} : vector<8x32xbf16> to vector<8x8xbf16>
    %32 = vector.extract_strided_slice %12 {offsets = [0, 8], sizes = [8, 8], strides = [1, 1]} : vector<8x32xbf16> to vector<8x8xbf16>
    %cst_17 = arith.constant dense<0.000000e+00> : vector<8x8xf32>
    %33 = tpu.matmul %31, %32, %cst_17 {dimension_numbers = #tpu.dot_dimension_numbers<[1], [1], [0], [0], [0, 0, 1, 0], [], []>} : vector<8x8xbf16>, vector<8x8xbf16>, vector<8x8xf32> -> vector<8x8xf32>
    %cst_18 = arith.constant dense<0xFF800000> : vector<8xf32>
    %34 = vector.multi_reduction <maximumf>, %33, %cst_18 [1] : vector<8x8xf32> to vector<8xf32>
    %35 = vector.shape_cast %34 : vector<8xf32> to vector<8x1xf32>
    %36 = vector.broadcast %35 : vector<8x1xf32> to vector<8x8xf32>
    %37 = arith.subf %33, %36 : vector<8x8xf32>
    %38 = math.exp %37 : vector<8x8xf32>
    %cst_19 = arith.constant dense<0.000000e+00> : vector<8xf32>
    %39 = vector.multi_reduction <add>, %38, %cst_19 [1] : vector<8x8xf32> to vector<8xf32>
    %40 = vector.shape_cast %39 : vector<8xf32> to vector<8x1xf32>
    %41 = tpu.reciprocal %40 {approx = true} : vector<8x1xf32> -> vector<8x1xf32>
    %42 = vector.broadcast %41 : vector<8x1xf32> to vector<8x8xf32>
    %43 = arith.mulf %38, %42 : vector<8x8xf32>
    %44 = arith.truncf %43 : vector<8x8xf32> to vector<8x8xbf16>
    %45 = vector.extract_strided_slice %13 {offsets = [0, 8], sizes = [8, 8], strides = [1, 1]} : vector<8x32xbf16> to vector<8x8xbf16>
    %cst_20 = arith.constant dense<0.000000e+00> : vector<8x8xf32>
    %46 = tpu.matmul %44, %45, %cst_20 {dimension_numbers = #tpu.dot_dimension_numbers<[1], [0], [0], [1], [0, 0, 1, 1], [], []>} : vector<8x8xbf16>, vector<8x8xbf16>, vector<8x8xf32> -> vector<8x8xf32>
    %c0_21 = arith.constant 0 : index
    %c8 = arith.constant 8 : index
    %47 = vector.load %arg23[%c0_21, %c8] : memref<8x32xf32, #tpu.memory_space<vmem>>, vector<8x8xf32>
    tpu.vector_store %arg23[%c0_21, %c8], %46 {strides = array<i32>} : memref<8x32xf32, #tpu.memory_space<vmem>>, vector<8x8xf32>,
    %48 = vector.extract_strided_slice %11 {offsets = [0, 16], sizes = [8, 8], strides = [1, 1]} : vector<8x32xbf16> to vector<8x8xbf16>
    %49 = vector.extract_strided_slice %12 {offsets = [0, 16], sizes = [8, 8], strides = [1, 1]} : vector<8x32xbf16> to vector<8x8xbf16>
    %cst_22 = arith.constant dense<0.000000e+00> : vector<8x8xf32>
    %50 = tpu.matmul %48, %49, %cst_22 {dimension_numbers = #tpu.dot_dimension_numbers<[1], [1], [0], [0], [0, 0, 1, 0], [], []>} : vector<8x8xbf16>, vector<8x8xbf16>, vector<8x8xf32> -> vector<8x8xf32>
    %cst_23 = arith.constant dense<0xFF800000> : vector<8xf32>
    %51 = vector.multi_reduction <maximumf>, %50, %cst_23 [1] : vector<8x8xf32> to vector<8xf32>
    %52 = vector.shape_cast %51 : vector<8xf32> to vector<8x1xf32>
    %53 = vector.broadcast %52 : vector<8x1xf32> to vector<8x8xf32>
    %54 = arith.subf %50, %53 : vector<8x8xf32>
    %55 = math.exp %54 : vector<8x8xf32>
    %cst_24 = arith.constant dense<0.000000e+00> : vector<8xf32>
    %56 = vector.multi_reduction <add>, %55, %cst_24 [1] : vector<8x8xf32> to vector<8xf32>
    %57 = vector.shape_cast %56 : vector<8xf32> to vector<8x1xf32>
    %58 = tpu.reciprocal %57 {approx = true} : vector<8x1xf32> -> vector<8x1xf32>
    %59 = vector.broadcast %58 : vector<8x1xf32> to vector<8x8xf32>
    %60 = arith.mulf %55, %59 : vector<8x8xf32>
    %61 = arith.truncf %60 : vector<8x8xf32> to vector<8x8xbf16>
    %62 = vector.extract_strided_slice %13 {offsets = [0, 16], sizes = [8, 8], strides = [1, 1]} : vector<8x32xbf16> to vector<8x8xbf16>
    %cst_25 = arith.constant dense<0.000000e+00> : vector<8x8xf32>
    %63 = tpu.matmul %61, %62, %cst_25 {dimension_numbers = #tpu.dot_dimension_numbers<[1], [0], [0], [1], [0, 0, 1, 1], [], []>} : vector<8x8xbf16>, vector<8x8xbf16>, vector<8x8xf32> -> vector<8x8xf32>
    %c0_26 = arith.constant 0 : index
    %c16 = arith.constant 16 : index
    %64 = vector.load %arg23[%c0_26, %c16] : memref<8x32xf32, #tpu.memory_space<vmem>>, vector<8x8xf32>
    tpu.vector_store %arg23[%c0_26, %c16], %63 {strides = array<i32>} : memref<8x32xf32, #tpu.memory_space<vmem>>, vector<8x8xf32>,
    %65 = vector.extract_strided_slice %11 {offsets = [0, 24], sizes = [8, 8], strides = [1, 1]} : vector<8x32xbf16> to vector<8x8xbf16>
    %66 = vector.extract_strided_slice %12 {offsets = [0, 24], sizes = [8, 8], strides = [1, 1]} : vector<8x32xbf16> to vector<8x8xbf16>
    %cst_27 = arith.constant dense<0.000000e+00> : vector<8x8xf32>
    %67 = tpu.matmul %65, %66, %cst_27 {dimension_numbers = #tpu.dot_dimension_numbers<[1], [1], [0], [0], [0, 0, 1, 0], [], []>} : vector<8x8xbf16>, vector<8x8xbf16>, vector<8x8xf32> -> vector<8x8xf32>
    %cst_28 = arith.constant dense<0xFF800000> : vector<8xf32>
    %68 = vector.multi_reduction <maximumf>, %67, %cst_28 [1] : vector<8x8xf32> to vector<8xf32>
    %69 = vector.shape_cast %68 : vector<8xf32> to vector<8x1xf32>
    %70 = vector.broadcast %69 : vector<8x1xf32> to vector<8x8xf32>
    %71 = arith.subf %67, %70 : vector<8x8xf32>
    %72 = math.exp %71 : vector<8x8xf32>
    %cst_29 = arith.constant dense<0.000000e+00> : vector<8xf32>
    %73 = vector.multi_reduction <add>, %72, %cst_29 [1] : vector<8x8xf32> to vector<8xf32>
    %74 = vector.shape_cast %73 : vector<8xf32> to vector<8x1xf32>
    %75 = tpu.reciprocal %74 {approx = true} : vector<8x1xf32> -> vector<8x1xf32>
    %76 = vector.broadcast %75 : vector<8x1xf32> to vector<8x8xf32>
    %77 = arith.mulf %72, %76 : vector<8x8xf32>
    %78 = arith.truncf %77 : vector<8x8xf32> to vector<8x8xbf16>
    %79 = vector.extract_strided_slice %13 {offsets = [0, 24], sizes = [8, 8], strides = [1, 1]} : vector<8x32xbf16> to vector<8x8xbf16>
    %cst_30 = arith.constant dense<0.000000e+00> : vector<8x8xf32>
    %80 = tpu.matmul %78, %79, %cst_30 {dimension_numbers = #tpu.dot_dimension_numbers<[1], [0], [0], [1], [0, 0, 1, 1], [], []>} : vector<8x8xbf16>, vector<8x8xbf16>, vector<8x8xf32> -> vector<8x8xf32>
    %c0_31 = arith.constant 0 : index
    %c24 = arith.constant 24 : index
    %81 = vector.load %arg23[%c0_31, %c24] : memref<8x32xf32, #tpu.memory_space<vmem>>, vector<8x8xf32>
    tpu.vector_store %arg23[%c0_31, %c24], %80 {strides = array<i32>} : memref<8x32xf32, #tpu.memory_space<vmem>>, vector<8x8xf32>,
    %c0_32 = arith.constant 0 : index
    %c0_33 = arith.constant 0 : index
    %82 = vector.load %arg23[%c0_32, %c0_33] : memref<8x32xf32, #tpu.memory_space<vmem>>, vector<8x32xf32>
    %83 = arith.truncf %82 : vector<8x32xf32> to vector<8x32xbf16>
    %c0_34 = arith.constant 0 : index
    %c0_35 = arith.constant 0 : index
    %84 = vector.load %arg10[%c0_34, %c0_35] : memref<32x32xbf16, #tpu.memory_space<vmem>>, vector<32x32xbf16>
    %cst_36 = arith.constant dense<0.000000e+00> : vector<8x32xf32>
    %85 = tpu.matmul %83, %84, %cst_36 {dimension_numbers = #tpu.dot_dimension_numbers<[1], [0], [0], [1], [0, 0, 1, 1], [], []>} : vector<8x32xbf16>, vector<32x32xbf16>, vector<8x32xf32> -> vector<8x32xf32>
    %c0_37 = arith.constant 0 : index
    %c0_38 = arith.constant 0 : index
    %86 = vector.load %arg11[%c0_37, %c0_38] : memref<1x32xf32, #tpu.memory_space<vmem>>, vector<1x32xf32>
    %87 = vector.broadcast %86 : vector<1x32xf32> to vector<8x32xf32>
    %88 = arith.addf %85, %87 : vector<8x32xf32>
    %89 = arith.addf %4, %88 : vector<8x32xf32>
    %cst_39 = arith.constant dense<0.000000e+00> : vector<8xf32>
    %90 = vector.multi_reduction <add>, %89, %cst_39 [1] : vector<8x32xf32> to vector<8xf32>
    %91 = vector.shape_cast %90 : vector<8xf32> to vector<8x1xf32>
    %cst_40 = arith.constant 3.200000e+01 : f32
    %92 = vector.broadcast %cst_40 : f32 to vector<8x1xf32>
    %93 = arith.divf %91, %92 : vector<8x1xf32>
    %94 = vector.broadcast %93 : vector<8x1xf32> to vector<8x32xf32>
    %95 = arith.subf %89, %94 : vector<8x32xf32>
    %96 = arith.mulf %95, %95 : vector<8x32xf32>
    %cst_41 = arith.constant dense<0.000000e+00> : vector<8xf32>
    %97 = vector.multi_reduction <add>, %96, %cst_41 [1] : vector<8x32xf32> to vector<8xf32>
    %98 = vector.shape_cast %97 : vector<8xf32> to vector<8x1xf32>
    %cst_42 = arith.constant 3.200000e+01 : f32
    %99 = vector.broadcast %cst_42 : f32 to vector<8x1xf32>
    %100 = arith.divf %98, %99 : vector<8x1xf32>
    %101 = vector.broadcast %93 : vector<8x1xf32> to vector<8x32xf32>
    %102 = arith.subf %89, %101 : vector<8x32xf32>
    %cst_43 = arith.constant 9.99999974E-6 : f32
    %103 = vector.broadcast %cst_43 : f32 to vector<8x1xf32>
    %104 = arith.addf %100, %103 : vector<8x1xf32>
    %105 = math.rsqrt %104 : vector<8x1xf32>
    %106 = vector.broadcast %105 : vector<8x1xf32> to vector<8x32xf32>
    %107 = arith.mulf %102, %106 : vector<8x32xf32>
    %c0_44 = arith.constant 0 : index
    %c0_45 = arith.constant 0 : index
    %108 = vector.load %arg12[%c0_44, %c0_45] : memref<1x32xf32, #tpu.memory_space<vmem>>, vector<1x32xf32>
    %109 = vector.broadcast %108 : vector<1x32xf32> to vector<8x32xf32>
    %110 = arith.mulf %107, %109 : vector<8x32xf32>
    %c0_46 = arith.constant 0 : index
    %c0_47 = arith.constant 0 : index
    %111 = vector.load %arg13[%c0_46, %c0_47] : memref<1x32xf32, #tpu.memory_space<vmem>>, vector<1x32xf32>
    %112 = vector.broadcast %111 : vector<1x32xf32> to vector<8x32xf32>
    %113 = arith.addf %110, %112 : vector<8x32xf32>
    %114 = arith.truncf %113 : vector<8x32xf32> to vector<8x32xbf16>
    %c0_48 = arith.constant 0 : index
    %c0_49 = arith.constant 0 : index
    %115 = vector.load %arg14[%c0_48, %c0_49] : memref<32x64xbf16, #tpu.memory_space<vmem>>, vector<32x64xbf16>
    %cst_50 = arith.constant dense<0.000000e+00> : vector<8x64xf32>
    %116 = tpu.matmul %114, %115, %cst_50 {dimension_numbers = #tpu.dot_dimension_numbers<[1], [0], [0], [1], [0, 0, 1, 1], [], []>} : vector<8x32xbf16>, vector<32x64xbf16>, vector<8x64xf32> -> vector<8x64xf32>
    %c0_51 = arith.constant 0 : index
    %c0_52 = arith.constant 0 : index
    %117 = vector.load %arg15[%c0_51, %c0_52] : memref<1x64xf32, #tpu.memory_space<vmem>>, vector<1x64xf32>
    %118 = vector.broadcast %117 : vector<1x64xf32> to vector<8x64xf32>
    %119 = arith.addf %116, %118 : vector<8x64xf32>
    %cst_53 = arith.constant 0.000000e+00 : f32
    %120 = vector.broadcast %cst_53 : f32 to vector<8x64xf32>
    %121 = arith.maximumf %119, %120 : vector<8x64xf32>
    %122 = arith.truncf %121 : vector<8x64xf32> to vector<8x64xbf16>
    %c0_54 = arith.constant 0 : index
    %c0_55 = arith.constant 0 : index
    %123 = vector.load %arg16[%c0_54, %c0_55] : memref<64x32xbf16, #tpu.memory_space<vmem>>, vector<64x32xbf16>
    %cst_56 = arith.constant dense<0.000000e+00> : vector<8x32xf32>
    %124 = tpu.matmul %122, %123, %cst_56 {dimension_numbers = #tpu.dot_dimension_numbers<[1], [0], [0], [1], [0, 0, 1, 1], [], []>} : vector<8x64xbf16>, vector<64x32xbf16>, vector<8x32xf32> -> vector<8x32xf32>
    %c0_57 = arith.constant 0 : index
    %c0_58 = arith.constant 0 : index
    %125 = vector.load %arg17[%c0_57, %c0_58] : memref<1x32xf32, #tpu.memory_space<vmem>>, vector<1x32xf32>
    %126 = vector.broadcast %125 : vector<1x32xf32> to vector<8x32xf32>
    %127 = arith.addf %124, %126 : vector<8x32xf32>
    %128 = arith.addf %113, %127 : vector<8x32xf32>
    %cst_59 = arith.constant dense<0.000000e+00> : vector<8xf32>
    %129 = vector.multi_reduction <add>, %128, %cst_59 [1] : vector<8x32xf32> to vector<8xf32>
    %130 = vector.shape_cast %129 : vector<8xf32> to vector<8x1xf32>
    %cst_60 = arith.constant 3.200000e+01 : f32
    %131 = vector.broadcast %cst_60 : f32 to vector<8x1xf32>
    %132 = arith.divf %130, %131 : vector<8x1xf32>
    %133 = vector.broadcast %132 : vector<8x1xf32> to vector<8x32xf32>
    %134 = arith.subf %128, %133 : vector<8x32xf32>
    %135 = arith.mulf %134, %134 : vector<8x32xf32>
    %cst_61 = arith.constant dense<0.000000e+00> : vector<8xf32>
    %136 = vector.multi_reduction <add>, %135, %cst_61 [1] : vector<8x32xf32> to vector<8xf32>
    %137 = vector.shape_cast %136 : vector<8xf32> to vector<8x1xf32>
    %cst_62 = arith.constant 3.200000e+01 : f32
    %138 = vector.broadcast %cst_62 : f32 to vector<8x1xf32>
    %139 = arith.divf %137, %138 : vector<8x1xf32>
    %140 = vector.broadcast %132 : vector<8x1xf32> to vector<8x32xf32>
    %141 = arith.subf %128, %140 : vector<8x32xf32>
    %cst_63 = arith.constant 9.99999974E-6 : f32
    %142 = vector.broadcast %cst_63 : f32 to vector<8x1xf32>
    %143 = arith.addf %139, %142 : vector<8x1xf32>
    %144 = math.rsqrt %143 : vector<8x1xf32>
    %145 = vector.broadcast %144 : vector<8x1xf32> to vector<8x32xf32>
    %146 = arith.mulf %141, %145 : vector<8x32xf32>
    %c0_64 = arith.constant 0 : index
    %c0_65 = arith.constant 0 : index
    %147 = vector.load %arg18[%c0_64, %c0_65] : memref<1x32xf32, #tpu.memory_space<vmem>>, vector<1x32xf32>
    %148 = vector.broadcast %147 : vector<1x32xf32> to vector<8x32xf32>
    %149 = arith.mulf %146, %148 : vector<8x32xf32>
    %c0_66 = arith.constant 0 : index
    %c0_67 = arith.constant 0 : index
    %150 = vector.load %arg19[%c0_66, %c0_67] : memref<1x32xf32, #tpu.memory_space<vmem>>, vector<1x32xf32>
    %151 = vector.broadcast %150 : vector<1x32xf32> to vector<8x32xf32>
    %152 = arith.addf %149, %151 : vector<8x32xf32>
    %c0_68 = arith.constant 0 : index
    %c0_69 = arith.constant 0 : index
    %c0_70 = arith.constant 0 : index
    %153 = vector.load %arg20[%c0_68, %c0_69, %c0_70] : memref<1x8x32xf32, #tpu.memory_space<vmem>>, vector<1x8x32xf32>
    %154 = vector.shape_cast %153 : vector<1x8x32xf32> to vector<8x32xf32>
    %155 = vector.shape_cast %152 : vector<8x32xf32> to vector<1x8x32xf32>
    tpu.vector_store %arg20[%c0_68, %c0_69, %c0_70], %155 {strides = array<i32>} : memref<1x8x32xf32, #tpu.memory_space<vmem>>, vector<1x8x32xf32>,
    return
  }
  func.func @transform_0(%arg0: i32, %arg1: i32) -> (i32, i32, i32) {
    %c0_i32 = arith.constant 0 : i32
    %c0_i32_0 = arith.constant 0 : i32
    return %arg0, %arg1, %c0_i32 : i32, i32, i32
  }
  func.func @transform_1(%arg0: i32, %arg1: i32) -> (i32, i32, i32) {
    %c0_i32 = arith.constant 0 : i32
    %c0_i32_0 = arith.constant 0 : i32
    %c0_i32_1 = arith.constant 0 : i32
    return %arg0, %c0_i32, %c0_i32_0 : i32, i32, i32
  }
  func.func @transform_2(%arg0: i32, %arg1: i32) -> (i32, i32) {
    %c0_i32 = arith.constant 0 : i32
    %c0_i32_0 = arith.constant 0 : i32
    %c0_i32_1 = arith.constant 0 : i32
    return %c0_i32, %c0_i32_0 : i32, i32
  }
  func.func @transform_3(%arg0: i32, %arg1: i32) -> (i32, i32) {
    %c0_i32 = arith.constant 0 : i32
    %c0_i32_0 = arith.constant 0 : i32
    %c0_i32_1 = arith.constant 0 : i32
    return %c0_i32, %c0_i32_0 : i32, i32
  }
  func.func @transform_4(%arg0: i32, %arg1: i32) -> (i32, i32) {
    %c0_i32 = arith.constant 0 : i32
    %c0_i32_0 = arith.constant 0 : i32
    %c0_i32_1 = arith.constant 0 : i32
    return %c0_i32, %c0_i32_0 : i32, i32
  }
  func.func @transform_5(%arg0: i32, %arg1: i32) -> (i32, i32) {
    %c0_i32 = arith.constant 0 : i32
    %c0_i32_0 = arith.constant 0 : i32
    %c0_i32_1 = arith.constant 0 : i32
    return %c0_i32, %c0_i32_0 : i32, i32
  }
  func.func @transform_6(%arg0: i32, %arg1: i32) -> (i32, i32) {
    %c0_i32 = arith.constant 0 : i32
    %c0_i32_0 = arith.constant 0 : i32
    %c0_i32_1 = arith.constant 0 : i32
    return %c0_i32, %c0_i32_0 : i32, i32
  }
  func.func @transform_7(%arg0: i32, %arg1: i32) -> (i32, i32) {
    %c0_i32 = arith.constant 0 : i32
    %c0_i32_0 = arith.constant 0 : i32
    %c0_i32_1 = arith.constant 0 : i32
    return %c0_i32, %c0_i32_0 : i32, i32
  }
  func.func @transform_8(%arg0: i32, %arg1: i32) -> (i32, i32) {
    %c0_i32 = arith.constant 0 : i32
    %c0_i32_0 = arith.constant 0 : i32
    %c0_i32_1 = arith.constant 0 : i32
    return %c0_i32, %c0_i32_0 : i32, i32
  }
  func.func @transform_9(%arg0: i32, %arg1: i32) -> (i32, i32) {
    %c0_i32 = arith.constant 0 : i32
    %c0_i32_0 = arith.constant 0 : i32
    %c0_i32_1 = arith.constant 0 : i32
    return %c0_i32, %c0_i32_0 : i32, i32
  }
  func.func @transform_10(%arg0: i32, %arg1: i32) -> (i32, i32) {
    %c0_i32 = arith.constant 0 : i32
    %c0_i32_0 = arith.constant 0 : i32
    %c0_i32_1 = arith.constant 0 : i32
    return %c0_i32, %c0_i32_0 : i32, i32
  }
  func.func @transform_11(%arg0: i32, %arg1: i32) -> (i32, i32) {
    %c0_i32 = arith.constant 0 : i32
    %c0_i32_0 = arith.constant 0 : i32
    %c0_i32_1 = arith.constant 0 : i32
    return %c0_i32, %c0_i32_0 : i32, i32
  }
  func.func @transform_12(%arg0: i32, %arg1: i32) -> (i32, i32) {
    %c0_i32 = arith.constant 0 : i32
    %c0_i32_0 = arith.constant 0 : i32
    %c0_i32_1 = arith.constant 0 : i32
    return %c0_i32, %c0_i32_0 : i32, i32
  }
  func.func @transform_13(%arg0: i32, %arg1: i32) -> (i32, i32) {
    %c0_i32 = arith.constant 0 : i32
    %c0_i32_0 = arith.constant 0 : i32
    %c0_i32_1 = arith.constant 0 : i32
    return %c0_i32, %c0_i32_0 : i32, i32
  }
  func.func @transform_14(%arg0: i32, %arg1: i32) -> (i32, i32) {
    %c0_i32 = arith.constant 0 : i32
    %c0_i32_0 = arith.constant 0 : i32
    %c0_i32_1 = arith.constant 0 : i32
    return %c0_i32, %c0_i32_0 : i32, i32
  }
  func.func @transform_15(%arg0: i32, %arg1: i32) -> (i32, i32) {
    %c0_i32 = arith.constant 0 : i32
    %c0_i32_0 = arith.constant 0 : i32
    %c0_i32_1 = arith.constant 0 : i32
    return %c0_i32, %c0_i32_0 : i32, i32
  }
  func.func @transform_16(%arg0: i32, %arg1: i32) -> (i32, i32) {
    %c0_i32 = arith.constant 0 : i32
    %c0_i32_0 = arith.constant 0 : i32
    %c0_i32_1 = arith.constant 0 : i32
    return %c0_i32, %c0_i32_0 : i32, i32
  }
  func.func @transform_17(%arg0: i32, %arg1: i32) -> (i32, i32) {
    %c0_i32 = arith.constant 0 : i32
    %c0_i32_0 = arith.constant 0 : i32
    %c0_i32_1 = arith.constant 0 : i32
    return %c0_i32, %c0_i32_0 : i32, i32
  }
  func.func @transform_18(%arg0: i32, %arg1: i32) -> (i32, i32, i32) {
    %c0_i32 = arith.constant 0 : i32
    %c0_i32_0 = arith.constant 0 : i32
    return %arg0, %arg1, %c0_i32 : i32, i32, i32
  }
}

</mosaic_0001>

<llo_original>
// kernel: tpu_custom_call.1
$region0: #{tpu_custom_call.1}
  #allocation0 [shape = 'u32[]', space=smem, size = 0x4, offset = 0x4, fixed_abs, tag = 'smem constant byte address 0x4 - core index']
  #allocation1 [shape = 'u32[72,128]{1,0:T(1,128)}', space=vmem, size = 0x9000, scoped, tag = 'internal scratch']
  #allocation2 [shape = 'bf16[8,32]{1,0:T(8,128)(2,1)}', space=vmem, size = 0x800, scoped, tag = 'scratch operand']
  #allocation3 [shape = 'bf16[8,32]{1,0:T(8,128)(2,1)}', space=vmem, size = 0x800, scoped, tag = 'scratch operand']
  #allocation4 [shape = 'f32[8,32]{1,0:T(8,128)}', space=vmem, size = 0x1000, scoped, tag = 'scratch operand']
  %s0 = inlined_call_operand.vmem [shape: f32[2,8,32], index: 0, kind: input, shape index: {}]
  %s1 = inlined_call_operand.hbm [shape: bf16[2,8,32], index: 1, kind: input, shape index: {}]
  %s2 = inlined_call_operand.vmem [shape: bf16[32,32], index: 2, kind: input, shape index: {}]
  %s3 = inlined_call_operand.vmem [shape: bf16[32,32], index: 3, kind: input, shape index: {}]
  %s4 = inlined_call_operand.hbm [shape: bf16[32,32], index: 4, kind: input, shape index: {}]
  %s5 = inlined_call_operand.vmem [shape: f32[1,32], index: 5, kind: input, shape index: {}]
  %s6 = inlined_call_operand.vmem [shape: f32[1,32], index: 6, kind: input, shape index: {}]
  %s7 = inlined_call_operand.vmem [shape: f32[1,32], index: 7, kind: input, shape index: {}]
  %s8 = inlined_call_operand.hbm [shape: bf16[32,32], index: 8, kind: input, shape index: {}]
  %s9 = inlined_call_operand.vmem [shape: f32[1,32], index: 9, kind: input, shape index: {}]
  %s10 = inlined_call_operand.vmem [shape: f32[1,32], index: 10, kind: input, shape index: {}]
  %s11 = inlined_call_operand.vmem [shape: f32[1,32], index: 11, kind: input, shape index: {}]
  %s12 = inlined_call_operand.hbm [shape: bf16[32,64], index: 12, kind: input, shape index: {}]
  %s13 = inlined_call_operand.vmem [shape: f32[1,64], index: 13, kind: input, shape index: {}]
  %s14 = inlined_call_operand.vmem [shape: bf16[64,32], index: 14, kind: input, shape index: {}]
  %s15 = inlined_call_operand.vmem [shape: f32[1,32], index: 15, kind: input, shape index: {}]
  %s16 = inlined_call_operand.vmem [shape: f32[1,32], index: 16, kind: input, shape index: {}]
  %s17 = inlined_call_operand.vmem [shape: f32[1,32], index: 17, kind: input, shape index: {}]
  %s18 = inlined_call_operand.hbm [shape: f32[2,8,32], index: 18, kind: output, shape index: {}]
  %s19 = sld [smem:[#allocation0]]
  $region125: #{tpu_custom_call.1} parent=0
    _
  %s21 = ssub.s32 1, %s19
  %s22 = scalar_select 0, %s21, %s19
  $region1: #{tpu_custom_call.1} parent=0
    #allocation5 [shape = 'u8[4096]{0}', space=vmem, size = 0x1000, scoped, tag = 'input window, operand 1']
    #allocation6 [shape = 's32[2]{0}', space=sflag, size = 0x8, scoped, tag = 'scoped memory for tpu_custom_call.1']
    #allocation7 [shape = 's32[2]{0}', space=sflag, size = 0x8, scoped, tag = 'scoped memory for tpu_custom_call.1']
    #allocation8 [shape = 'u8[8192]{0}', space=vmem, size = 0x2000, scoped, tag = 'input window, operand 4, single buffered']
    #allocation9 [shape = 's32[1]{0}', space=sflag, size = 0x4, scoped, tag = 'scoped memory for tpu_custom_call.1']
    #allocation10 [shape = 'u8[8192]{0}', space=vmem, size = 0x2000, scoped, tag = 'input window, operand 8, single buffered']
    #allocation11 [shape = 'u8[8192]{0}', space=vmem, size = 0x2000, scoped, tag = 'input window, operand 12, single buffered']
    #allocation12 [shape = 's32[1]{0}', space=sflag, size = 0x4, scoped, tag = 'scoped memory for tpu_custom_call.1']
    #allocation13 [shape = 'u8[8192]{0}', space=vmem, size = 0x2000, scoped, tag = 'output window, operand 0']
    %23 = vsyncpa [#allocation6], 0
    %s24 = scalar_lea.sflag [#allocation6], 1
    %25 = vsyncpa %s24, 0
    %26 = vsyncpa [#allocation9], 0
    %27 = vsyncpa [#allocation12], 0
    %28 = vsyncpa [#allocation7], 0
    %s29 = scalar_lea.sflag [#allocation7], 1
    %30 = vsyncpa %s29, 0
    loop: start=0, step=1, limit=4
    $region2: #{tpu_custom_call.1} parent=1 // loop_pre_header
      _
    $region3: #{tpu_custom_call.1} parent=1 // loop_header
      %s32 = sphi 0, %s36
      %p33 = scmp.ge.s32.totalorder %s32, 4
      %s39 = sphi 0, %s51
      %s40 = sphi 0, %s47
      %s41 = sphi 0, %s39
      %s42 = sphi 0, %s40
      %s43 = sphi 0, %s41
      %s44 = sphi 0, %s42
      %s56 = sphi 0, %s58
      %s59 = sphi 0, %s56
      %s60 = sphi 0, %s59
      %s76 = sphi 0, %s60
      %s82 = sphi 0, %s84
      %s85 = sphi 0, %s82
      %s86 = sphi 0, %s85
      %s102 = sphi 0, %s86
      %s106 = sphi 0, %s106
      %s108 = sphi 0, %s106
      %s109 = sphi 0, %s108
      %s123 = sphi 0, %s109
      %s127 = sphi 0, %s127
      %s129 = sphi 0, %s127
      %s130 = sphi 0, %s129
      %s144 = sphi 0, %s130
      %s148 = sphi 0, %s148
      %s150 = sphi 0, %s148
      %s151 = sphi 0, %s150
      %s165 = sphi 0, %s151
      %s169 = sphi 0, %s169
      %s171 = sphi 0, %s169
      %s172 = sphi 0, %s171
      %s186 = sphi 0, %s172
      %s190 = sphi 0, %s190
      %s192 = sphi 0, %s190
      %s193 = sphi 0, %s192
      %s207 = sphi 0, %s193
      %s211 = sphi 0, %s211
      %s213 = sphi 0, %s211
      %s214 = sphi 0, %s213
      %s228 = sphi 0, %s214
      %s232 = sphi 0, %s232
      %s234 = sphi 0, %s232
      %s235 = sphi 0, %s234
      %s249 = sphi 0, %s235
      %s253 = sphi 0, %s253
      %s255 = sphi 0, %s253
      %s256 = sphi 0, %s255
      %s270 = sphi 0, %s256
      %s274 = sphi 0, %s274
      %s276 = sphi 0, %s274
      %s277 = sphi 0, %s276
      %s291 = sphi 0, %s277
      %s295 = sphi 0, %s295
      %s297 = sphi 0, %s295
      %s298 = sphi 0, %s297
      %s312 = sphi 0, %s298
      %s316 = sphi 0, %s316
      %s318 = sphi 0, %s316
      %s319 = sphi 0, %s318
      %s333 = sphi 0, %s319
      %s337 = sphi 0, %s337
      %s339 = sphi 0, %s337
      %s340 = sphi 0, %s339
      %s354 = sphi 0, %s340
      %s358 = sphi 0, %s358
      %s360 = sphi 0, %s358
      %s361 = sphi 0, %s360
      %s375 = sphi 0, %s361
      %s379 = sphi 0, %s379
      %s381 = sphi 0, %s379
      %s382 = sphi 0, %s381
      %s396 = sphi 0, %s382
      %s400 = sphi 0, %s400
      %s402 = sphi 0, %s400
      %s403 = sphi 0, %s402
      %s417 = sphi 0, %s403
      %s421 = sphi 0, %s421
      %s423 = sphi 0, %s421
      %s424 = sphi 0, %s423
      %s438 = sphi 0, %s424
      %s446 = sphi 0, %s448
      %s449 = sphi 0, %s446
      %s450 = sphi 0, %s449
      %s466 = sphi 0, %s450
    $region4: #{tpu_custom_call.1} parent=1 // loop_header_branch
      %35 = sbr.rel (%p33) target = $region8
    $region5: #{tpu_custom_call.1} parent=1 // loop_body
      %s37 = ssub.s32 %s32, 1
      %s38 = ssub.s32 %s32, 2
      %s45 = sadd.s32 1, %s40
      %p46 = scmp.ge.s32.totalorder %s45, 1
      %s47 = scalar_select %p46, 0, %s45
      %s48 = sadd.s32 1, %s39
      %s49 = scalar_select %p46, %s48, %s39
      %p50 = scmp.ge.s32.totalorder %s49, 2
      %s51 = scalar_select %p50, 0, %s49
      %s52 = ssub.s32 %s39, %s51
      %s53 = ssub.s32 %s40, %s47
      %s54 = sor.u32 %s52, %s53
      %p55 = scmp.eq.s32.totalorder %s54, 0
      %s57 = sadd.s32 %s56, 1
      %s58 = scalar_select %p55, %s56, %s57
      %p61 = pneg %p55
      %p62 = scmp.eq.s32.totalorder %s32, 1
      %p63 = por %p61, %p62
      %p64 = scmp.ne.s32.totalorder %s56, %s59
      %p65 = scmp.eq.s32.totalorder %s32, 0
      %p66 = por %p64, %p65
      %p67 = scmp.ne.s32.totalorder %s56, %s59
      %p68 = scmp.eq.s32.totalorder %s37, 1
      %p69 = por %p67, %p68
      %p70 = scmp.ne.s32.totalorder %s59, %s60
      %p71 = scmp.eq.s32.totalorder %s37, 0
      %p72 = por %p70, %p71
      %p73 = scmp.ne.s32.totalorder %s59, %s60
      %p74 = scmp.eq.s32.totalorder %s38, 1
      %p75 = por %p73, %p74
      %p77 = scmp.ne.s32.totalorder %s60, %s76
      %p78 = scmp.eq.s32.totalorder %s38, 0
      %p79 = por %p77, %p78
      %s80 = ssub.s32 %s39, %s51
      %p81 = scmp.eq.s32.totalorder %s80, 0
      %s83 = sadd.s32 %s82, 1
      %s84 = scalar_select %p81, %s82, %s83
      %p87 = pneg %p81
      %p88 = scmp.eq.s32.totalorder %s32, 1
      %p89 = por %p87, %p88
      %p90 = scmp.ne.s32.totalorder %s82, %s85
      %p91 = scmp.eq.s32.totalorder %s32, 0
      %p92 = por %p90, %p91
      %p93 = scmp.ne.s32.totalorder %s82, %s85
      %p94 = scmp.eq.s32.totalorder %s37, 1
      %p95 = por %p93, %p94
      %p96 = scmp.ne.s32.totalorder %s85, %s86
      %p97 = scmp.eq.s32.totalorder %s37, 0
      %p98 = por %p96, %p97
      %p99 = scmp.ne.s32.totalorder %s85, %s86
      %p100 = scmp.eq.s32.totalorder %s38, 1
      %p101 = por %p99, %p100
      %p103 = scmp.ne.s32.totalorder %s86, %s102
      %p104 = scmp.eq.s32.totalorder %s38, 0
      %p105 = por %p103, %p104
      %s107 = sadd.s32 %s106, 1
      %p110 = scmp.eq.s32.totalorder %s32, 1
      %p111 = scmp.ne.s32.totalorder %s106, %s108
      %p112 = scmp.eq.s32.totalorder %s32, 0
      %p113 = por %p111, %p112
      %p114 = scmp.ne.s32.totalorder %s106, %s108
      %p115 = scmp.eq.s32.totalorder %s37, 1
      %p116 = por %p114, %p115
      %p117 = scmp.ne.s32.totalorder %s108, %s109
      %p118 = scmp.eq.s32.totalorder %s37, 0
      %p119 = por %p117, %p118
      %p120 = scmp.ne.s32.totalorder %s108, %s109
      %p121 = scmp.eq.s32.totalorder %s38, 1
      %p122 = por %p120, %p121
      %p124 = scmp.ne.s32.totalorder %s109, %s123
      %p125 = scmp.eq.s32.totalorder %s38, 0
      %p126 = por %p124, %p125
      %s128 = sadd.s32 %s127, 1
      %p131 = scmp.eq.s32.totalorder %s32, 1
      %p132 = scmp.ne.s32.totalorder %s127, %s129
      %p133 = scmp.eq.s32.totalorder %s32, 0
      %p134 = por %p132, %p133
      %p135 = scmp.ne.s32.totalorder %s127, %s129
      %p136 = scmp.eq.s32.totalorder %s37, 1
      %p137 = por %p135, %p136
      %p138 = scmp.ne.s32.totalorder %s129, %s130
      %p139 = scmp.eq.s32.totalorder %s37, 0
      %p140 = por %p138, %p139
      %p141 = scmp.ne.s32.totalorder %s129, %s130
      %p142 = scmp.eq.s32.totalorder %s38, 1
      %p143 = por %p141, %p142
      %p145 = scmp.ne.s32.totalorder %s130, %s144
      %p146 = scmp.eq.s32.totalorder %s38, 0
      %p147 = por %p145, %p146
      %s149 = sadd.s32 %s148, 1
      %p152 = scmp.eq.s32.totalorder %s32, 1
      %p153 = scmp.ne.s32.totalorder %s148, %s150
      %p154 = scmp.eq.s32.totalorder %s32, 0
      %p155 = por %p153, %p154
      %p156 = scmp.ne.s32.totalorder %s148, %s150
      %p157 = scmp.eq.s32.totalorder %s37, 1
      %p158 = por %p156, %p157
      %p159 = scmp.ne.s32.totalorder %s150, %s151
      %p160 = scmp.eq.s32.totalorder %s37, 0
      %p161 = por %p159, %p160
      %p162 = scmp.ne.s32.totalorder %s150, %s151
      %p163 = scmp.eq.s32.totalorder %s38, 1
      %p164 = por %p162, %p163
      %p166 = scmp.ne.s32.totalorder %s151, %s165
      %p167 = scmp.eq.s32.totalorder %s38, 0
      %p168 = por %p166, %p167
      %s170 = sadd.s32 %s169, 1
      %p173 = scmp.eq.s32.totalorder %s32, 1
      %p174 = scmp.ne.s32.totalorder %s169, %s171
      %p175 = scmp.eq.s32.totalorder %s32, 0
      %p176 = por %p174, %p175
      %p177 = scmp.ne.s32.totalorder %s169, %s171
      %p178 = scmp.eq.s32.totalorder %s37, 1
      %p179 = por %p177, %p178
      %p180 = scmp.ne.s32.totalorder %s171, %s172
      %p181 = scmp.eq.s32.totalorder %s37, 0
      %p182 = por %p180, %p181
      %p183 = scmp.ne.s32.totalorder %s171, %s172
      %p184 = scmp.eq.s32.totalorder %s38, 1
      %p185 = por %p183, %p184
      %p187 = scmp.ne.s32.totalorder %s172, %s186
      %p188 = scmp.eq.s32.totalorder %s38, 0
      %p189 = por %p187, %p188
      %s191 = sadd.s32 %s190, 1
      %p194 = scmp.eq.s32.totalorder %s32, 1
      %p195 = scmp.ne.s32.totalorder %s190, %s192
      %p196 = scmp.eq.s32.totalorder %s32, 0
      %p197 = por %p195, %p196
      %p198 = scmp.ne.s32.totalorder %s190, %s192
      %p199 = scmp.eq.s32.totalorder %s37, 1
      %p200 = por %p198, %p199
      %p201 = scmp.ne.s32.totalorder %s192, %s193
      %p202 = scmp.eq.s32.totalorder %s37, 0
      %p203 = por %p201, %p202
      %p204 = scmp.ne.s32.totalorder %s192, %s193
      %p205 = scmp.eq.s32.totalorder %s38, 1
      %p206 = por %p204, %p205
      %p208 = scmp.ne.s32.totalorder %s193, %s207
      %p209 = scmp.eq.s32.totalorder %s38, 0
      %p210 = por %p208, %p209
      %s212 = sadd.s32 %s211, 1
      %p215 = scmp.eq.s32.totalorder %s32, 1
      %p216 = scmp.ne.s32.totalorder %s211, %s213
      %p217 = scmp.eq.s32.totalorder %s32, 0
      %p218 = por %p216, %p217
      %p219 = scmp.ne.s32.totalorder %s211, %s213
      %p220 = scmp.eq.s32.totalorder %s37, 1
      %p221 = por %p219, %p220
      %p222 = scmp.ne.s32.totalorder %s213, %s214
      %p223 = scmp.eq.s32.totalorder %s37, 0
      %p224 = por %p222, %p223
      %p225 = scmp.ne.s32.totalorder %s213, %s214
      %p226 = scmp.eq.s32.totalorder %s38, 1
      %p227 = por %p225, %p226
      %p229 = scmp.ne.s32.totalorder %s214, %s228
      %p230 = scmp.eq.s32.totalorder %s38, 0
      %p231 = por %p229, %p230
      %s233 = sadd.s32 %s232, 1
      %p236 = scmp.eq.s32.totalorder %s32, 1
      %p237 = scmp.ne.s32.totalorder %s232, %s234
      %p238 = scmp.eq.s32.totalorder %s32, 0
      %p239 = por %p237, %p238
      %p240 = scmp.ne.s32.totalorder %s232, %s234
      %p241 = scmp.eq.s32.totalorder %s37, 1
      %p242 = por %p240, %p241
      %p243 = scmp.ne.s32.totalorder %s234, %s235
      %p244 = scmp.eq.s32.totalorder %s37, 0
      %p245 = por %p243, %p244
      %p246 = scmp.ne.s32.totalorder %s234, %s235
      %p247 = scmp.eq.s32.totalorder %s38, 1
      %p248 = por %p246, %p247
      %p250 = scmp.ne.s32.totalorder %s235, %s249
      %p251 = scmp.eq.s32.totalorder %s38, 0
      %p252 = por %p250, %p251
      %s254 = sadd.s32 %s253, 1
      %p257 = scmp.eq.s32.totalorder %s32, 1
      %p258 = scmp.ne.s32.totalorder %s253, %s255
      %p259 = scmp.eq.s32.totalorder %s32, 0
      %p260 = por %p258, %p259
      %p261 = scmp.ne.s32.totalorder %s253, %s255
      %p262 = scmp.eq.s32.totalorder %s37, 1
      %p263 = por %p261, %p262
      %p264 = scmp.ne.s32.totalorder %s255, %s256
      %p265 = scmp.eq.s32.totalorder %s37, 0
      %p266 = por %p264, %p265
      %p267 = scmp.ne.s32.totalorder %s255, %s256
      %p268 = scmp.eq.s32.totalorder %s38, 1
      %p269 = por %p267, %p268
      %p271 = scmp.ne.s32.totalorder %s256, %s270
      %p272 = scmp.eq.s32.totalorder %s38, 0
      %p273 = por %p271, %p272
      %s275 = sadd.s32 %s274, 1
      %p278 = scmp.eq.s32.totalorder %s32, 1
      %p279 = scmp.ne.s32.totalorder %s274, %s276
      %p280 = scmp.eq.s32.totalorder %s32, 0
      %p281 = por %p279, %p280
      %p282 = scmp.ne.s32.totalorder %s274, %s276
      %p283 = scmp.eq.s32.totalorder %s37, 1
      %p284 = por %p282, %p283
      %p285 = scmp.ne.s32.totalorder %s276, %s277
      %p286 = scmp.eq.s32.totalorder %s37, 0
      %p287 = por %p285, %p286
      %p288 = scmp.ne.s32.totalorder %s276, %s277
      %p289 = scmp.eq.s32.totalorder %s38, 1
      %p290 = por %p288, %p289
      %p292 = scmp.ne.s32.totalorder %s277, %s291
      %p293 = scmp.eq.s32.totalorder %s38, 0
      %p294 = por %p292, %p293
      %s296 = sadd.s32 %s295, 1
      %p299 = scmp.eq.s32.totalorder %s32, 1
      %p300 = scmp.ne.s32.totalorder %s295, %s297
      %p301 = scmp.eq.s32.totalorder %s32, 0
      %p302 = por %p300, %p301
      %p303 = scmp.ne.s32.totalorder %s295, %s297
      %p304 = scmp.eq.s32.totalorder %s37, 1
      %p305 = por %p303, %p304
      %p306 = scmp.ne.s32.totalorder %s297, %s298
      %p307 = scmp.eq.s32.totalorder %s37, 0
      %p308 = por %p306, %p307
      %p309 = scmp.ne.s32.totalorder %s297, %s298
      %p310 = scmp.eq.s32.totalorder %s38, 1
      %p311 = por %p309, %p310
      %p313 = scmp.ne.s32.totalorder %s298, %s312
      %p314 = scmp.eq.s32.totalorder %s38, 0
      %p315 = por %p313, %p314
      %s317 = sadd.s32 %s316, 1
      %p320 = scmp.eq.s32.totalorder %s32, 1
      %p321 = scmp.ne.s32.totalorder %s316, %s318
      %p322 = scmp.eq.s32.totalorder %s32, 0
      %p323 = por %p321, %p322
      %p324 = scmp.ne.s32.totalorder %s316, %s318
      %p325 = scmp.eq.s32.totalorder %s37, 1
      %p326 = por %p324, %p325
      %p327 = scmp.ne.s32.totalorder %s318, %s319
      %p328 = scmp.eq.s32.totalorder %s37, 0
      %p329 = por %p327, %p328
      %p330 = scmp.ne.s32.totalorder %s318, %s319
      %p331 = scmp.eq.s32.totalorder %s38, 1
      %p332 = por %p330, %p331
      %p334 = scmp.ne.s32.totalorder %s319, %s333
      %p335 = scmp.eq.s32.totalorder %s38, 0
      %p336 = por %p334, %p335
      %s338 = sadd.s32 %s337, 1
      %p341 = scmp.eq.s32.totalorder %s32, 1
      %p342 = scmp.ne.s32.totalorder %s337, %s339
      %p343 = scmp.eq.s32.totalorder %s32, 0
      %p344 = por %p342, %p343
      %p345 = scmp.ne.s32.totalorder %s337, %s339
      %p346 = scmp.eq.s32.totalorder %s37, 1
      %p347 = por %p345, %p346
      %p348 = scmp.ne.s32.totalorder %s339, %s340
      %p349 = scmp.eq.s32.totalorder %s37, 0
      %p350 = por %p348, %p349
      %p351 = scmp.ne.s32.totalorder %s339, %s340
      %p352 = scmp.eq.s32.totalorder %s38, 1
      %p353 = por %p351, %p352
      %p355 = scmp.ne.s32.totalorder %s340, %s354
      %p356 = scmp.eq.s32.totalorder %s38, 0
      %p357 = por %p355, %p356
      %s359 = sadd.s32 %s358, 1
      %p362 = scmp.eq.s32.totalorder %s32, 1
      %p363 = scmp.ne.s32.totalorder %s358, %s360
      %p364 = scmp.eq.s32.totalorder %s32, 0
      %p365 = por %p363, %p364
      %p366 = scmp.ne.s32.totalorder %s358, %s360
      %p367 = scmp.eq.s32.totalorder %s37, 1
      %p368 = por %p366, %p367
      %p369 = scmp.ne.s32.totalorder %s360, %s361
      %p370 = scmp.eq.s32.totalorder %s37, 0
      %p371 = por %p369, %p370
      %p372 = scmp.ne.s32.totalorder %s360, %s361
      %p373 = scmp.eq.s32.totalorder %s38, 1
      %p374 = por %p372, %p373
      %p376 = scmp.ne.s32.totalorder %s361, %s375
      %p377 = scmp.eq.s32.totalorder %s38, 0
      %p378 = por %p376, %p377
      %s380 = sadd.s32 %s379, 1
      %p383 = scmp.eq.s32.totalorder %s32, 1
      %p384 = scmp.ne.s32.totalorder %s379, %s381
      %p385 = scmp.eq.s32.totalorder %s32, 0
      %p386 = por %p384, %p385
      %p387 = scmp.ne.s32.totalorder %s379, %s381
      %p388 = scmp.eq.s32.totalorder %s37, 1
      %p389 = por %p387, %p388
      %p390 = scmp.ne.s32.totalorder %s381, %s382
      %p391 = scmp.eq.s32.totalorder %s37, 0
      %p392 = por %p390, %p391
      %p393 = scmp.ne.s32.totalorder %s381, %s382
      %p394 = scmp.eq.s32.totalorder %s38, 1
      %p395 = por %p393, %p394
      %p397 = scmp.ne.s32.totalorder %s382, %s396
      %p398 = scmp.eq.s32.totalorder %s38, 0
      %p399 = por %p397, %p398
      %s401 = sadd.s32 %s400, 1
      %p404 = scmp.eq.s32.totalorder %s32, 1
      %p405 = scmp.ne.s32.totalorder %s400, %s402
      %p406 = scmp.eq.s32.totalorder %s32, 0
      %p407 = por %p405, %p406
      %p408 = scmp.ne.s32.totalorder %s400, %s402
      %p409 = scmp.eq.s32.totalorder %s37, 1
      %p410 = por %p408, %p409
      %p411 = scmp.ne.s32.totalorder %s402, %s403
      %p412 = scmp.eq.s32.totalorder %s37, 0
      %p413 = por %p411, %p412
      %p414 = scmp.ne.s32.totalorder %s402, %s403
      %p415 = scmp.eq.s32.totalorder %s38, 1
      %p416 = por %p414, %p415
      %p418 = scmp.ne.s32.totalorder %s403, %s417
      %p419 = scmp.eq.s32.totalorder %s38, 0
      %p420 = por %p418, %p419
      %s422 = sadd.s32 %s421, 1
      %p425 = scmp.eq.s32.totalorder %s32, 1
      %p426 = scmp.ne.s32.totalorder %s421, %s423
      %p427 = scmp.eq.s32.totalorder %s32, 0
      %p428 = por %p426, %p427
      %p429 = scmp.ne.s32.totalorder %s421, %s423
      %p430 = scmp.eq.s32.totalorder %s37, 1
      %p431 = por %p429, %p430
      %p432 = scmp.ne.s32.totalorder %s423, %s424
      %p433 = scmp.eq.s32.totalorder %s37, 0
      %p434 = por %p432, %p433
      %p435 = scmp.ne.s32.totalorder %s423, %s424
      %p436 = scmp.eq.s32.totalorder %s38, 1
      %p437 = por %p435, %p436
      %p439 = scmp.ne.s32.totalorder %s424, %s438
      %p440 = scmp.eq.s32.totalorder %s38, 0
      %p441 = por %p439, %p440
      %s442 = ssub.s32 %s39, %s51
      %s443 = ssub.s32 %s40, %s47
      %s444 = sor.u32 %s442, %s443
      %p445 = scmp.eq.s32.totalorder %s444, 0
      %s447 = sadd.s32 %s446, 1
      %s448 = scalar_select %p445, %s446, %s447
      %p451 = pneg %p445
      %p452 = scmp.eq.s32.totalorder %s32, 1
      %p453 = por %p451, %p452
      %p454 = scmp.ne.s32.totalorder %s446, %s449
      %p455 = scmp.eq.s32.totalorder %s32, 0
      %p456 = por %p454, %p455
      %p457 = scmp.ne.s32.totalorder %s446, %s449
      %p458 = scmp.eq.s32.totalorder %s37, 1
      %p459 = por %p457, %p458
      %p460 = scmp.ne.s32.totalorder %s449, %s450
      %p461 = scmp.eq.s32.totalorder %s37, 0
      %p462 = por %p460, %p461
      %p463 = scmp.ne.s32.totalorder %s449, %s450
      %p464 = scmp.eq.s32.totalorder %s38, 1
      %p465 = por %p463, %p464
      %p467 = scmp.ne.s32.totalorder %s450, %s466
      %p468 = scmp.eq.s32.totalorder %s38, 0
      %p469 = por %p467, %p468
      %p470 = scmp.le.s32.totalorder 1, %s32
      %p471 = scmp.lt.s32.totalorder %s32, 3
      %p472 = pnand %p470, %p471
      %p473 = pneg %p472
      // Predicated region
      $region9: #{tpu_custom_call.1} parent=5 // pred_check
        _
      $region10: #{tpu_custom_call.1} parent=5 // pred_check_branch
        %475 = sbr.rel (%p472) target = $region12
      $region11: #{tpu_custom_call.1} parent=5 // pred_region
        %s476 = ssub.s32 %s32, 1
        // Predicated region
        $region13: #{tpu_custom_call.1} parent=11 // pred_check
          %p477 = pneg %p119
        $region14: #{tpu_custom_call.1} parent=11 // pred_check_branch
          %479 = sbr.rel (%p477) target = $region16
        $region15: #{tpu_custom_call.1} parent=11 // pred_region
          _
        $region16: #{tpu_custom_call.1} parent=11 // pred_fallthru
          _
        // Predicated region
        $region17: #{tpu_custom_call.1} parent=11 // pred_check
          %p480 = pneg %p140
        $region18: #{tpu_custom_call.1} parent=11 // pred_check_branch
          %482 = sbr.rel (%p480) target = $region20
        $region19: #{tpu_custom_call.1} parent=11 // pred_region
          _
        $region20: #{tpu_custom_call.1} parent=11 // pred_fallthru
          _
        // Predicated region
        $region21: #{tpu_custom_call.1} parent=11 // pred_check
          %p483 = pneg %p161
        $region22: #{tpu_custom_call.1} parent=11 // pred_check_branch
          %485 = sbr.rel (%p483) target = $region24
        $region23: #{tpu_custom_call.1} parent=11 // pred_region
          %487 = vsyncadd [#allocation9], 0
          %s488 = sshll.u32 %s4, 4
          %s489 = int_to_ptr.hbm [resolvable:$true] %s488
          %s490 = sshll.u32 [#allocation8], 4
          %s491 = int_to_ptr.vmem [resolvable:$true] %s490
          %496 = dma.hbm_to_vmem [thread:$0]  %s489, 256, %s491, [#allocation9], 64, 64, 4
        $region24: #{tpu_custom_call.1} parent=11 // pred_fallthru
          _
        // Predicated region
        $region25: #{tpu_custom_call.1} parent=11 // pred_check
          %p497 = pneg %p182
        $region26: #{tpu_custom_call.1} parent=11 // pred_check_branch
          %499 = sbr.rel (%p497) target = $region28
        $region27: #{tpu_custom_call.1} parent=11 // pred_region
          _
        $region28: #{tpu_custom_call.1} parent=11 // pred_fallthru
          _
        // Predicated region
        $region29: #{tpu_custom_call.1} parent=11 // pred_check
          %p500 = pneg %p203
        $region30: #{tpu_custom_call.1} parent=11 // pred_check_branch
          %502 = sbr.rel (%p500) target = $region32
        $region31: #{tpu_custom_call.1} parent=11 // pred_region
          _
        $region32: #{tpu_custom_call.1} parent=11 // pred_fallthru
          _
        // Predicated region
        $region33: #{tpu_custom_call.1} parent=11 // pred_check
          %p503 = pneg %p224
        $region34: #{tpu_custom_call.1} parent=11 // pred_check_branch
          %505 = sbr.rel (%p503) target = $region36
        $region35: #{tpu_custom_call.1} parent=11 // pred_region
          _
        $region36: #{tpu_custom_call.1} parent=11 // pred_fallthru
          _
        // Predicated region
        $region37: #{tpu_custom_call.1} parent=11 // pred_check
          %p506 = pneg %p245
        $region38: #{tpu_custom_call.1} parent=11 // pred_check_branch
          %508 = sbr.rel (%p506) target = $region40
        $region39: #{tpu_custom_call.1} parent=11 // pred_region
          %510 = vsyncadd [#allocation9], 0
          %s511 = sshll.u32 %s8, 4
          %s512 = int_to_ptr.hbm [resolvable:$true] %s511
          %s513 = sshll.u32 [#allocation10], 4
          %s514 = int_to_ptr.vmem [resolvable:$true] %s513
          %519 = dma.hbm_to_vmem [thread:$0]  %s512, 256, %s514, [#allocation9], 64, 64, 4
        $region40: #{tpu_custom_call.1} parent=11 // pred_fallthru
          _
        // Predicated region
        $region41: #{tpu_custom_call.1} parent=11 // pred_check
          %p520 = pneg %p266
        $region42: #{tpu_custom_call.1} parent=11 // pred_check_branch
          %522 = sbr.rel (%p520) target = $region44
        $region43: #{tpu_custom_call.1} parent=11 // pred_region
          _
        $region44: #{tpu_custom_call.1} parent=11 // pred_fallthru
          _
        // Predicated region
        $region45: #{tpu_custom_call.1} parent=11 // pred_check
          %p523 = pneg %p287
        $region46: #{tpu_custom_call.1} parent=11 // pred_check_branch
          %525 = sbr.rel (%p523) target = $region48
        $region47: #{tpu_custom_call.1} parent=11 // pred_region
          _
        $region48: #{tpu_custom_call.1} parent=11 // pred_fallthru
          _
        // Predicated region
        $region49: #{tpu_custom_call.1} parent=11 // pred_check
          %p526 = pneg %p308
        $region50: #{tpu_custom_call.1} parent=11 // pred_check_branch
          %528 = sbr.rel (%p526) target = $region52
        $region51: #{tpu_custom_call.1} parent=11 // pred_region
          _
        $region52: #{tpu_custom_call.1} parent=11 // pred_fallthru
          _
        // Predicated region
        $region53: #{tpu_custom_call.1} parent=11 // pred_check
          %p529 = pneg %p329
        $region54: #{tpu_custom_call.1} parent=11 // pred_check_branch
          %531 = sbr.rel (%p529) target = $region56
        $region55: #{tpu_custom_call.1} parent=11 // pred_region
          %533 = vsyncadd [#allocation12], 0
          %s534 = sshll.u32 %s12, 4
          %s535 = int_to_ptr.hbm [resolvable:$true] %s534
          %s536 = sshll.u32 [#allocation11], 4
          %s537 = int_to_ptr.vmem [resolvable:$true] %s536
          %542 = dma.hbm_to_vmem [thread:$0]  %s535, 256, %s537, [#allocation12], 64, 64, 4
        $region56: #{tpu_custom_call.1} parent=11 // pred_fallthru
          _
        // Predicated region
        $region57: #{tpu_custom_call.1} parent=11 // pred_check
          %p543 = pneg %p350
        $region58: #{tpu_custom_call.1} parent=11 // pred_check_branch
          %545 = sbr.rel (%p543) target = $region60
        $region59: #{tpu_custom_call.1} parent=11 // pred_region
          _
        $region60: #{tpu_custom_call.1} parent=11 // pred_fallthru
          _
        // Predicated region
        $region61: #{tpu_custom_call.1} parent=11 // pred_check
          %p546 = pneg %p371
        $region62: #{tpu_custom_call.1} parent=11 // pred_check_branch
          %548 = sbr.rel (%p546) target = $region64
        $region63: #{tpu_custom_call.1} parent=11 // pred_region
          _
        $region64: #{tpu_custom_call.1} parent=11 // pred_fallthru
          _
        // Predicated region
        $region65: #{tpu_custom_call.1} parent=11 // pred_check
          %p549 = pneg %p392
        $region66: #{tpu_custom_call.1} parent=11 // pred_check_branch
          %551 = sbr.rel (%p549) target = $region68
        $region67: #{tpu_custom_call.1} parent=11 // pred_region
          _
        $region68: #{tpu_custom_call.1} parent=11 // pred_fallthru
          _
        // Predicated region
        $region69: #{tpu_custom_call.1} parent=11 // pred_check
          %p552 = pneg %p413
        $region70: #{tpu_custom_call.1} parent=11 // pred_check_branch
          %554 = sbr.rel (%p552) target = $region72
        $region71: #{tpu_custom_call.1} parent=11 // pred_region
          _
        $region72: #{tpu_custom_call.1} parent=11 // pred_fallthru
          _
        // Predicated region
        $region73: #{tpu_custom_call.1} parent=11 // pred_check
          %p555 = pneg %p434
        $region74: #{tpu_custom_call.1} parent=11 // pred_check_branch
          %557 = sbr.rel (%p555) target = $region76
        $region75: #{tpu_custom_call.1} parent=11 // pred_region
          _
        $region76: #{tpu_custom_call.1} parent=11 // pred_fallthru
          _
      $region12: #{tpu_custom_call.1} parent=5 // pred_fallthru
        _
      %p558 = scmp.lt.s32.totalorder %s32, 2
      // Predicated region
      $region77: #{tpu_custom_call.1} parent=5 // pred_check
        %p559 = pneg %p558
      $region78: #{tpu_custom_call.1} parent=5 // pred_check_branch
        %561 = sbr.rel (%p559) target = $region80
      $region79: #{tpu_custom_call.1} parent=5 // pred_region
        // Predicated region
        $region81: #{tpu_custom_call.1} parent=79 // pred_check
          %p562 = pneg %p66
        $region82: #{tpu_custom_call.1} parent=79 // pred_check_branch
          %564 = sbr.rel (%p562) target = $region84
        $region83: #{tpu_custom_call.1} parent=79 // pred_region
          %p565 = scmp.lt.s32.totalorder %s39, 1
          %s566 = scalar_select %p565, %s39, 1
          %p567 = scmp.lt.s32.totalorder %s40, 0
          %s568 = scalar_select %p567, %s40, 0
          %s569 = sadd.s32 %s568, %s566
          %s570 = smul.addr %s569, 8
          %s571 = scalar_lea.vmem %s0, %s570
        $region84: #{tpu_custom_call.1} parent=79 // pred_fallthru
          _
        // Predicated region
        $region85: #{tpu_custom_call.1} parent=79 // pred_check
          %p572 = pneg %p92
        $region86: #{tpu_custom_call.1} parent=79 // pred_check_branch
          %574 = sbr.rel (%p572) target = $region88
        $region87: #{tpu_custom_call.1} parent=79 // pred_region
          %s575 = sand.u32 %s82, 1
          %s576 = scalar_lea.sflag [#allocation6], %s575
          %s577 = sand.u32 %s82, 1
          %s578 = smul.addr %s577, 4
          %s579 = scalar_lea.vmem [#allocation5], %s578
          %581 = vsyncadd %s576, 0
          %s582 = smul.addr %s39, 4
          %s583 = scalar_lea.hbm %s1, %s582
          %s585 = sshll.u32 %s583, 4
          %s586 = int_to_ptr.hbm [resolvable:$true] %s585
          %s587 = sshll.u32 %s579, 4
          %s588 = int_to_ptr.vmem [resolvable:$true] %s587
          %590 = dma.hbm_to_vmem [thread:$0]  %s586, 64, %s588, %s576
        $region88: #{tpu_custom_call.1} parent=79 // pred_fallthru
          _
      $region80: #{tpu_custom_call.1} parent=5 // pred_fallthru
        _
      %p591 = scmp.le.s32.totalorder 1, %s32
      %p592 = scmp.lt.s32.totalorder %s32, 3
      %p593 = pnand %p591, %p592
      %p594 = pneg %p593
      // Predicated region
      $region89: #{tpu_custom_call.1} parent=5 // pred_check
        _
      $region90: #{tpu_custom_call.1} parent=5 // pred_check_branch
        %596 = sbr.rel (%p593) target = $region92
      $region91: #{tpu_custom_call.1} parent=5 // pred_region
        %s597 = ssub.s32 %s32, 1
        %s598 = sand.u32 %s85, 1
        %s599 = scalar_lea.sflag [#allocation6], %s598
        %s600 = sand.u32 %s85, 1
        %s601 = smul.addr %s600, 4
        %s602 = scalar_lea.vmem [#allocation5], %s601
        // Predicated region
        $region93: #{tpu_custom_call.1} parent=91 // pred_check
          %p603 = pneg %p98
        $region94: #{tpu_custom_call.1} parent=91 // pred_check_branch
          %605 = sbr.rel (%p603) target = $region96
        $region95: #{tpu_custom_call.1} parent=91 // pred_region
          %607 = dma.done %s599, 64
        $region96: #{tpu_custom_call.1} parent=91 // pred_fallthru
          _
        // Predicated region
        $region97: #{tpu_custom_call.1} parent=91 // pred_check
          %p608 = pneg %p161
        $region98: #{tpu_custom_call.1} parent=91 // pred_check_branch
          %610 = sbr.rel (%p608) target = $region100
        $region99: #{tpu_custom_call.1} parent=91 // pred_region
          %612 = dma.done [#allocation9], 256
        $region100: #{tpu_custom_call.1} parent=91 // pred_fallthru
          _
        // Predicated region
        $region101: #{tpu_custom_call.1} parent=91 // pred_check
          %p613 = pneg %p245
        $region102: #{tpu_custom_call.1} parent=91 // pred_check_branch
          %615 = sbr.rel (%p613) target = $region104
        $region103: #{tpu_custom_call.1} parent=91 // pred_region
          %617 = dma.done [#allocation9], 256
        $region104: #{tpu_custom_call.1} parent=91 // pred_fallthru
          _
        // Predicated region
        $region105: #{tpu_custom_call.1} parent=91 // pred_check
          %p618 = pneg %p329
        $region106: #{tpu_custom_call.1} parent=91 // pred_check_branch
          %620 = sbr.rel (%p618) target = $region108
        $region107: #{tpu_custom_call.1} parent=91 // pred_region
          %622 = dma.done [#allocation12], 256
        $region108: #{tpu_custom_call.1} parent=91 // pred_fallthru
          _
        %p623 = scmp.lt.s32.totalorder %s41, 1
        %s624 = scalar_select %p623, %s41, 1
        %p625 = scmp.lt.s32.totalorder %s42, 0
        %s626 = scalar_select %p625, %s42, 0
        %s627 = sadd.s32 %s626, %s624
        %s628 = smul.addr %s627, 8
        %s629 = scalar_lea.vmem %s0, %s628
        %p630 = pneg %p72
        %p631 = pneg %p69
        %s632 = sand.u32 %s85, 1
        %s633 = scalar_lea.sflag [#allocation6], %s632
        %s634 = sand.u32 %s85, 1
        %s635 = smul.addr %s634, 4
        %s636 = scalar_lea.vmem [#allocation5], %s635
        %p637 = pneg %p98
        %p638 = pneg %p95
        %p639 = pneg %p119
        %p640 = pneg %p116
        %p641 = pneg %p140
        %p642 = pneg %p137
        %p643 = pneg %p161
        %p644 = pneg %p158
        %p645 = pneg %p182
        %p646 = pneg %p179
        %p647 = pneg %p203
        %p648 = pneg %p200
        %p649 = pneg %p224
        %p650 = pneg %p221
        %p651 = pneg %p245
        %p652 = pneg %p242
        %p653 = pneg %p266
        %p654 = pneg %p263
        %p655 = pneg %p287
        %p656 = pneg %p284
        %p657 = pneg %p308
        %p658 = pneg %p305
        %p659 = pneg %p329
        %p660 = pneg %p326
        %p661 = pneg %p350
        %p662 = pneg %p347
        %p663 = pneg %p371
        %p664 = pneg %p368
        %p665 = pneg %p392
        %p666 = pneg %p389
        %p667 = pneg %p413
        %p668 = pneg %p410
        %p669 = pneg %p434
        %p670 = pneg %p431
        %p671 = pneg %p462
        %p672 = pneg %p459
        %s673 = sand.u32 %s449, 1
        %s674 = scalar_lea.sflag [#allocation7], %s673
        %s675 = sand.u32 %s449, 1
        %s676 = smul.addr %s675, 8
        %s677 = scalar_lea.vmem [#allocation13], %s676
        %p678 = scmp.lt.s32.totalorder %s41, 1
        %s679 = scalar_select %p678, %s41, 1
        %p680 = scmp.lt.s32.totalorder %s42, 0
        %s681 = scalar_select %p680, %s42, 0
        %s682 = sadd.s32 %s681, %s679
        %s683 = smul.addr %s682, 8
        %s684 = scalar_lea.vmem %s0, %s683
        %p686 = scmp.eq.s32.totalorder %s42, 0
        // Predicated region
        $region109: #{tpu_custom_call.1} parent=91 // pred_check
          %p687 = pneg %p686
        $region110: #{tpu_custom_call.1} parent=91 // pred_check_branch
          %689 = sbr.rel (%p687) target = $region112
        $region111: #{tpu_custom_call.1} parent=91 // pred_region
          %v690 = vld [vmem:[%s602] sm:$0xf]
          %v691 = vld [vmem:[%s3] sm:$0xf]
          %v692 = vld [vmem:[%s3 + $0x4] sm:$0xf]
          %v693 = vld [vmem:[%s3 + $0x8] sm:$0xf]
          %v694 = vld [vmem:[%s3 + $0xc] sm:$0xf]
          %v695 = vld [vmem:[%s6] sm:$0x1]
          %v697 = vperm.slane %v695, 0
          %v703 = vunpack.c.l.b16 %v691
          %v704 = vunpack.c.l.b16 %v692
          %v705 = vunpack.c.l.b16 %v693
          %v706 = vunpack.c.l.b16 %v694
          %v707 = vpack.c.b16 %v704, %v703
          %v708 = vpack.c.b16 %v706, %v705
          %vm711 = vcmask 261120
          %v713 = vsel %vm711, %v690, 0
          %715 = vmatpush.bf16.msra.mxu0 0
          %716 = vmatpush.bf16.msra.mxu0 0
          %717 = vmatpush.bf16.msra.mxu0 0
          %718 = vmatpush.bf16.msra.mxu0 0
          %719 = vmatpush.bf16.msra.mxu0 0
          %720 = vmatpush.bf16.msra.mxu0 0
          %721 = vmatpush.bf16.msra.mxu0 %v708
          %722 = vmatpush.bf16.msra.mxu0 %v707
          %723 = vmatmul.bf16.gmra.mxu0 %v713
          %v724 = vpop.f32.mrf.mxu0
          %v725 = vadd.f32 %v697, %v724
          %v726 = vpop.f32.mrf.mxu0
          %727 = vdwg.mxu0
          %v728 = vld [vmem:[#allocation8] sm:$0xf]
          %v729 = vld [vmem:[#allocation8 + $0x4] sm:$0xf]
          %v730 = vld [vmem:[#allocation8 + $0x8] sm:$0xf]
          %v731 = vld [vmem:[#allocation8 + $0xc] sm:$0xf]
          %v732 = vld [vmem:[%s7] sm:$0x1]
          %v734 = vperm.slane %v732, 0
          %v740 = vunpack.c.l.b16 %v728
          %v741 = vunpack.c.l.b16 %v729
          %v742 = vunpack.c.l.b16 %v730
          %v743 = vunpack.c.l.b16 %v731
          %v744 = vpack.c.b16 %v741, %v740
          %v745 = vpack.c.b16 %v743, %v742
          %748 = vmatpush.bf16.msra.mxu0 0
          %749 = vmatpush.bf16.msra.mxu0 0
          %750 = vmatpush.bf16.msra.mxu0 0
          %751 = vmatpush.bf16.msra.mxu0 0
          %752 = vmatpush.bf16.msra.mxu0 0
          %753 = vmatpush.bf16.msra.mxu0 0
          %754 = vmatpush.bf16.msra.mxu0 %v745
          %755 = vmatpush.bf16.msra.mxu0 %v744
          %756 = vmatmul.bf16.gmra.mxu0 %v713
          %v757 = vpop.f32.mrf.mxu0
          %v758 = vadd.f32 %v734, %v757
          %v759 = vpop.f32.mrf.mxu0
          %760 = vdwg.mxu0
          %v761 = vpack.c.bf16 %v725, %v725
          %vm762 = vcmask 257024
          %763 = vst.msk [vmem:[#allocation2] sm:$0xf] %vm762, %v761
          %v764 = vpack.c.bf16 %v758, %v758
          %765 = vst.msk [vmem:[#allocation3] sm:$0xf] %vm762, %v764
        $region112: #{tpu_custom_call.1} parent=91 // pred_fallthru
          _
        %v766 = vld [vmem:[%s684] sm:$0xff]
        %v767 = vpack.c.bf16 %v766, %v766
        %v768 = vld [vmem:[%s2] sm:$0xf]
        %v769 = vld [vmem:[%s2 + $0x4] sm:$0xf]
        %v770 = vld [vmem:[%s2 + $0x8] sm:$0xf]
        %v771 = vld [vmem:[%s2 + $0xc] sm:$0xf]
        %v772 = vld [vmem:[%s5] sm:$0x1]
        %v774 = vperm.slane %v772, 0
        %v780 = vunpack.c.l.b16 %v768
        %v781 = vunpack.c.l.b16 %v769
        %v782 = vunpack.c.l.b16 %v770
        %v783 = vunpack.c.l.b16 %v771
        %v784 = vpack.c.b16 %v781, %v780
        %v785 = vpack.c.b16 %v783, %v782
        %vm788 = vcmask 261120
        %v790 = vsel %vm788, %v767, 0
        %792 = vmatpush.bf16.msra.mxu0 0
        %793 = vmatpush.bf16.msra.mxu0 0
        %794 = vmatpush.bf16.msra.mxu0 0
        %795 = vmatpush.bf16.msra.mxu0 0
        %796 = vmatpush.bf16.msra.mxu0 0
        %797 = vmatpush.bf16.msra.mxu0 0
        %798 = vmatpush.bf16.msra.mxu0 %v785
        %799 = vmatpush.bf16.msra.mxu0 %v784
        %800 = vmatmul.bf16.gmra.mxu0 %v790
        %v801 = vpop.f32.mrf.mxu0
        %v802 = vadd.f32 %v774, %v801
        %v803 = vpop.f32.mrf.mxu0
        %804 = vdwg.mxu0
        %v805 = vpack.c.bf16 %v802, %v802
        %v806 = vld [vmem:[#allocation2] sm:$0xf]
        %v807 = vld [vmem:[#allocation3] sm:$0xf]
        %vm808 = vcmask 64512
        %v810 = vsel %vm808, %v805, 0
        %v813 = vsel %vm808, %v806, 0
        %815 = vmatpush.bf16.xpose.msra.mxu0 0
        %816 = vmatpush.bf16.xpose.msra.mxu0 0
        %817 = vmatpush.bf16.xpose.msra.mxu0 0
        %818 = vmatpush.bf16.xpose.msra.mxu0 0
        %819 = vmatpush.bf16.xpose.msra.mxu0 0
        %820 = vmatpush.bf16.xpose.msra.mxu0 0
        %821 = vmatpush.bf16.xpose.msra.mxu0 0
        %822 = vmatpush.bf16.xpose.msra.mxu0 %v813
        %823 = vmatmul.bf16.gmra.mxu0 %v810
        %v824 = vpop.f32.mrf.mxu0
        %v825 = vadd.f32 0.0, %v824
        %v826 = vpop.f32.mrf.mxu0
        %827 = vdwg.mxu0
        %v828 = vsel %vm808, %v825, -inf
        %829 = vmax.xlane.f32.xlu0 %v828
        %v830 = vpop.xlane.xlu0 %829
        %v831 = vsub.f32 %v825, %v830
        %v832 = vmul.f32 %v831, 1.442695
        %v833 = vpow.pop %v832
        %v834 = vsel %vm808, %v833, 0.0
        %835 = vadd.xlane.f32.xlu0 %v834
        %v836 = vpop.xlane.xlu0 %835
        %v837 = vrcp.pop %v836
        %v838 = vmul.f32 %v833, %v837
        %v839 = vpack.c.bf16 %v838, %v838
        %v841 = vsel %vm808, %v839, 0
        %vm843 = vcmask 1043456
        %v845 = vsel %vm843, %v807, 0
        %847 = vmatpush.bf16.msra.mxu0 0
        %848 = vmatpush.bf16.msra.mxu0 0
        %849 = vmatpush.bf16.msra.mxu0 0
        %850 = vmatpush.bf16.msra.mxu0 0
        %851 = vmatpush.bf16.msra.mxu0 0
        %852 = vmatpush.bf16.msra.mxu0 0
        %853 = vmatpush.bf16.msra.mxu0 0
        %854 = vmatpush.bf16.msra.mxu0 %v845
        %855 = vmatmul.bf16.gmra.mxu0 %v841
        %v856 = vpop.f32.mrf.mxu0
        %v857 = vadd.f32 0.0, %v856
        %v858 = vpop.f32.mrf.mxu0
        %859 = vdwg.mxu0
        %860 = vst.msk [vmem:[#allocation4] sm:$0xff] %vm808, %v857
        %v862 = vunpack.c.l.b16 %v805
        %v863 = vpack.c.b16 %v862, %v862
        %864 = vrot.lane.b32.xlu0 %v863, 120
        %v865 = vpop.permute.xlu0 %864
        %v867 = vunpack.c.l.b16 %v806
        %v868 = vpack.c.b16 %v867, %v867
        %869 = vrot.lane.b32.xlu0 %v868, 120
        %v870 = vpop.permute.xlu0 %869
        %v872 = vsel %vm808, %v865, 0
        %v875 = vsel %vm808, %v870, 0
        %877 = vmatpush.bf16.xpose.msra.mxu0 0
        %878 = vmatpush.bf16.xpose.msra.mxu0 0
        %879 = vmatpush.bf16.xpose.msra.mxu0 0
        %880 = vmatpush.bf16.xpose.msra.mxu0 0
        %881 = vmatpush.bf16.xpose.msra.mxu0 0
        %882 = vmatpush.bf16.xpose.msra.mxu0 0
        %883 = vmatpush.bf16.xpose.msra.mxu0 0
        %884 = vmatpush.bf16.xpose.msra.mxu0 %v875
        %885 = vmatmul.bf16.gmra.mxu0 %v872
        %v886 = vpop.f32.mrf.mxu0
        %v887 = vadd.f32 0.0, %v886
        %v888 = vpop.f32.mrf.mxu0
        %889 = vdwg.mxu0
        %v890 = vsel %vm808, %v887, -inf
        %891 = vmax.xlane.f32.xlu0 %v890
        %v892 = vpop.xlane.xlu0 %891
        %v893 = vsub.f32 %v887, %v892
        %v894 = vmul.f32 %v893, 1.442695
        %v895 = vpow.pop %v894
        %v896 = vsel %vm808, %v895, 0.0
        %897 = vadd.xlane.f32.xlu0 %v896
        %v898 = vpop.xlane.xlu0 %897
        %v899 = vrcp.pop %v898
        %v900 = vmul.f32 %v895, %v899
        %v901 = vpack.c.bf16 %v900, %v900
        %v903 = vunpack.c.l.b16 %v807
        %v904 = vpack.c.b16 %v903, %v903
        %905 = vrot.lane.b32.xlu0 %v904, 120
        %v906 = vpop.permute.xlu0 %905
        %v908 = vsel %vm808, %v901, 0
        %v911 = vsel %vm843, %v906, 0
        %913 = vmatpush.bf16.msra.mxu0 0
        %914 = vmatpush.bf16.msra.mxu0 0
        %915 = vmatpush.bf16.msra.mxu0 0
        %916 = vmatpush.bf16.msra.mxu0 0
        %917 = vmatpush.bf16.msra.mxu0 0
        %918 = vmatpush.bf16.msra.mxu0 0
        %919 = vmatpush.bf16.msra.mxu0 0
        %920 = vmatpush.bf16.msra.mxu0 %v911
        %921 = vmatmul.bf16.gmra.mxu0 %v908
        %v922 = vpop.f32.mrf.mxu0
        %v923 = vadd.f32 0.0, %v922
        %v924 = vpop.f32.mrf.mxu0
        %925 = vdwg.mxu0
        %927 = vrot.lane.b32.xlu0 %v923, 8
        %v928 = vpop.permute.xlu0 %927
        %vm930 = vcmask 130112
        %931 = vst.msk [vmem:[#allocation4] sm:$0xff] %vm930, %v928
        %932 = vrot.lane.b32.xlu0 %v863, 112
        %v933 = vpop.permute.xlu0 %932
        %934 = vrot.lane.b32.xlu0 %v868, 112
        %v935 = vpop.permute.xlu0 %934
        %v937 = vsel %vm808, %v933, 0
        %v940 = vsel %vm808, %v935, 0
        %942 = vmatpush.bf16.xpose.msra.mxu0 0
        %943 = vmatpush.bf16.xpose.msra.mxu0 0
        %944 = vmatpush.bf16.xpose.msra.mxu0 0
        %945 = vmatpush.bf16.xpose.msra.mxu0 0
        %946 = vmatpush.bf16.xpose.msra.mxu0 0
        %947 = vmatpush.bf16.xpose.msra.mxu0 0
        %948 = vmatpush.bf16.xpose.msra.mxu0 0
        %949 = vmatpush.bf16.xpose.msra.mxu0 %v940
        %950 = vmatmul.bf16.gmra.mxu0 %v937
        %v951 = vpop.f32.mrf.mxu0
        %v952 = vadd.f32 0.0, %v951
        %v953 = vpop.f32.mrf.mxu0
        %954 = vdwg.mxu0
        %v955 = vsel %vm808, %v952, -inf
        %956 = vmax.xlane.f32.xlu0 %v955
        %v957 = vpop.xlane.xlu0 %956
        %v958 = vsub.f32 %v952, %v957
        %v959 = vmul.f32 %v958, 1.442695
        %v960 = vpow.pop %v959
        %v961 = vsel %vm808, %v960, 0.0
        %962 = vadd.xlane.f32.xlu0 %v961
        %v963 = vpop.xlane.xlu0 %962
        %v964 = vrcp.pop %v963
        %v965 = vmul.f32 %v960, %v964
        %v966 = vpack.c.bf16 %v965, %v965
        %967 = vrot.lane.b32.xlu0 %v904, 112
        %v968 = vpop.permute.xlu0 %967
        %v970 = vsel %vm808, %v966, 0
        %v973 = vsel %vm843, %v968, 0
        %975 = vmatpush.bf16.msra.mxu0 0
        %976 = vmatpush.bf16.msra.mxu0 0
        %977 = vmatpush.bf16.msra.mxu0 0
        %978 = vmatpush.bf16.msra.mxu0 0
        %979 = vmatpush.bf16.msra.mxu0 0
        %980 = vmatpush.bf16.msra.mxu0 0
        %981 = vmatpush.bf16.msra.mxu0 0
        %982 = vmatpush.bf16.msra.mxu0 %v973
        %983 = vmatmul.bf16.gmra.mxu0 %v970
        %v984 = vpop.f32.mrf.mxu0
        %v985 = vadd.f32 0.0, %v984
        %v986 = vpop.f32.mrf.mxu0
        %987 = vdwg.mxu0
        %989 = vrot.lane.b32.xlu0 %v985, 16
        %v990 = vpop.permute.xlu0 %989
        %vm992 = vcmask 195712
        %993 = vst.msk [vmem:[#allocation4] sm:$0xff] %vm992, %v990
        %994 = vrot.lane.b32.xlu0 %v863, 104
        %v995 = vpop.permute.xlu0 %994
        %996 = vrot.lane.b32.xlu0 %v868, 104
        %v997 = vpop.permute.xlu0 %996
        %v999 = vsel %vm808, %v995, 0
        %v1002 = vsel %vm808, %v997, 0
        %1004 = vmatpush.bf16.xpose.msra.mxu0 0
        %1005 = vmatpush.bf16.xpose.msra.mxu0 0
        %1006 = vmatpush.bf16.xpose.msra.mxu0 0
        %1007 = vmatpush.bf16.xpose.msra.mxu0 0
        %1008 = vmatpush.bf16.xpose.msra.mxu0 0
        %1009 = vmatpush.bf16.xpose.msra.mxu0 0
        %1010 = vmatpush.bf16.xpose.msra.mxu0 0
        %1011 = vmatpush.bf16.xpose.msra.mxu0 %v1002
        %1012 = vmatmul.bf16.gmra.mxu0 %v999
        %v1013 = vpop.f32.mrf.mxu0
        %v1014 = vadd.f32 0.0, %v1013
        %v1015 = vpop.f32.mrf.mxu0
        %1016 = vdwg.mxu0
        %v1017 = vsel %vm808, %v1014, -inf
        %1018 = vmax.xlane.f32.xlu0 %v1017
        %v1019 = vpop.xlane.xlu0 %1018
        %v1020 = vsub.f32 %v1014, %v1019
        %v1021 = vmul.f32 %v1020, 1.442695
        %v1022 = vpow.pop %v1021
        %v1023 = vsel %vm808, %v1022, 0.0
        %1024 = vadd.xlane.f32.xlu0 %v1023
        %v1025 = vpop.xlane.xlu0 %1024
        %v1026 = vrcp.pop %v1025
        %v1027 = vmul.f32 %v1022, %v1026
        %v1028 = vpack.c.bf16 %v1027, %v1027
        %1029 = vrot.lane.b32.xlu0 %v904, 104
        %v1030 = vpop.permute.xlu0 %1029
        %v1032 = vsel %vm808, %v1028, 0
        %v1035 = vsel %vm843, %v1030, 0
        %1037 = vmatpush.bf16.msra.mxu0 0
        %1038 = vmatpush.bf16.msra.mxu0 0
        %1039 = vmatpush.bf16.msra.mxu0 0
        %1040 = vmatpush.bf16.msra.mxu0 0
        %1041 = vmatpush.bf16.msra.mxu0 0
        %1042 = vmatpush.bf16.msra.mxu0 0
        %1043 = vmatpush.bf16.msra.mxu0 0
        %1044 = vmatpush.bf16.msra.mxu0 %v1035
        %1045 = vmatmul.bf16.gmra.mxu0 %v1032
        %v1046 = vpop.f32.mrf.mxu0
        %v1047 = vadd.f32 0.0, %v1046
        %v1048 = vpop.f32.mrf.mxu0
        %1049 = vdwg.mxu0
        %1051 = vrot.lane.b32.xlu0 %v1047, 24
        %v1052 = vpop.permute.xlu0 %1051
        %vm1054 = vcmask 261312
        %1055 = vst.msk [vmem:[#allocation4] sm:$0xff] %vm1054, %v1052
        %v1056 = vld [vmem:[#allocation4] sm:$0xff]
        %v1057 = vpack.c.bf16 %v1056, %v1056
        %v1058 = vld [vmem:[#allocation10] sm:$0xf]
        %v1059 = vld [vmem:[#allocation10 + $0x4] sm:$0xf]
        %v1060 = vld [vmem:[#allocation10 + $0x8] sm:$0xf]
        %v1061 = vld [vmem:[#allocation10 + $0xc] sm:$0xf]
        %v1062 = vld [vmem:[%s9] sm:$0x1]
        %v1064 = vperm.slane %v1062, 0
        %v1070 = vunpack.c.l.b16 %v1058
        %v1071 = vunpack.c.l.b16 %v1059
        %v1072 = vunpack.c.l.b16 %v1060
        %v1073 = vunpack.c.l.b16 %v1061
        %v1074 = vpack.c.b16 %v1071, %v1070
        %v1075 = vpack.c.b16 %v1073, %v1072
        %v1079 = vsel %vm788, %v1057, 0
        %1081 = vmatpush.bf16.msra.mxu0 0
        %1082 = vmatpush.bf16.msra.mxu0 0
        %1083 = vmatpush.bf16.msra.mxu0 0
        %1084 = vmatpush.bf16.msra.mxu0 0
        %1085 = vmatpush.bf16.msra.mxu0 0
        %1086 = vmatpush.bf16.msra.mxu0 0
        %1087 = vmatpush.bf16.msra.mxu0 %v1075
        %1088 = vmatpush.bf16.msra.mxu0 %v1074
        %1089 = vmatmul.bf16.gmra.mxu0 %v1079
        %v1090 = vpop.f32.mrf.mxu0
        %v1091 = vadd.f32 %v1064, %v1090
        %v1092 = vpop.f32.mrf.mxu0
        %1093 = vdwg.mxu0
        %v1094 = vadd.f32 %v766, %v1091
        %v1095 = vsel %vm788, %v1094, 0.0
        %1096 = vadd.xlane.f32.xlu0 %v1095
        %v1097 = vpop.xlane.xlu0 %1096
        %v1098 = vrcp.pop 32.0
        %v1099 = vmul.f32 32.0, %v1098
        %v1100 = vsub.f32 1.0, %v1099
        %v1101 = vmul.f32 %v1098, %v1100
        %v1102 = vadd.f32 %v1098, %v1101
        %vm1103 = vweird.f32 %v1098
        %v1104 = vsel %vm1103, %v1098, %v1102
        %v1105 = vmul.f32 %v1097, %v1104
        %v1106 = vsub.f32 %v1094, %v1105
        %v1107 = vmul.f32 %v1106, %v1106
        %v1108 = vsel %vm788, %v1107, 0.0
        %1109 = vadd.xlane.f32.xlu0 %v1108
        %v1110 = vpop.xlane.xlu0 %1109
        %v1111 = vmul.f32 %v1110, %v1104
        %v1112 = vadd.f32 %v1111, 1e-05
        %v1113 = vrsqrt.pop %v1112
        %v1114 = vmul.f32 %v1113, %v1112
        %v1115 = vmul.f32 %v1114, %v1113
        %v1116 = vmul.f32 0.5, %v1115
        %v1117 = vsub.f32 1.5, %v1116
        %v1118 = vmul.f32 %v1113, %v1117
        %vm1119 = vweird.f32 %v1112
        %vm1120 = vweird.f32 %v1113
        %vm1121 = vmor %vm1119, %vm1120
        %v1122 = vsel %vm1121, %v1113, %v1118
        %v1123 = vmul.f32 %v1106, %v1122
        %v1124 = vld [vmem:[%s10] sm:$0x1]
        %v1126 = vperm.slane %v1124, 0
        %v1128 = vmul.f32 %v1123, %v1126
        %v1129 = vld [vmem:[%s11] sm:$0x1]
        %v1131 = vperm.slane %v1129, 0
        %v1133 = vadd.f32 %v1128, %v1131
        %v1134 = vpack.c.bf16 %v1133, %v1133
        %v1135 = vld [vmem:[#allocation11] sm:$0xf]
        %v1136 = vld [vmem:[#allocation11 + $0x4] sm:$0xf]
        %v1137 = vld [vmem:[#allocation11 + $0x8] sm:$0xf]
        %v1138 = vld [vmem:[#allocation11 + $0xc] sm:$0xf]
        %v1139 = vld [vmem:[%s13] sm:$0x1]
        %v1141 = vperm.slane %v1139, 0
        %v1147 = vunpack.c.l.b16 %v1135
        %v1148 = vunpack.c.l.b16 %v1136
        %v1149 = vunpack.c.l.b16 %v1137
        %v1150 = vunpack.c.l.b16 %v1138
        %v1151 = vpack.c.b16 %v1148, %v1147
        %v1152 = vpack.c.b16 %v1150, %v1149
        %v1156 = vsel %vm788, %v1134, 0
        %1158 = vmatpush.bf16.msra.mxu0 0
        %1159 = vmatpush.bf16.msra.mxu0 0
        %1160 = vmatpush.bf16.msra.mxu0 0
        %1161 = vmatpush.bf16.msra.mxu0 0
        %1162 = vmatpush.bf16.msra.mxu0 0
        %1163 = vmatpush.bf16.msra.mxu0 0
        %1164 = vmatpush.bf16.msra.mxu0 %v1152
        %1165 = vmatpush.bf16.msra.mxu0 %v1151
        %1166 = vmatmul.bf16.gmra.mxu0 %v1156
        %v1167 = vpop.f32.mrf.mxu0
        %v1168 = vadd.f32 %v1141, %v1167
        %v1169 = vpop.f32.mrf.mxu0
        %1170 = vdwg.mxu0
        %v1171 = vmax.f32 %v1168, 0.0
        %v1172 = vpack.c.bf16 %v1171, %v1171
        %v1173 = vld [vmem:[%s14] sm:$0xf]
        %v1174 = vld [vmem:[%s14 + $0x4] sm:$0xf]
        %v1175 = vld [vmem:[%s14 + $0x8] sm:$0xf]
        %v1176 = vld [vmem:[%s14 + $0xc] sm:$0xf]
        %v1177 = vld [vmem:[%s14 + $0x10] sm:$0xf]
        %v1178 = vld [vmem:[%s14 + $0x14] sm:$0xf]
        %v1179 = vld [vmem:[%s14 + $0x18] sm:$0xf]
        %v1180 = vld [vmem:[%s14 + $0x1c] sm:$0xf]
        %v1181 = vld [vmem:[%s15] sm:$0x1]
        %v1183 = vperm.slane %v1181, 0
        %v1193 = vunpack.c.l.b16 %v1173
        %v1194 = vunpack.c.l.b16 %v1174
        %v1195 = vunpack.c.l.b16 %v1175
        %v1196 = vunpack.c.l.b16 %v1176
        %v1197 = vunpack.c.l.b16 %v1177
        %v1198 = vunpack.c.l.b16 %v1178
        %v1199 = vunpack.c.l.b16 %v1179
        %v1200 = vunpack.c.l.b16 %v1180
        %v1201 = vpack.c.b16 %v1194, %v1193
        %v1202 = vpack.c.b16 %v1196, %v1195
        %v1203 = vpack.c.b16 %v1198, %v1197
        %v1204 = vpack.c.b16 %v1200, %v1199
        %vm1209 = vcmask 523264
        %v1211 = vsel %vm1209, %v1172, 0
        %1213 = vmatpush.bf16.msra.mxu0 0
        %1214 = vmatpush.bf16.msra.mxu0 0
        %1215 = vmatpush.bf16.msra.mxu0 0
        %1216 = vmatpush.bf16.msra.mxu0 0
        %1217 = vmatpush.bf16.msra.mxu0 %v1204
        %1218 = vmatpush.bf16.msra.mxu0 %v1203
        %1219 = vmatpush.bf16.msra.mxu0 %v1202
        %1220 = vmatpush.bf16.msra.mxu0 %v1201
        %1221 = vmatmul.bf16.gmra.mxu0 %v1211
        %v1222 = vpop.f32.mrf.mxu0
        %v1223 = vadd.f32 %v1183, %v1222
        %v1224 = vpop.f32.mrf.mxu0
        %1225 = vdwg.mxu0
        %v1226 = vadd.f32 %v1133, %v1223
        %v1227 = vsel %vm788, %v1226, 0.0
        %1228 = vadd.xlane.f32.xlu0 %v1227
        %v1229 = vpop.xlane.xlu0 %1228
        %v1230 = vmul.f32 %v1229, %v1104
        %v1231 = vsub.f32 %v1226, %v1230
        %v1232 = vmul.f32 %v1231, %v1231
        %v1233 = vsel %vm788, %v1232, 0.0
        %1234 = vadd.xlane.f32.xlu0 %v1233
        %v1235 = vpop.xlane.xlu0 %1234
        %v1236 = vmul.f32 %v1235, %v1104
        %v1237 = vadd.f32 %v1236, 1e-05
        %v1238 = vrsqrt.pop %v1237
        %v1239 = vmul.f32 %v1238, %v1237
        %v1240 = vmul.f32 %v1239, %v1238
        %v1241 = vmul.f32 0.5, %v1240
        %v1242 = vsub.f32 1.5, %v1241
        %v1243 = vmul.f32 %v1238, %v1242
        %vm1244 = vweird.f32 %v1237
        %vm1245 = vweird.f32 %v1238
        %vm1246 = vmor %vm1244, %vm1245
        %v1247 = vsel %vm1246, %v1238, %v1243
        %v1248 = vmul.f32 %v1231, %v1247
        %v1249 = vld [vmem:[%s16] sm:$0x1]
        %v1251 = vperm.slane %v1249, 0
        %v1253 = vmul.f32 %v1248, %v1251
        %v1254 = vld [vmem:[%s17] sm:$0x1]
        %v1256 = vperm.slane %v1254, 0
        %v1258 = vadd.f32 %v1253, %v1256
        %1259 = vst.msk [vmem:[%s677] sm:$0xff] %vm788, %v1258
        %s1260 = sand.u32 %s449, 1
        %s1261 = scalar_lea.sflag [#allocation7], %s1260
        %s1262 = sand.u32 %s449, 1
        %s1263 = smul.addr %s1262, 8
        %s1264 = scalar_lea.vmem [#allocation13], %s1263
        // Predicated region
        $region113: #{tpu_custom_call.1} parent=91 // pred_check
          %p1265 = pneg %p459
        $region114: #{tpu_custom_call.1} parent=91 // pred_check_branch
          %1267 = sbr.rel (%p1265) target = $region116
        $region115: #{tpu_custom_call.1} parent=91 // pred_region
          %1269 = vsyncadd %s1261, 0
          %s1270 = sadd.s32 %s42, %s41
          %s1271 = smul.addr %s1270, 8
          %s1272 = scalar_lea.hbm %s18, %s1271
          %s1274 = sshll.u32 %s1264, 4
          %s1275 = int_to_ptr.vmem [resolvable:$true] %s1274
          %s1276 = sshll.u32 %s1272, 4
          %s1277 = int_to_ptr.hbm [resolvable:$true] %s1276
          %1279 = dma.vmem_to_hbm [thread:$0]  %s1275, 128, %s1277, %s1261
        $region116: #{tpu_custom_call.1} parent=91 // pred_fallthru
          _
      $region92: #{tpu_custom_call.1} parent=5 // pred_fallthru
        _
      %p1280 = scmp.le.s32.totalorder 2, %s32
      // Predicated region
      $region117: #{tpu_custom_call.1} parent=5 // pred_check
        %p1281 = pneg %p1280
      $region118: #{tpu_custom_call.1} parent=5 // pred_check_branch
        %1283 = sbr.rel (%p1281) target = $region120
      $region119: #{tpu_custom_call.1} parent=5 // pred_region
        %s1284 = ssub.s32 %s32, 2
        // Predicated region
        $region121: #{tpu_custom_call.1} parent=119 // pred_check
          %p1285 = pneg %p465
        $region122: #{tpu_custom_call.1} parent=119 // pred_check_branch
          %1287 = sbr.rel (%p1285) target = $region124
        $region123: #{tpu_custom_call.1} parent=119 // pred_region
          %s1288 = sand.u32 %s450, 1
          %s1289 = scalar_lea.sflag [#allocation7], %s1288
          %s1290 = sand.u32 %s450, 1
          %s1291 = smul.addr %s1290, 8
          %s1292 = scalar_lea.vmem [#allocation13], %s1291
          %1294 = dma.done %s1289, 128
        $region124: #{tpu_custom_call.1} parent=119 // pred_fallthru
          _
      $region120: #{tpu_custom_call.1} parent=5 // pred_fallthru
        _
    $region6: #{tpu_custom_call.1} parent=1 // loop_footer
      %s36 = sadd.s32 1, %s32
    $region7: #{tpu_custom_call.1} parent=1 // loop_footer_branch
      %31 = sbr.rel target = $region3
    $region8: #{tpu_custom_call.1} parent=1 // loop_exit
      _
    %1295 = vsyncpa [#allocation6], 1
    %s1296 = scalar_lea.sflag [#allocation6], 1
    %1297 = vsyncpa %s1296, 1
    %1298 = vsyncpa [#allocation9], 1
    %1299 = vsyncpa [#allocation12], 1
    %1300 = vsyncpa [#allocation7], 1
    %s1301 = scalar_lea.sflag [#allocation7], 1
    %1302 = vsyncpa %s1301, 1

// kernel: tpu_custom_call.1
$region0: #{tpu_custom_call.1}
  #allocation0 [shape = 'u32[]', space=smem, size = 0x4, offset = 0x4, fixed_abs, tag = 'smem constant byte address 0x4 - core index']
  #allocation1 [shape = 'u32[72,128]{1,0:T(1,128)}', space=vmem, size = 0x9000, scoped, tag = 'internal scratch']
  #allocation2 [shape = 'bf16[8,32]{1,0:T(8,128)(2,1)}', space=vmem, size = 0x800, scoped, tag = 'scratch operand']
  #allocation3 [shape = 'bf16[8,32]{1,0:T(8,128)(2,1)}', space=vmem, size = 0x800, scoped, tag = 'scratch operand']
  #allocation4 [shape = 'f32[8,32]{1,0:T(8,128)}', space=vmem, size = 0x1000, scoped, tag = 'scratch operand']
  %s0 = inlined_call_operand.vmem [shape: f32[2,8,32], index: 0, kind: input, shape index: {}]
  %s1 = inlined_call_operand.hbm [shape: bf16[2,8,32], index: 1, kind: input, shape index: {}]
  %s2 = inlined_call_operand.vmem [shape: bf16[32,32], index: 2, kind: input, shape index: {}]
  %s3 = inlined_call_operand.vmem [shape: bf16[32,32], index: 3, kind: input, shape index: {}]
  %s4 = inlined_call_operand.hbm [shape: bf16[32,32], index: 4, kind: input, shape index: {}]
  %s5 = inlined_call_operand.vmem [shape: f32[1,32], index: 5, kind: input, shape index: {}]
  %s6 = inlined_call_operand.vmem [shape: f32[1,32], index: 6, kind: input, shape index: {}]
  %s7 = inlined_call_operand.vmem [shape: f32[1,32], index: 7, kind: input, shape index: {}]
  %s8 = inlined_call_operand.hbm [shape: bf16[32,32], index: 8, kind: input, shape index: {}]
  %s9 = inlined_call_operand.vmem [shape: f32[1,32], index: 9, kind: input, shape index: {}]
  %s10 = inlined_call_operand.vmem [shape: f32[1,32], index: 10, kind: input, shape index: {}]
  %s11 = inlined_call_operand.vmem [shape: f32[1,32], index: 11, kind: input, shape index: {}]
  %s12 = inlined_call_operand.hbm [shape: bf16[32,64], index: 12, kind: input, shape index: {}]
  %s13 = inlined_call_operand.vmem [shape: f32[1,64], index: 13, kind: input, shape index: {}]
  %s14 = inlined_call_operand.vmem [shape: bf16[64,32], index: 14, kind: input, shape index: {}]
  %s15 = inlined_call_operand.vmem [shape: f32[1,32], index: 15, kind: input, shape index: {}]
  %s16 = inlined_call_operand.vmem [shape: f32[1,32], index: 16, kind: input, shape index: {}]
  %s17 = inlined_call_operand.vmem [shape: f32[1,32], index: 17, kind: input, shape index: {}]
  %s18 = inlined_call_operand.hbm [shape: f32[2,8,32], index: 18, kind: output, shape index: {}]
  %s19 = sld [smem:[#allocation0]]
  $region125: #{tpu_custom_call.1} parent=0
    _
  %s21 = ssub.s32 1, %s19
  %s22 = scalar_select 0, %s21, %s19
  $region1: #{tpu_custom_call.1} parent=0
    #allocation5 [shape = 'u8[4096]{0}', space=vmem, size = 0x1000, scoped, tag = 'input window, operand 1']
    #allocation6 [shape = 's32[2]{0}', space=sflag, size = 0x8, scoped, tag = 'scoped memory for tpu_custom_call.1']
    #allocation7 [shape = 's32[2]{0}', space=sflag, size = 0x8, scoped, tag = 'scoped memory for tpu_custom_call.1']
    #allocation8 [shape = 'u8[8192]{0}', space=vmem, size = 0x2000, scoped, tag = 'input window, operand 4, single buffered']
    #allocation9 [shape = 's32[1]{0}', space=sflag, size = 0x4, scoped, tag = 'scoped memory for tpu_custom_call.1']
    #allocation10 [shape = 'u8[8192]{0}', space=vmem, size = 0x2000, scoped, tag = 'input window, operand 8, single buffered']
    #allocation11 [shape = 'u8[8192]{0}', space=vmem, size = 0x2000, scoped, tag = 'input window, operand 12, single buffered']
    #allocation12 [shape = 's32[1]{0}', space=sflag, size = 0x4, scoped, tag = 'scoped memory for tpu_custom_call.1']
    #allocation13 [shape = 'u8[8192]{0}', space=vmem, size = 0x2000, scoped, tag = 'output window, operand 0']
    %23 = vsyncpa [#allocation6], 0
    %s24 = scalar_lea.sflag [#allocation6], 1
    %25 = vsyncpa %s24, 0
    %26 = vsyncpa [#allocation9], 0
    %27 = vsyncpa [#allocation12], 0
    %28 = vsyncpa [#allocation7], 0
    %s29 = scalar_lea.sflag [#allocation7], 1
    %30 = vsyncpa %s29, 0
    loop: start=0, step=1, limit=4
    $region2: #{tpu_custom_call.1} parent=1 // loop_pre_header
      _
    $region3: #{tpu_custom_call.1} parent=1 // loop_header
      %s32 = sphi 0, %s36
      %p33 = scmp.ge.s32.totalorder %s32, 4
      %s39 = sphi 0, %s51
      %s40 = sphi 0, %s47
      %s41 = sphi 0, %s39
      %s42 = sphi 0, %s40
      %s43 = sphi 0, %s41
      %s44 = sphi 0, %s42
      %s56 = sphi 0, %s58
      %s59 = sphi 0, %s56
      %s60 = sphi 0, %s59
      %s76 = sphi 0, %s60
      %s82 = sphi 0, %s84
      %s85 = sphi 0, %s82
      %s86 = sphi 0, %s85
      %s102 = sphi 0, %s86
      %s106 = sphi 0, %s106
      %s108 = sphi 0, %s106
      %s109 = sphi 0, %s108
      %s123 = sphi 0, %s109
      %s127 = sphi 0, %s127
      %s129 = sphi 0, %s127
      %s130 = sphi 0, %s129
      %s144 = sphi 0, %s130
      %s148 = sphi 0, %s148
      %s150 = sphi 0, %s148
      %s151 = sphi 0, %s150
      %s165 = sphi 0, %s151
      %s169 = sphi 0, %s169
      %s171 = sphi 0, %s169
      %s172 = sphi 0, %s171
      %s186 = sphi 0, %s172
      %s190 = sphi 0, %s190
      %s192 = sphi 0, %s190
      %s193 = sphi 0, %s192
      %s207 = sphi 0, %s193
      %s211 = sphi 0, %s211
      %s213 = sphi 0, %s211
      %s214 = sphi 0, %s213
      %s228 = sphi 0, %s214
      %s232 = sphi 0, %s232
      %s234 = sphi 0, %s232
      %s235 = sphi 0, %s234
      %s249 = sphi 0, %s235
      %s253 = sphi 0, %s253
      %s255 = sphi 0, %s253
      %s256 = sphi 0, %s255
      %s270 = sphi 0, %s256
      %s274 = sphi 0, %s274
      %s276 = sphi 0, %s274
      %s277 = sphi 0, %s276
      %s291 = sphi 0, %s277
      %s295 = sphi 0, %s295
      %s297 = sphi 0, %s295
      %s298 = sphi 0, %s297
      %s312 = sphi 0, %s298
      %s316 = sphi 0, %s316
      %s318 = sphi 0, %s316
      %s319 = sphi 0, %s318
      %s333 = sphi 0, %s319
      %s337 = sphi 0, %s337
      %s339 = sphi 0, %s337
      %s340 = sphi 0, %s339
      %s354 = sphi 0, %s340
      %s358 = sphi 0, %s358
      %s360 = sphi 0, %s358
      %s361 = sphi 0, %s360
      %s375 = sphi 0, %s361
      %s379 = sphi 0, %s379
      %s381 = sphi 0, %s379
      %s382 = sphi 0, %s381
      %s396 = sphi 0, %s382
      %s400 = sphi 0, %s400
      %s402 = sphi 0, %s400
      %s403 = sphi 0, %s402
      %s417 = sphi 0, %s403
      %s421 = sphi 0, %s421
      %s423 = sphi 0, %s421
      %s424 = sphi 0, %s423
      %s438 = sphi 0, %s424
      %s446 = sphi 0, %s448
      %s449 = sphi 0, %s446
      %s450 = sphi 0, %s449
      %s466 = sphi 0, %s450
    $region4: #{tpu_custom_call.1} parent=1 // loop_header_branch
      %35 = sbr.rel (%p33) target = $region8
    $region5: #{tpu_custom_call.1} parent=1 // loop_body
      %s37 = ssub.s32 %s32, 1
      %s38 = ssub.s32 %s32, 2
      %s45 = sadd.s32 1, %s40
      %p46 = scmp.ge.s32.totalorder %s45, 1
      %s47 = scalar_select %p46, 0, %s45
      %s48 = sadd.s32 1, %s39
      %s49 = scalar_select %p46, %s48, %s39
      %p50 = scmp.ge.s32.totalorder %s49, 2
      %s51 = scalar_select %p50, 0, %s49
      %s52 = ssub.s32 %s39, %s51
      %s53 = ssub.s32 %s40, %s47
      %s54 = sor.u32 %s52, %s53
      %p55 = scmp.eq.s32.totalorder %s54, 0
      %s57 = sadd.s32 %s56, 1
      %s58 = scalar_select %p55, %s56, %s57
      %p61 = pneg %p55
      %p62 = scmp.eq.s32.totalorder %s32, 1
      %p63 = por %p61, %p62
      %p64 = scmp.ne.s32.totalorder %s56, %s59
      %p65 = scmp.eq.s32.totalorder %s32, 0
      %p66 = por %p64, %p65
      %p67 = scmp.ne.s32.totalorder %s56, %s59
      %p68 = scmp.eq.s32.totalorder %s37, 1
      %p69 = por %p67, %p68
      %p70 = scmp.ne.s32.totalorder %s59, %s60
      %p71 = scmp.eq.s32.totalorder %s37, 0
      %p72 = por %p70, %p71
      %p73 = scmp.ne.s32.totalorder %s59, %s60
      %p74 = scmp.eq.s32.totalorder %s38, 1
      %p75 = por %p73, %p74
      %p77 = scmp.ne.s32.totalorder %s60, %s76
      %p78 = scmp.eq.s32.totalorder %s38, 0
      %p79 = por %p77, %p78
      %s80 = ssub.s32 %s39, %s51
      %p81 = scmp.eq.s32.totalorder %s80, 0
      %s83 = sadd.s32 %s82, 1
      %s84 = scalar_select %p81, %s82, %s83
      %p87 = pneg %p81
      %p88 = scmp.eq.s32.totalorder %s32, 1
      %p89 = por %p87, %p88
      %p90 = scmp.ne.s32.totalorder %s82, %s85
      %p91 = scmp.eq.s32.totalorder %s32, 0
      %p92 = por %p90, %p91
      %p93 = scmp.ne.s32.totalorder %s82, %s85
      %p94 = scmp.eq.s32.totalorder %s37, 1
      %p95 = por %p93, %p94
      %p96 = scmp.ne.s32.totalorder %s85, %s86
      %p97 = scmp.eq.s32.totalorder %s37, 0
      %p98 = por %p96, %p97
      %p99 = scmp.ne.s32.totalorder %s85, %s86
      %p100 = scmp.eq.s32.totalorder %s38, 1
      %p101 = por %p99, %p100
      %p103 = scmp.ne.s32.totalorder %s86, %s102
      %p104 = scmp.eq.s32.totalorder %s38, 0
      %p105 = por %p103, %p104
      %s107 = sadd.s32 %s106, 1
      %p110 = scmp.eq.s32.totalorder %s32, 1
      %p111 = scmp.ne.s32.totalorder %s106, %s108
      %p112 = scmp.eq.s32.totalorder %s32, 0
      %p113 = por %p111, %p112
      %p114 = scmp.ne.s32.totalorder %s106, %s108
      %p115 = scmp.eq.s32.totalorder %s37, 1
      %p116 = por %p114, %p115
      %p117 = scmp.ne.s32.totalorder %s108, %s109
      %p118 = scmp.eq.s32.totalorder %s37, 0
      %p119 = por %p117, %p118
      %p120 = scmp.ne.s32.totalorder %s108, %s109
      %p121 = scmp.eq.s32.totalorder %s38, 1
      %p122 = por %p120, %p121
      %p124 = scmp.ne.s32.totalorder %s109, %s123
      %p125 = scmp.eq.s32.totalorder %s38, 0
      %p126 = por %p124, %p125
      %s128 = sadd.s32 %s127, 1
      %p131 = scmp.eq.s32.totalorder %s32, 1
      %p132 = scmp.ne.s32.totalorder %s127, %s129
      %p133 = scmp.eq.s32.totalorder %s32, 0
      %p134 = por %p132, %p133
      %p135 = scmp.ne.s32.totalorder %s127, %s129
      %p136 = scmp.eq.s32.totalorder %s37, 1
      %p137 = por %p135, %p136
      %p138 = scmp.ne.s32.totalorder %s129, %s130
      %p139 = scmp.eq.s32.totalorder %s37, 0
      %p140 = por %p138, %p139
      %p141 = scmp.ne.s32.totalorder %s129, %s130
      %p142 = scmp.eq.s32.totalorder %s38, 1
      %p143 = por %p141, %p142
      %p145 = scmp.ne.s32.totalorder %s130, %s144
      %p146 = scmp.eq.s32.totalorder %s38, 0
      %p147 = por %p145, %p146
      %s149 = sadd.s32 %s148, 1
      %p152 = scmp.eq.s32.totalorder %s32, 1
      %p153 = scmp.ne.s32.totalorder %s148, %s150
      %p154 = scmp.eq.s32.totalorder %s32, 0
      %p155 = por %p153, %p154
      %p156 = scmp.ne.s32.totalorder %s148, %s150
      %p157 = scmp.eq.s32.totalorder %s37, 1
      %p158 = por %p156, %p157
      %p159 = scmp.ne.s32.totalorder %s150, %s151
      %p160 = scmp.eq.s32.totalorder %s37, 0
      %p161 = por %p159, %p160
      %p162 = scmp.ne.s32.totalorder %s150, %s151
      %p163 = scmp.eq.s32.totalorder %s38, 1
      %p164 = por %p162, %p163
      %p166 = scmp.ne.s32.totalorder %s151, %s165
      %p167 = scmp.eq.s32.totalorder %s38, 0
      %p168 = por %p166, %p167
      %s170 = sadd.s32 %s169, 1
      %p173 = scmp.eq.s32.totalorder %s32, 1
      %p174 = scmp.ne.s32.totalorder %s169, %s171
      %p175 = scmp.eq.s32.totalorder %s32, 0
      %p176 = por %p174, %p175
      %p177 = scmp.ne.s32.totalorder %s169, %s171
      %p178 = scmp.eq.s32.totalorder %s37, 1
      %p179 = por %p177, %p178
      %p180 = scmp.ne.s32.totalorder %s171, %s172
      %p181 = scmp.eq.s32.totalorder %s37, 0
      %p182 = por %p180, %p181
      %p183 = scmp.ne.s32.totalorder %s171, %s172
      %p184 = scmp.eq.s32.totalorder %s38, 1
      %p185 = por %p183, %p184
      %p187 = scmp.ne.s32.totalorder %s172, %s186
      %p188 = scmp.eq.s32.totalorder %s38, 0
      %p189 = por %p187, %p188
      %s191 = sadd.s32 %s190, 1
      %p194 = scmp.eq.s32.totalorder %s32, 1
      %p195 = scmp.ne.s32.totalorder %s190, %s192
      %p196 = scmp.eq.s32.totalorder %s32, 0
      %p197 = por %p195, %p196
      %p198 = scmp.ne.s32.totalorder %s190, %s192
      %p199 = scmp.eq.s32.totalorder %s37, 1
      %p200 = por %p198, %p199
      %p201 = scmp.ne.s32.totalorder %s192, %s193
      %p202 = scmp.eq.s32.totalorder %s37, 0
      %p203 = por %p201, %p202
      %p204 = scmp.ne.s32.totalorder %s192, %s193
      %p205 = scmp.eq.s32.totalorder %s38, 1
      %p206 = por %p204, %p205
      %p208 = scmp.ne.s32.totalorder %s193, %s207
      %p209 = scmp.eq.s32.totalorder %s38, 0
      %p210 = por %p208, %p209
      %s212 = sadd.s32 %s211, 1
      %p215 = scmp.eq.s32.totalorder %s32, 1
      %p216 = scmp.ne.s32.totalorder %s211, %s213
      %p217 = scmp.eq.s32.totalorder %s32, 0
      %p218 = por %p216, %p217
      %p219 = scmp.ne.s32.totalorder %s211, %s213
      %p220 = scmp.eq.s32.totalorder %s37, 1
      %p221 = por %p219, %p220
      %p222 = scmp.ne.s32.totalorder %s213, %s214
      %p223 = scmp.eq.s32.totalorder %s37, 0
      %p224 = por %p222, %p223
      %p225 = scmp.ne.s32.totalorder %s213, %s214
      %p226 = scmp.eq.s32.totalorder %s38, 1
      %p227 = por %p225, %p226
      %p229 = scmp.ne.s32.totalorder %s214, %s228
      %p230 = scmp.eq.s32.totalorder %s38, 0
      %p231 = por %p229, %p230
      %s233 = sadd.s32 %s232, 1
      %p236 = scmp.eq.s32.totalorder %s32, 1
      %p237 = scmp.ne.s32.totalorder %s232, %s234
      %p238 = scmp.eq.s32.totalorder %s32, 0
      %p239 = por %p237, %p238
      %p240 = scmp.ne.s32.totalorder %s232, %s234
      %p241 = scmp.eq.s32.totalorder %s37, 1
      %p242 = por %p240, %p241
      %p243 = scmp.ne.s32.totalorder %s234, %s235
      %p244 = scmp.eq.s32.totalorder %s37, 0
      %p245 = por %p243, %p244
      %p246 = scmp.ne.s32.totalorder %s234, %s235
      %p247 = scmp.eq.s32.totalorder %s38, 1
      %p248 = por %p246, %p247
      %p250 = scmp.ne.s32.totalorder %s235, %s249
      %p251 = scmp.eq.s32.totalorder %s38, 0
      %p252 = por %p250, %p251
      %s254 = sadd.s32 %s253, 1
      %p257 = scmp.eq.s32.totalorder %s32, 1
      %p258 = scmp.ne.s32.totalorder %s253, %s255
      %p259 = scmp.eq.s32.totalorder %s32, 0
      %p260 = por %p258, %p259
      %p261 = scmp.ne.s32.totalorder %s253, %s255
      %p262 = scmp.eq.s32.totalorder %s37, 1
      %p263 = por %p261, %p262
      %p264 = scmp.ne.s32.totalorder %s255, %s256
      %p265 = scmp.eq.s32.totalorder %s37, 0
      %p266 = por %p264, %p265
      %p267 = scmp.ne.s32.totalorder %s255, %s256
      %p268 = scmp.eq.s32.totalorder %s38, 1
      %p269 = por %p267, %p268
      %p271 = scmp.ne.s32.totalorder %s256, %s270
      %p272 = scmp.eq.s32.totalorder %s38, 0
      %p273 = por %p271, %p272
      %s275 = sadd.s32 %s274, 1
      %p278 = scmp.eq.s32.totalorder %s32, 1
      %p279 = scmp.ne.s32.totalorder %s274, %s276
      %p280 = scmp.eq.s32.totalorder %s32, 0
      %p281 = por %p279, %p280
      %p282 = scmp.ne.s32.totalorder %s274, %s276
      %p283 = scmp.eq.s32.totalorder %s37, 1
      %p284 = por %p282, %p283
      %p285 = scmp.ne.s32.totalorder %s276, %s277
      %p286 = scmp.eq.s32.totalorder %s37, 0
      %p287 = por %p285, %p286
      %p288 = scmp.ne.s32.totalorder %s276, %s277
      %p289 = scmp.eq.s32.totalorder %s38, 1
      %p290 = por %p288, %p289
      %p292 = scmp.ne.s32.totalorder %s277, %s291
      %p293 = scmp.eq.s32.totalorder %s38, 0
      %p294 = por %p292, %p293
      %s296 = sadd.s32 %s295, 1
      %p299 = scmp.eq.s32.totalorder %s32, 1
      %p300 = scmp.ne.s32.totalorder %s295, %s297
      %p301 = scmp.eq.s32.totalorder %s32, 0
      %p302 = por %p300, %p301
      %p303 = scmp.ne.s32.totalorder %s295, %s297
      %p304 = scmp.eq.s32.totalorder %s37, 1
      %p305 = por %p303, %p304
      %p306 = scmp.ne.s32.totalorder %s297, %s298
      %p307 = scmp.eq.s32.totalorder %s37, 0
      %p308 = por %p306, %p307
      %p309 = scmp.ne.s32.totalorder %s297, %s298
      %p310 = scmp.eq.s32.totalorder %s38, 1
      %p311 = por %p309, %p310
      %p313 = scmp.ne.s32.totalorder %s298, %s312
      %p314 = scmp.eq.s32.totalorder %s38, 0
      %p315 = por %p313, %p314
      %s317 = sadd.s32 %s316, 1
      %p320 = scmp.eq.s32.totalorder %s32, 1
      %p321 = scmp.ne.s32.totalorder %s316, %s318
      %p322 = scmp.eq.s32.totalorder %s32, 0
      %p323 = por %p321, %p322
      %p324 = scmp.ne.s32.totalorder %s316, %s318
      %p325 = scmp.eq.s32.totalorder %s37, 1
      %p326 = por %p324, %p325
      %p327 = scmp.ne.s32.totalorder %s318, %s319
      %p328 = scmp.eq.s32.totalorder %s37, 0
      %p329 = por %p327, %p328
      %p330 = scmp.ne.s32.totalorder %s318, %s319
      %p331 = scmp.eq.s32.totalorder %s38, 1
      %p332 = por %p330, %p331
      %p334 = scmp.ne.s32.totalorder %s319, %s333
      %p335 = scmp.eq.s32.totalorder %s38, 0
      %p336 = por %p334, %p335
      %s338 = sadd.s32 %s337, 1
      %p341 = scmp.eq.s32.totalorder %s32, 1
      %p342 = scmp.ne.s32.totalorder %s337, %s339
      %p343 = scmp.eq.s32.totalorder %s32, 0
      %p344 = por %p342, %p343
      %p345 = scmp.ne.s32.totalorder %s337, %s339
      %p346 = scmp.eq.s32.totalorder %s37, 1
      %p347 = por %p345, %p346
      %p348 = scmp.ne.s32.totalorder %s339, %s340
      %p349 = scmp.eq.s32.totalorder %s37, 0
      %p350 = por %p348, %p349
      %p351 = scmp.ne.s32.totalorder %s339, %s340
      %p352 = scmp.eq.s32.totalorder %s38, 1
      %p353 = por %p351, %p352
      %p355 = scmp.ne.s32.totalorder %s340, %s354
      %p356 = scmp.eq.s32.totalorder %s38, 0
      %p357 = por %p355, %p356
      %s359 = sadd.s32 %s358, 1
      %p362 = scmp.eq.s32.totalorder %s32, 1
      %p363 = scmp.ne.s32.totalorder %s358, %s360
      %p364 = scmp.eq.s32.totalorder %s32, 0
      %p365 = por %p363, %p364
      %p366 = scmp.ne.s32.totalorder %s358, %s360
      %p367 = scmp.eq.s32.totalorder %s37, 1
      %p368 = por %p366, %p367
      %p369 = scmp.ne.s32.totalorder %s360, %s361
      %p370 = scmp.eq.s32.totalorder %s37, 0
      %p371 = por %p369, %p370
      %p372 = scmp.ne.s32.totalorder %s360, %s361
      %p373 = scmp.eq.s32.totalorder %s38, 1
      %p374 = por %p372, %p373
      %p376 = scmp.ne.s32.totalorder %s361, %s375
      %p377 = scmp.eq.s32.totalorder %s38, 0
      %p378 = por %p376, %p377
      %s380 = sadd.s32 %s379, 1
      %p383 = scmp.eq.s32.totalorder %s32, 1
      %p384 = scmp.ne.s32.totalorder %s379, %s381
      %p385 = scmp.eq.s32.totalorder %s32, 0
      %p386 = por %p384, %p385
      %p387 = scmp.ne.s32.totalorder %s379, %s381
      %p388 = scmp.eq.s32.totalorder %s37, 1
      %p389 = por %p387, %p388
      %p390 = scmp.ne.s32.totalorder %s381, %s382
      %p391 = scmp.eq.s32.totalorder %s37, 0
      %p392 = por %p390, %p391
      %p393 = scmp.ne.s32.totalorder %s381, %s382
      %p394 = scmp.eq.s32.totalorder %s38, 1
      %p395 = por %p393, %p394
      %p397 = scmp.ne.s32.totalorder %s382, %s396
      %p398 = scmp.eq.s32.totalorder %s38, 0
      %p399 = por %p397, %p398
      %s401 = sadd.s32 %s400, 1
      %p404 = scmp.eq.s32.totalorder %s32, 1
      %p405 = scmp.ne.s32.totalorder %s400, %s402
      %p406 = scmp.eq.s32.totalorder %s32, 0
      %p407 = por %p405, %p406
      %p408 = scmp.ne.s32.totalorder %s400, %s402
      %p409 = scmp.eq.s32.totalorder %s37, 1
      %p410 = por %p408, %p409
      %p411 = scmp.ne.s32.totalorder %s402, %s403
      %p412 = scmp.eq.s32.totalorder %s37, 0
      %p413 = por %p411, %p412
      %p414 = scmp.ne.s32.totalorder %s402, %s403
      %p415 = scmp.eq.s32.totalorder %s38, 1
      %p416 = por %p414, %p415
      %p418 = scmp.ne.s32.totalorder %s403, %s417
      %p419 = scmp.eq.s32.totalorder %s38, 0
      %p420 = por %p418, %p419
      %s422 = sadd.s32 %s421, 1
      %p425 = scmp.eq.s32.totalorder %s32, 1
      %p426 = scmp.ne.s32.totalorder %s421, %s423
      %p427 = scmp.eq.s32.totalorder %s32, 0
      %p428 = por %p426, %p427
      %p429 = scmp.ne.s32.totalorder %s421, %s423
      %p430 = scmp.eq.s32.totalorder %s37, 1
      %p431 = por %p429, %p430
      %p432 = scmp.ne.s32.totalorder %s423, %s424
      %p433 = scmp.eq.s32.totalorder %s37, 0
      %p434 = por %p432, %p433
      %p435 = scmp.ne.s32.totalorder %s423, %s424
      %p436 = scmp.eq.s32.totalorder %s38, 1
      %p437 = por %p435, %p436
      %p439 = scmp.ne.s32.totalorder %s424, %s438
      %p440 = scmp.eq.s32.totalorder %s38, 0
      %p441 = por %p439, %p440
      %s442 = ssub.s32 %s39, %s51
      %s443 = ssub.s32 %s40, %s47
      %s444 = sor.u32 %s442, %s443
      %p445 = scmp.eq.s32.totalorder %s444, 0
      %s447 = sadd.s32 %s446, 1
      %s448 = scalar_select %p445, %s446, %s447
      %p451 = pneg %p445
      %p452 = scmp.eq.s32.totalorder %s32, 1
      %p453 = por %p451, %p452
      %p454 = scmp.ne.s32.totalorder %s446, %s449
      %p455 = scmp.eq.s32.totalorder %s32, 0
      %p456 = por %p454, %p455
      %p457 = scmp.ne.s32.totalorder %s446, %s449
      %p458 = scmp.eq.s32.totalorder %s37, 1
      %p459 = por %p457, %p458
      %p460 = scmp.ne.s32.totalorder %s449, %s450
      %p461 = scmp.eq.s32.totalorder %s37, 0
      %p462 = por %p460, %p461
      %p463 = scmp.ne.s32.totalorder %s449, %s450
      %p464 = scmp.eq.s32.totalorder %s38, 1
      %p465 = por %p463, %p464
      %p467 = scmp.ne.s32.totalorder %s450, %s466
      %p468 = scmp.eq.s32.totalorder %s38, 0
      %p469 = por %p467, %p468
      %p470 = scmp.le.s32.totalorder 1, %s32
      %p471 = scmp.lt.s32.totalorder %s32, 3
      %p472 = pnand %p470, %p471
      %p473 = pneg %p472
      // Predicated region
      $region9: #{tpu_custom_call.1} parent=5 // pred_check
        _
      $region10: #{tpu_custom_call.1} parent=5 // pred_check_branch
        %475 = sbr.rel (%p472) target = $region12
      $region11: #{tpu_custom_call.1} parent=5 // pred_region
        %s476 = ssub.s32 %s32, 1
        // Predicated region
        $region13: #{tpu_custom_call.1} parent=11 // pred_check
          %p477 = pneg %p119
        $region14: #{tpu_custom_call.1} parent=11 // pred_check_branch
          %479 = sbr.rel (%p477) target = $region16
        $region15: #{tpu_custom_call.1} parent=11 // pred_region
          _
        $region16: #{tpu_custom_call.1} parent=11 // pred_fallthru
          _
        // Predicated region
        $region17: #{tpu_custom_call.1} parent=11 // pred_check
          %p480 = pneg %p140
        $region18: #{tpu_custom_call.1} parent=11 // pred_check_branch
          %482 = sbr.rel (%p480) target = $region20
        $region19: #{tpu_custom_call.1} parent=11 // pred_region
          _
        $region20: #{tpu_custom_call.1} parent=11 // pred_fallthru
          _
        // Predicated region
        $region21: #{tpu_custom_call.1} parent=11 // pred_check
          %p483 = pneg %p161
        $region22: #{tpu_custom_call.1} parent=11 // pred_check_branch
          %485 = sbr.rel (%p483) target = $region24
        $region23: #{tpu_custom_call.1} parent=11 // pred_region
          %487 = vsyncadd [#allocation9], 0
          %s488 = sshll.u32 %s4, 4
          %s489 = int_to_ptr.hbm [resolvable:$true] %s488
          %s490 = sshll.u32 [#allocation8], 4
          %s491 = int_to_ptr.vmem [resolvable:$true] %s490
          %496 = dma.hbm_to_vmem [thread:$0]  %s489, 256, %s491, [#allocation9], 64, 64, 4
        $region24: #{tpu_custom_call.1} parent=11 // pred_fallthru
          _
        // Predicated region
        $region25: #{tpu_custom_call.1} parent=11 // pred_check
          %p497 = pneg %p182
        $region26: #{tpu_custom_call.1} parent=11 // pred_check_branch
          %499 = sbr.rel (%p497) target = $region28
        $region27: #{tpu_custom_call.1} parent=11 // pred_region
          _
        $region28: #{tpu_custom_call.1} parent=11 // pred_fallthru
          _
        // Predicated region
        $region29: #{tpu_custom_call.1} parent=11 // pred_check
          %p500 = pneg %p203
        $region30: #{tpu_custom_call.1} parent=11 // pred_check_branch
          %502 = sbr.rel (%p500) target = $region32
        $region31: #{tpu_custom_call.1} parent=11 // pred_region
          _
        $region32: #{tpu_custom_call.1} parent=11 // pred_fallthru
          _
        // Predicated region
        $region33: #{tpu_custom_call.1} parent=11 // pred_check
          %p503 = pneg %p224
        $region34: #{tpu_custom_call.1} parent=11 // pred_check_branch
          %505 = sbr.rel (%p503) target = $region36
        $region35: #{tpu_custom_call.1} parent=11 // pred_region
          _
        $region36: #{tpu_custom_call.1} parent=11 // pred_fallthru
          _
        // Predicated region
        $region37: #{tpu_custom_call.1} parent=11 // pred_check
          %p506 = pneg %p245
        $region38: #{tpu_custom_call.1} parent=11 // pred_check_branch
          %508 = sbr.rel (%p506) target = $region40
        $region39: #{tpu_custom_call.1} parent=11 // pred_region
          %510 = vsyncadd [#allocation9], 0
          %s511 = sshll.u32 %s8, 4
          %s512 = int_to_ptr.hbm [resolvable:$true] %s511
          %s513 = sshll.u32 [#allocation10], 4
          %s514 = int_to_ptr.vmem [resolvable:$true] %s513
          %519 = dma.hbm_to_vmem [thread:$0]  %s512, 256, %s514, [#allocation9], 64, 64, 4
        $region40: #{tpu_custom_call.1} parent=11 // pred_fallthru
          _
        // Predicated region
        $region41: #{tpu_custom_call.1} parent=11 // pred_check
          %p520 = pneg %p266
        $region42: #{tpu_custom_call.1} parent=11 // pred_check_branch
          %522 = sbr.rel (%p520) target = $region44
        $region43: #{tpu_custom_call.1} parent=11 // pred_region
          _
        $region44: #{tpu_custom_call.1} parent=11 // pred_fallthru
          _
        // Predicated region
        $region45: #{tpu_custom_call.1} parent=11 // pred_check
          %p523 = pneg %p287
        $region46: #{tpu_custom_call.1} parent=11 // pred_check_branch
          %525 = sbr.rel (%p523) target = $region48
        $region47: #{tpu_custom_call.1} parent=11 // pred_region
          _
        $region48: #{tpu_custom_call.1} parent=11 // pred_fallthru
          _
        // Predicated region
        $region49: #{tpu_custom_call.1} parent=11 // pred_check
          %p526 = pneg %p308
        $region50: #{tpu_custom_call.1} parent=11 // pred_check_branch
          %528 = sbr.rel (%p526) target = $region52
        $region51: #{tpu_custom_call.1} parent=11 // pred_region
          _
        $region52: #{tpu_custom_call.1} parent=11 // pred_fallthru
          _
        // Predicated region
        $region53: #{tpu_custom_call.1} parent=11 // pred_check
          %p529 = pneg %p329
        $region54: #{tpu_custom_call.1} parent=11 // pred_check_branch
          %531 = sbr.rel (%p529) target = $region56
        $region55: #{tpu_custom_call.1} parent=11 // pred_region
          %533 = vsyncadd [#allocation12], 0
          %s534 = sshll.u32 %s12, 4
          %s535 = int_to_ptr.hbm [resolvable:$true] %s534
          %s536 = sshll.u32 [#allocation11], 4
          %s537 = int_to_ptr.vmem [resolvable:$true] %s536
          %542 = dma.hbm_to_vmem [thread:$0]  %s535, 256, %s537, [#allocation12], 64, 64, 4
        $region56: #{tpu_custom_call.1} parent=11 // pred_fallthru
          _
        // Predicated region
        $region57: #{tpu_custom_call.1} parent=11 // pred_check
          %p543 = pneg %p350
        $region58: #{tpu_custom_call.1} parent=11 // pred_check_branch
          %545 = sbr.rel (%p543) target = $region60
        $region59: #{tpu_custom_call.1} parent=11 // pred_region
          _
        $region60: #{tpu_custom_call.1} parent=11 // pred_fallthru
          _
        // Predicated region
        $region61: #{tpu_custom_call.1} parent=11 // pred_check
          %p546 = pneg %p371
        $region62: #{tpu_custom_call.1} parent=11 // pred_check_branch
          %548 = sbr.rel (%p546) target = $region64
        $region63: #{tpu_custom_call.1} parent=11 // pred_region
          _
        $region64: #{tpu_custom_call.1} parent=11 // pred_fallthru
          _
        // Predicated region
        $region65: #{tpu_custom_call.1} parent=11 // pred_check
          %p549 = pneg %p392
        $region66: #{tpu_custom_call.1} parent=11 // pred_check_branch
          %551 = sbr.rel (%p549) target = $region68
        $region67: #{tpu_custom_call.1} parent=11 // pred_region
          _
        $region68: #{tpu_custom_call.1} parent=11 // pred_fallthru
          _
        // Predicated region
        $region69: #{tpu_custom_call.1} parent=11 // pred_check
          %p552 = pneg %p413
        $region70: #{tpu_custom_call.1} parent=11 // pred_check_branch
          %554 = sbr.rel (%p552) target = $region72
        $region71: #{tpu_custom_call.1} parent=11 // pred_region
          _
        $region72: #{tpu_custom_call.1} parent=11 // pred_fallthru
          _
        // Predicated region
        $region73: #{tpu_custom_call.1} parent=11 // pred_check
          %p555 = pneg %p434
        $region74: #{tpu_custom_call.1} parent=11 // pred_check_branch
          %557 = sbr.rel (%p555) target = $region76
        $region75: #{tpu_custom_call.1} parent=11 // pred_region
          _
        $region76: #{tpu_custom_call.1} parent=11 // pred_fallthru
          _
      $region12: #{tpu_custom_call.1} parent=5 // pred_fallthru
        _
      %p558 = scmp.lt.s32.totalorder %s32, 2
      // Predicated region
      $region77: #{tpu_custom_call.1} parent=5 // pred_check
        %p559 = pneg %p558
      $region78: #{tpu_custom_call.1} parent=5 // pred_check_branch
        %561 = sbr.rel (%p559) target = $region80
      $region79: #{tpu_custom_call.1} parent=5 // pred_region
        // Predicated region
        $region81: #{tpu_custom_call.1} parent=79 // pred_check
          %p562 = pneg %p66
        $region82: #{tpu_custom_call.1} parent=79 // pred_check_branch
          %564 = sbr.rel (%p562) target = $region84
        $region83: #{tpu_custom_call.1} parent=79 // pred_region
          %p565 = scmp.lt.s32.totalorder %s39, 1
          %s566 = scalar_select %p565, %s39, 1
          %p567 = scmp.lt.s32.totalorder %s40, 0
          %s568 = scalar_select %p567, %s40, 0
          %s569 = sadd.s32 %s568, %s566
          %s570 = smul.addr %s569, 8
          %s571 = scalar_lea.vmem %s0, %s570
        $region84: #{tpu_custom_call.1} parent=79 // pred_fallthru
          _
        // Predicated region
        $region85: #{tpu_custom_call.1} parent=79 // pred_check
          %p572 = pneg %p92
        $region86: #{tpu_custom_call.1} parent=79 // pred_check_branch
          %574 = sbr.rel (%p572) target = $region88
        $region87: #{tpu_custom_call.1} parent=79 // pred_region
          %s575 = sand.u32 %s82, 1
          %s576 = scalar_lea.sflag [#allocation6], %s575
          %s577 = sand.u32 %s82, 1
          %s578 = smul.addr %s577, 4
          %s579 = scalar_lea.vmem [#allocation5], %s578
          %581 = vsyncadd %s576, 0
          %s582 = smul.addr %s39, 4
          %s583 = scalar_lea.hbm %s1, %s582
          %s585 = sshll.u32 %s583, 4
          %s586 = int_to_ptr.hbm [resolvable:$true] %s585
          %s587 = sshll.u32 %s579, 4
          %s588 = int_to_ptr.vmem [resolvable:$true] %s587
          %590 = dma.hbm_to_vmem [thread:$0]  %s586, 64, %s588, %s576
        $region88: #{tpu_custom_call.1} parent=79 // pred_fallthru
          _
      $region80: #{tpu_custom_call.1} parent=5 // pred_fallthru
        _
      %p591 = scmp.le.s32.totalorder 1, %s32
      %p592 = scmp.lt.s32.totalorder %s32, 3
      %p593 = pnand %p591, %p592
      %p594 = pneg %p593
      // Predicated region
      $region89: #{tpu_custom_call.1} parent=5 // pred_check
        _
      $region90: #{tpu_custom_call.1} parent=5 // pred_check_branch
        %596 = sbr.rel (%p593) target = $region92
      $region91: #{tpu_custom_call.1} parent=5 // pred_region
        %s597 = ssub.s32 %s32, 1
        %s598 = sand.u32 %s85, 1
        %s599 = scalar_lea.sflag [#allocation6], %s598
        %s600 = sand.u32 %s85, 1
        %s601 = smul.addr %s600, 4
        %s602 = scalar_lea.vmem [#allocation5], %s601
        // Predicated region
        $region93: #{tpu_custom_call.1} parent=91 // pred_check
          %p603 = pneg %p98
        $region94: #{tpu_custom_call.1} parent=91 // pred_check_branch
          %605 = sbr.rel (%p603) target = $region96
        $region95: #{tpu_custom_call.1} parent=91 // pred_region
          %607 = dma.done %s599, 64
        $region96: #{tpu_custom_call.1} parent=91 // pred_fallthru
          _
        // Predicated region
        $region97: #{tpu_custom_call.1} parent=91 // pred_check
          %p608 = pneg %p161
        $region98: #{tpu_custom_call.1} parent=91 // pred_check_branch
          %610 = sbr.rel (%p608) target = $region100
        $region99: #{tpu_custom_call.1} parent=91 // pred_region
          %612 = dma.done [#allocation9], 256
        $region100: #{tpu_custom_call.1} parent=91 // pred_fallthru
          _
        // Predicated region
        $region101: #{tpu_custom_call.1} parent=91 // pred_check
          %p613 = pneg %p245
        $region102: #{tpu_custom_call.1} parent=91 // pred_check_branch
          %615 = sbr.rel (%p613) target = $region104
        $region103: #{tpu_custom_call.1} parent=91 // pred_region
          %617 = dma.done [#allocation9], 256
        $region104: #{tpu_custom_call.1} parent=91 // pred_fallthru
          _
        // Predicated region
        $region105: #{tpu_custom_call.1} parent=91 // pred_check
          %p618 = pneg %p329
        $region106: #{tpu_custom_call.1} parent=91 // pred_check_branch
          %620 = sbr.rel (%p618) target = $region108
        $region107: #{tpu_custom_call.1} parent=91 // pred_region
          %622 = dma.done [#allocation12], 256
        $region108: #{tpu_custom_call.1} parent=91 // pred_fallthru
          _
        %p623 = scmp.lt.s32.totalorder %s41, 1
        %s624 = scalar_select %p623, %s41, 1
        %p625 = scmp.lt.s32.totalorder %s42, 0
        %s626 = scalar_select %p625, %s42, 0
        %s627 = sadd.s32 %s626, %s624
        %s628 = smul.addr %s627, 8
        %s629 = scalar_lea.vmem %s0, %s628
        %p630 = pneg %p72
        %p631 = pneg %p69
        %s632 = sand.u32 %s85, 1
        %s633 = scalar_lea.sflag [#allocation6], %s632
        %s634 = sand.u32 %s85, 1
        %s635 = smul.addr %s634, 4
        %s636 = scalar_lea.vmem [#allocation5], %s635
        %p637 = pneg %p98
        %p638 = pneg %p95
        %p639 = pneg %p119
        %p640 = pneg %p116
        %p641 = pneg %p140
        %p642 = pneg %p137
        %p643 = pneg %p161
        %p644 = pneg %p158
        %p645 = pneg %p182
        %p646 = pneg %p179
        %p647 = pneg %p203
        %p648 = pneg %p200
        %p649 = pneg %p224
        %p650 = pneg %p221
        %p651 = pneg %p245
        %p652 = pneg %p242
        %p653 = pneg %p266
        %p654 = pneg %p263
        %p655 = pneg %p287
        %p656 = pneg %p284
        %p657 = pneg %p308
        %p658 = pneg %p305
        %p659 = pneg %p329
        %p660 = pneg %p326
        %p661 = pneg %p350
        %p662 = pneg %p347
        %p663 = pneg %p371
        %p664 = pneg %p368
        %p665 = pneg %p392
        %p666 = pneg %p389
        %p667 = pneg %p413
        %p668 = pneg %p410
        %p669 = pneg %p434
        %p670 = pneg %p431
        %p671 = pneg %p462
        %p672 = pneg %p459
        %s673 = sand.u32 %s449, 1
        %s674 = scalar_lea.sflag [#allocation7], %s673
        %s675 = sand.u32 %s449, 1
        %s676 = smul.addr %s675, 8
        %s677 = scalar_lea.vmem [#allocation13], %s676
        %p678 = scmp.lt.s32.totalorder %s41, 1
        %s679 = scalar_select %p678, %s41, 1
        %p680 = scmp.lt.s32.totalorder %s42, 0
        %s681 = scalar_select %p680, %s42, 0
        %s682 = sadd.s32 %s681, %s679
        %s683 = smul.addr %s682, 8
        %s684 = scalar_lea.vmem %s0, %s683
        %p686 = scmp.eq.s32.totalorder %s42, 0
        // Predicated region
        $region109: #{tpu_custom_call.1} parent=91 // pred_check
          %p687 = pneg %p686
        $region110: #{tpu_custom_call.1} parent=91 // pred_check_branch
          %689 = sbr.rel (%p687) target = $region112
        $region111: #{tpu_custom_call.1} parent=91 // pred_region
          %v690 = vld [vmem:[%s602] sm:$0xf]
          %v691 = vld [vmem:[%s3] sm:$0xf]
          %v692 = vld [vmem:[%s3 + $0x4] sm:$0xf]
          %v693 = vld [vmem:[%s3 + $0x8] sm:$0xf]
          %v694 = vld [vmem:[%s3 + $0xc] sm:$0xf]
          %v695 = vld [vmem:[%s6] sm:$0x1]
          %v697 = vperm.slane %v695, 0
          %v703 = vunpack.c.l.b16 %v691
          %v704 = vunpack.c.l.b16 %v692
          %v705 = vunpack.c.l.b16 %v693
          %v706 = vunpack.c.l.b16 %v694
          %v707 = vpack.c.b16 %v704, %v703
          %v708 = vpack.c.b16 %v706, %v705
          %vm711 = vcmask 261120
          %v713 = vsel %vm711, %v690, 0
          %715 = vmatpush.bf16.msra.mxu0 0
          %716 = vmatpush.bf16.msra.mxu0 0
          %717 = vmatpush.bf16.msra.mxu0 0
          %718 = vmatpush.bf16.msra.mxu0 0
          %719 = vmatpush.bf16.msra.mxu0 0
          %720 = vmatpush.bf16.msra.mxu0 0
          %721 = vmatpush.bf16.msra.mxu0 %v708
          %722 = vmatpush.bf16.msra.mxu0 %v707
          %723 = vmatmul.bf16.gmra.mxu0 %v713
          %v724 = vpop.f32.mrf.mxu0
          %v725 = vadd.f32 %v697, %v724
          %v726 = vpop.f32.mrf.mxu0
          %727 = vdwg.mxu0
          %v728 = vld [vmem:[#allocation8] sm:$0xf]
          %v729 = vld [vmem:[#allocation8 + $0x4] sm:$0xf]
          %v730 = vld [vmem:[#allocation8 + $0x8] sm:$0xf]
          %v731 = vld [vmem:[#allocation8 + $0xc] sm:$0xf]
          %v732 = vld [vmem:[%s7] sm:$0x1]
          %v734 = vperm.slane %v732, 0
          %v740 = vunpack.c.l.b16 %v728
          %v741 = vunpack.c.l.b16 %v729
          %v742 = vunpack.c.l.b16 %v730
          %v743 = vunpack.c.l.b16 %v731
          %v744 = vpack.c.b16 %v741, %v740
          %v745 = vpack.c.b16 %v743, %v742
          %748 = vmatpush.bf16.msra.mxu0 0
          %749 = vmatpush.bf16.msra.mxu0 0
          %750 = vmatpush.bf16.msra.mxu0 0
          %751 = vmatpush.bf16.msra.mxu0 0
          %752 = vmatpush.bf16.msra.mxu0 0
          %753 = vmatpush.bf16.msra.mxu0 0
          %754 = vmatpush.bf16.msra.mxu0 %v745
          %755 = vmatpush.bf16.msra.mxu0 %v744
          %756 = vmatmul.bf16.gmra.mxu0 %v713
          %v757 = vpop.f32.mrf.mxu0
          %v758 = vadd.f32 %v734, %v757
          %v759 = vpop.f32.mrf.mxu0
          %760 = vdwg.mxu0
          %v761 = vpack.c.bf16 %v725, %v725
          %vm762 = vcmask 257024
          %763 = vst.msk [vmem:[#allocation2] sm:$0xf] %vm762, %v761
          %v764 = vpack.c.bf16 %v758, %v758
          %765 = vst.msk [vmem:[#allocation3] sm:$0xf] %vm762, %v764
        $region112: #{tpu_custom_call.1} parent=91 // pred_fallthru
          _
        %v766 = vld [vmem:[%s684] sm:$0xff]
        %v767 = vpack.c.bf16 %v766, %v766
        %v768 = vld [vmem:[%s2] sm:$0xf]
        %v769 = vld [vmem:[%s2 + $0x4] sm:$0xf]
        %v770 = vld [vmem:[%s2 + $0x8] sm:$0xf]
        %v771 = vld [vmem:[%s2 + $0xc] sm:$0xf]
        %v772 = vld [vmem:[%s5] sm:$0x1]
        %v774 = vperm.slane %v772, 0
        %v780 = vunpack.c.l.b16 %v768
        %v781 = vunpack.c.l.b16 %v769
        %v782 = vunpack.c.l.b16 %v770
        %v783 = vunpack.c.l.b16 %v771
        %v784 = vpack.c.b16 %v781, %v780
        %v785 = vpack.c.b16 %v783, %v782
        %vm788 = vcmask 261120
        %v790 = vsel %vm788, %v767, 0
        %792 = vmatpush.bf16.msra.mxu0 0
        %793 = vmatpush.bf16.msra.mxu0 0
        %794 = vmatpush.bf16.msra.mxu0 0
        %795 = vmatpush.bf16.msra.mxu0 0
        %796 = vmatpush.bf16.msra.mxu0 0
        %797 = vmatpush.bf16.msra.mxu0 0
        %798 = vmatpush.bf16.msra.mxu0 %v785
        %799 = vmatpush.bf16.msra.mxu0 %v784
        %800 = vmatmul.bf16.gmra.mxu0 %v790
        %v801 = vpop.f32.mrf.mxu0
        %v802 = vadd.f32 %v774, %v801
        %v803 = vpop.f32.mrf.mxu0
        %804 = vdwg.mxu0
        %v805 = vpack.c.bf16 %v802, %v802
        %v806 = vld [vmem:[#allocation2] sm:$0xf]
        %v807 = vld [vmem:[#allocation3] sm:$0xf]
        %vm808 = vcmask 64512
        %v810 = vsel %vm808, %v805, 0
        %v813 = vsel %vm808, %v806, 0
        %815 = vmatpush.bf16.xpose.msra.mxu0 0
        %816 = vmatpush.bf16.xpose.msra.mxu0 0
        %817 = vmatpush.bf16.xpose.msra.mxu0 0
        %818 = vmatpush.bf16.xpose.msra.mxu0 0
        %819 = vmatpush.bf16.xpose.msra.mxu0 0
        %820 = vmatpush.bf16.xpose.msra.mxu0 0
        %821 = vmatpush.bf16.xpose.msra.mxu0 0
        %822 = vmatpush.bf16.xpose.msra.mxu0 %v813
        %823 = vmatmul.bf16.gmra.mxu0 %v810
        %v824 = vpop.f32.mrf.mxu0
        %v825 = vadd.f32 0.0, %v824
        %v826 = vpop.f32.mrf.mxu0
        %827 = vdwg.mxu0
        %v828 = vsel %vm808, %v825, -inf
        %829 = vmax.xlane.f32.xlu0 %v828
        %v830 = vpop.xlane.xlu0 %829
        %v831 = vsub.f32 %v825, %v830
        %v832 = vmul.f32 %v831, 1.442695
        %v833 = vpow.pop %v832
        %v834 = vsel %vm808, %v833, 0.0
        %835 = vadd.xlane.f32.xlu0 %v834
        %v836 = vpop.xlane.xlu0 %835
        %v837 = vrcp.pop %v836
        %v838 = vmul.f32 %v833, %v837
        %v839 = vpack.c.bf16 %v838, %v838
        %v841 = vsel %vm808, %v839, 0
        %vm843 = vcmask 1043456
        %v845 = vsel %vm843, %v807, 0
        %847 = vmatpush.bf16.msra.mxu0 0
        %848 = vmatpush.bf16.msra.mxu0 0
        %849 = vmatpush.bf16.msra.mxu0 0
        %850 = vmatpush.bf16.msra.mxu0 0
        %851 = vmatpush.bf16.msra.mxu0 0
        %852 = vmatpush.bf16.msra.mxu0 0
        %853 = vmatpush.bf16.msra.mxu0 0
        %854 = vmatpush.bf16.msra.mxu0 %v845
        %855 = vmatmul.bf16.gmra.mxu0 %v841
        %v856 = vpop.f32.mrf.mxu0
        %v857 = vadd.f32 0.0, %v856
        %v858 = vpop.f32.mrf.mxu0
        %859 = vdwg.mxu0
        %860 = vst.msk [vmem:[#allocation4] sm:$0xff] %vm808, %v857
        %v862 = vunpack.c.l.b16 %v805
        %v863 = vpack.c.b16 %v862, %v862
        %864 = vrot.lane.b32.xlu0 %v863, 120
        %v865 = vpop.permute.xlu0 %864
        %v867 = vunpack.c.l.b16 %v806
        %v868 = vpack.c.b16 %v867, %v867
        %869 = vrot.lane.b32.xlu0 %v868, 120
        %v870 = vpop.permute.xlu0 %869
        %v872 = vsel %vm808, %v865, 0
        %v875 = vsel %vm808, %v870, 0
        %877 = vmatpush.bf16.xpose.msra.mxu0 0
        %878 = vmatpush.bf16.xpose.msra.mxu0 0
        %879 = vmatpush.bf16.xpose.msra.mxu0 0
        %880 = vmatpush.bf16.xpose.msra.mxu0 0
        %881 = vmatpush.bf16.xpose.msra.mxu0 0
        %882 = vmatpush.bf16.xpose.msra.mxu0 0
        %883 = vmatpush.bf16.xpose.msra.mxu0 0
        %884 = vmatpush.bf16.xpose.msra.mxu0 %v875
        %885 = vmatmul.bf16.gmra.mxu0 %v872
        %v886 = vpop.f32.mrf.mxu0
        %v887 = vadd.f32 0.0, %v886
        %v888 = vpop.f32.mrf.mxu0
        %889 = vdwg.mxu0
        %v890 = vsel %vm808, %v887, -inf
        %891 = vmax.xlane.f32.xlu0 %v890
        %v892 = vpop.xlane.xlu0 %891
        %v893 = vsub.f32 %v887, %v892
        %v894 = vmul.f32 %v893, 1.442695
        %v895 = vpow.pop %v894
        %v896 = vsel %vm808, %v895, 0.0
        %897 = vadd.xlane.f32.xlu0 %v896
        %v898 = vpop.xlane.xlu0 %897
        %v899 = vrcp.pop %v898
        %v900 = vmul.f32 %v895, %v899
        %v901 = vpack.c.bf16 %v900, %v900
        %v903 = vunpack.c.l.b16 %v807
        %v904 = vpack.c.b16 %v903, %v903
        %905 = vrot.lane.b32.xlu0 %v904, 120
        %v906 = vpop.permute.xlu0 %905
        %v908 = vsel %vm808, %v901, 0
        %v911 = vsel %vm843, %v906, 0
        %913 = vmatpush.bf16.msra.mxu0 0
        %914 = vmatpush.bf16.msra.mxu0 0
        %915 = vmatpush.bf16.msra.mxu0 0
        %916 = vmatpush.bf16.msra.mxu0 0
        %917 = vmatpush.bf16.msra.mxu0 0
        %918 = vmatpush.bf16.msra.mxu0 0
        %919 = vmatpush.bf16.msra.mxu0 0
        %920 = vmatpush.bf16.msra.mxu0 %v911
        %921 = vmatmul.bf16.gmra.mxu0 %v908
        %v922 = vpop.f32.mrf.mxu0
        %v923 = vadd.f32 0.0, %v922
        %v924 = vpop.f32.mrf.mxu0
        %925 = vdwg.mxu0
        %927 = vrot.lane.b32.xlu0 %v923, 8
        %v928 = vpop.permute.xlu0 %927
        %vm930 = vcmask 130112
        %931 = vst.msk [vmem:[#allocation4] sm:$0xff] %vm930, %v928
        %932 = vrot.lane.b32.xlu0 %v863, 112
        %v933 = vpop.permute.xlu0 %932
        %934 = vrot.lane.b32.xlu0 %v868, 112
        %v935 = vpop.permute.xlu0 %934
        %v937 = vsel %vm808, %v933, 0
        %v940 = vsel %vm808, %v935, 0
        %942 = vmatpush.bf16.xpose.msra.mxu0 0
        %943 = vmatpush.bf16.xpose.msra.mxu0 0
        %944 = vmatpush.bf16.xpose.msra.mxu0 0
        %945 = vmatpush.bf16.xpose.msra.mxu0 0
        %946 = vmatpush.bf16.xpose.msra.mxu0 0
        %947 = vmatpush.bf16.xpose.msra.mxu0 0
        %948 = vmatpush.bf16.xpose.msra.mxu0 0
        %949 = vmatpush.bf16.xpose.msra.mxu0 %v940
        %950 = vmatmul.bf16.gmra.mxu0 %v937
        %v951 = vpop.f32.mrf.mxu0
        %v952 = vadd.f32 0.0, %v951
        %v953 = vpop.f32.mrf.mxu0
        %954 = vdwg.mxu0
        %v955 = vsel %vm808, %v952, -inf
        %956 = vmax.xlane.f32.xlu0 %v955
        %v957 = vpop.xlane.xlu0 %956
        %v958 = vsub.f32 %v952, %v957
        %v959 = vmul.f32 %v958, 1.442695
        %v960 = vpow.pop %v959
        %v961 = vsel %vm808, %v960, 0.0
        %962 = vadd.xlane.f32.xlu0 %v961
        %v963 = vpop.xlane.xlu0 %962
        %v964 = vrcp.pop %v963
        %v965 = vmul.f32 %v960, %v964
        %v966 = vpack.c.bf16 %v965, %v965
        %967 = vrot.lane.b32.xlu0 %v904, 112
        %v968 = vpop.permute.xlu0 %967
        %v970 = vsel %vm808, %v966, 0
        %v973 = vsel %vm843, %v968, 0
        %975 = vmatpush.bf16.msra.mxu0 0
        %976 = vmatpush.bf16.msra.mxu0 0
        %977 = vmatpush.bf16.msra.mxu0 0
        %978 = vmatpush.bf16.msra.mxu0 0
        %979 = vmatpush.bf16.msra.mxu0 0
        %980 = vmatpush.bf16.msra.mxu0 0
        %981 = vmatpush.bf16.msra.mxu0 0
        %982 = vmatpush.bf16.msra.mxu0 %v973
        %983 = vmatmul.bf16.gmra.mxu0 %v970
        %v984 = vpop.f32.mrf.mxu0
        %v985 = vadd.f32 0.0, %v984
        %v986 = vpop.f32.mrf.mxu0
        %987 = vdwg.mxu0
        %989 = vrot.lane.b32.xlu0 %v985, 16
        %v990 = vpop.permute.xlu0 %989
        %vm992 = vcmask 195712
        %993 = vst.msk [vmem:[#allocation4] sm:$0xff] %vm992, %v990
        %994 = vrot.lane.b32.xlu0 %v863, 104
        %v995 = vpop.permute.xlu0 %994
        %996 = vrot.lane.b32.xlu0 %v868, 104
        %v997 = vpop.permute.xlu0 %996
        %v999 = vsel %vm808, %v995, 0
        %v1002 = vsel %vm808, %v997, 0
        %1004 = vmatpush.bf16.xpose.msra.mxu0 0
        %1005 = vmatpush.bf16.xpose.msra.mxu0 0
        %1006 = vmatpush.bf16.xpose.msra.mxu0 0
        %1007 = vmatpush.bf16.xpose.msra.mxu0 0
        %1008 = vmatpush.bf16.xpose.msra.mxu0 0
        %1009 = vmatpush.bf16.xpose.msra.mxu0 0
        %1010 = vmatpush.bf16.xpose.msra.mxu0 0
        %1011 = vmatpush.bf16.xpose.msra.mxu0 %v1002
        %1012 = vmatmul.bf16.gmra.mxu0 %v999
        %v1013 = vpop.f32.mrf.mxu0
        %v1014 = vadd.f32 0.0, %v1013
        %v1015 = vpop.f32.mrf.mxu0
        %1016 = vdwg.mxu0
        %v1017 = vsel %vm808, %v1014, -inf
        %1018 = vmax.xlane.f32.xlu0 %v1017
        %v1019 = vpop.xlane.xlu0 %1018
        %v1020 = vsub.f32 %v1014, %v1019
        %v1021 = vmul.f32 %v1020, 1.442695
        %v1022 = vpow.pop %v1021
        %v1023 = vsel %vm808, %v1022, 0.0
        %1024 = vadd.xlane.f32.xlu0 %v1023
        %v1025 = vpop.xlane.xlu0 %1024
        %v1026 = vrcp.pop %v1025
        %v1027 = vmul.f32 %v1022, %v1026
        %v1028 = vpack.c.bf16 %v1027, %v1027
        %1029 = vrot.lane.b32.xlu0 %v904, 104
        %v1030 = vpop.permute.xlu0 %1029
        %v1032 = vsel %vm808, %v1028, 0
        %v1035 = vsel %vm843, %v1030, 0
        %1037 = vmatpush.bf16.msra.mxu0 0
        %1038 = vmatpush.bf16.msra.mxu0 0
        %1039 = vmatpush.bf16.msra.mxu0 0
        %1040 = vmatpush.bf16.msra.mxu0 0
        %1041 = vmatpush.bf16.msra.mxu0 0
        %1042 = vmatpush.bf16.msra.mxu0 0
        %1043 = vmatpush.bf16.msra.mxu0 0
        %1044 = vmatpush.bf16.msra.mxu0 %v1035
        %1045 = vmatmul.bf16.gmra.mxu0 %v1032
        %v1046 = vpop.f32.mrf.mxu0
        %v1047 = vadd.f32 0.0, %v1046
        %v1048 = vpop.f32.mrf.mxu0
        %1049 = vdwg.mxu0
        %1051 = vrot.lane.b32.xlu0 %v1047, 24
        %v1052 = vpop.permute.xlu0 %1051
        %vm1054 = vcmask 261312
        %1055 = vst.msk [vmem:[#allocation4] sm:$0xff] %vm1054, %v1052
        %v1056 = vld [vmem:[#allocation4] sm:$0xff]
        %v1057 = vpack.c.bf16 %v1056, %v1056
        %v1058 = vld [vmem:[#allocation10] sm:$0xf]
        %v1059 = vld [vmem:[#allocation10 + $0x4] sm:$0xf]
        %v1060 = vld [vmem:[#allocation10 + $0x8] sm:$0xf]
        %v1061 = vld [vmem:[#allocation10 + $0xc] sm:$0xf]
        %v1062 = vld [vmem:[%s9] sm:$0x1]
        %v1064 = vperm.slane %v1062, 0
        %v1070 = vunpack.c.l.b16 %v1058
        %v1071 = vunpack.c.l.b16 %v1059
        %v1072 = vunpack.c.l.b16 %v1060
        %v1073 = vunpack.c.l.b16 %v1061
        %v1074 = vpack.c.b16 %v1071, %v1070
        %v1075 = vpack.c.b16 %v1073, %v1072
        %v1079 = vsel %vm788, %v1057, 0
        %1081 = vmatpush.bf16.msra.mxu0 0
        %1082 = vmatpush.bf16.msra.mxu0 0
        %1083 = vmatpush.bf16.msra.mxu0 0
        %1084 = vmatpush.bf16.msra.mxu0 0
        %1085 = vmatpush.bf16.msra.mxu0 0
        %1086 = vmatpush.bf16.msra.mxu0 0
        %1087 = vmatpush.bf16.msra.mxu0 %v1075
        %1088 = vmatpush.bf16.msra.mxu0 %v1074
        %1089 = vmatmul.bf16.gmra.mxu0 %v1079
        %v1090 = vpop.f32.mrf.mxu0
        %v1091 = vadd.f32 %v1064, %v1090
        %v1092 = vpop.f32.mrf.mxu0
        %1093 = vdwg.mxu0
        %v1094 = vadd.f32 %v766, %v1091
        %v1095 = vsel %vm788, %v1094, 0.0
        %1096 = vadd.xlane.f32.xlu0 %v1095
        %v1097 = vpop.xlane.xlu0 %1096
        %v1098 = vrcp.pop 32.0
        %v1099 = vmul.f32 32.0, %v1098
        %v1100 = vsub.f32 1.0, %v1099
        %v1101 = vmul.f32 %v1098, %v1100
        %v1102 = vadd.f32 %v1098, %v1101
        %vm1103 = vweird.f32 %v1098
        %v1104 = vsel %vm1103, %v1098, %v1102
        %v1105 = vmul.f32 %v1097, %v1104
        %v1106 = vsub.f32 %v1094, %v1105
        %v1107 = vmul.f32 %v1106, %v1106
        %v1108 = vsel %vm788, %v1107, 0.0
        %1109 = vadd.xlane.f32.xlu0 %v1108
        %v1110 = vpop.xlane.xlu0 %1109
        %v1111 = vmul.f32 %v1110, %v1104
        %v1112 = vadd.f32 %v1111, 1e-05
        %v1113 = vrsqrt.pop %v1112
        %v1114 = vmul.f32 %v1113, %v1112
        %v1115 = vmul.f32 %v1114, %v1113
        %v1116 = vmul.f32 0.5, %v1115
        %v1117 = vsub.f32 1.5, %v1116
        %v1118 = vmul.f32 %v1113, %v1117
        %vm1119 = vweird.f32 %v1112
        %vm1120 = vweird.f32 %v1113
        %vm1121 = vmor %vm1119, %vm1120
        %v1122 = vsel %vm1121, %v1113, %v1118
        %v1123 = vmul.f32 %v1106, %v1122
        %v1124 = vld [vmem:[%s10] sm:$0x1]
        %v1126 = vperm.slane %v1124, 0
        %v1128 = vmul.f32 %v1123, %v1126
        %v1129 = vld [vmem:[%s11] sm:$0x1]
        %v1131 = vperm.slane %v1129, 0
        %v1133 = vadd.f32 %v1128, %v1131
        %v1134 = vpack.c.bf16 %v1133, %v1133
        %v1135 = vld [vmem:[#allocation11] sm:$0xf]
        %v1136 = vld [vmem:[#allocation11 + $0x4] sm:$0xf]
        %v1137 = vld [vmem:[#allocation11 + $0x8] sm:$0xf]
        %v1138 = vld [vmem:[#allocation11 + $0xc] sm:$0xf]
        %v1139 = vld [vmem:[%s13] sm:$0x1]
        %v1141 = vperm.slane %v1139, 0
        %v1147 = vunpack.c.l.b16 %v1135
        %v1148 = vunpack.c.l.b16 %v1136
        %v1149 = vunpack.c.l.b16 %v1137
        %v1150 = vunpack.c.l.b16 %v1138
        %v1151 = vpack.c.b16 %v1148, %v1147
        %v1152 = vpack.c.b16 %v1150, %v1149
        %v1156 = vsel %vm788, %v1134, 0
        %1158 = vmatpush.bf16.msra.mxu0 0
        %1159 = vmatpush.bf16.msra.mxu0 0
        %1160 = vmatpush.bf16.msra.mxu0 0
        %1161 = vmatpush.bf16.msra.mxu0 0
        %1162 = vmatpush.bf16.msra.mxu0 0
        %1163 = vmatpush.bf16.msra.mxu0 0
        %1164 = vmatpush.bf16.msra.mxu0 %v1152
        %1165 = vmatpush.bf16.msra.mxu0 %v1151
        %1166 = vmatmul.bf16.gmra.mxu0 %v1156
        %v1167 = vpop.f32.mrf.mxu0
        %v1168 = vadd.f32 %v1141, %v1167
        %v1169 = vpop.f32.mrf.mxu0
        %1170 = vdwg.mxu0
        %v1171 = vmax.f32 %v1168, 0.0
        %v1172 = vpack.c.bf16 %v1171, %v1171
        %v1173 = vld [vmem:[%s14] sm:$0xf]
        %v1174 = vld [vmem:[%s14 + $0x4] sm:$0xf]
        %v1175 = vld [vmem:[%s14 + $0x8] sm:$0xf]
        %v1176 = vld [vmem:[%s14 + $0xc] sm:$0xf]
        %v1177 = vld [vmem:[%s14 + $0x10] sm:$0xf]
        %v1178 = vld [vmem:[%s14 + $0x14] sm:$0xf]
        %v1179 = vld [vmem:[%s14 + $0x18] sm:$0xf]
        %v1180 = vld [vmem:[%s14 + $0x1c] sm:$0xf]
        %v1181 = vld [vmem:[%s15] sm:$0x1]
        %v1183 = vperm.slane %v1181, 0
        %v1193 = vunpack.c.l.b16 %v1173
        %v1194 = vunpack.c.l.b16 %v1174
        %v1195 = vunpack.c.l.b16 %v1175
        %v1196 = vunpack.c.l.b16 %v1176
        %v1197 = vunpack.c.l.b16 %v1177
        %v1198 = vunpack.c.l.b16 %v1178
        %v1199 = vunpack.c.l.b16 %v1179
        %v1200 = vunpack.c.l.b16 %v1180
        %v1201 = vpack.c.b16 %v1194, %v1193
        %v1202 = vpack.c.b16 %v1196, %v1195
        %v1203 = vpack.c.b16 %v1198, %v1197
        %v1204 = vpack.c.b16 %v1200, %v1199
        %vm1209 = vcmask 523264
        %v1211 = vsel %vm1209, %v1172, 0
        %1213 = vmatpush.bf16.msra.mxu0 0
        %1214 = vmatpush.bf16.msra.mxu0 0
        %1215 = vmatpush.bf16.msra.mxu0 0
        %1216 = vmatpush.bf16.msra.mxu0 0
        %1217 = vmatpush.bf16.msra.mxu0 %v1204
        %1218 = vmatpush.bf16.msra.mxu0 %v1203
        %1219 = vmatpush.bf16.msra.mxu0 %v1202
        %1220 = vmatpush.bf16.msra.mxu0 %v1201
        %1221 = vmatmul.bf16.gmra.mxu0 %v1211
        %v1222 = vpop.f32.mrf.mxu0
        %v1223 = vadd.f32 %v1183, %v1222
        %v1224 = vpop.f32.mrf.mxu0
        %1225 = vdwg.mxu0
        %v1226 = vadd.f32 %v1133, %v1223
        %v1227 = vsel %vm788, %v1226, 0.0
        %1228 = vadd.xlane.f32.xlu0 %v1227
        %v1229 = vpop.xlane.xlu0 %1228
        %v1230 = vmul.f32 %v1229, %v1104
        %v1231 = vsub.f32 %v1226, %v1230
        %v1232 = vmul.f32 %v1231, %v1231
        %v1233 = vsel %vm788, %v1232, 0.0
        %1234 = vadd.xlane.f32.xlu0 %v1233
        %v1235 = vpop.xlane.xlu0 %1234
        %v1236 = vmul.f32 %v1235, %v1104
        %v1237 = vadd.f32 %v1236, 1e-05
        %v1238 = vrsqrt.pop %v1237
        %v1239 = vmul.f32 %v1238, %v1237
        %v1240 = vmul.f32 %v1239, %v1238
        %v1241 = vmul.f32 0.5, %v1240
        %v1242 = vsub.f32 1.5, %v1241
        %v1243 = vmul.f32 %v1238, %v1242
        %vm1244 = vweird.f32 %v1237
        %vm1245 = vweird.f32 %v1238
        %vm1246 = vmor %vm1244, %vm1245
        %v1247 = vsel %vm1246, %v1238, %v1243
        %v1248 = vmul.f32 %v1231, %v1247
        %v1249 = vld [vmem:[%s16] sm:$0x1]
        %v1251 = vperm.slane %v1249, 0
        %v1253 = vmul.f32 %v1248, %v1251
        %v1254 = vld [vmem:[%s17] sm:$0x1]
        %v1256 = vperm.slane %v1254, 0
        %v1258 = vadd.f32 %v1253, %v1256
        %1259 = vst.msk [vmem:[%s677] sm:$0xff] %vm788, %v1258
        %s1260 = sand.u32 %s449, 1
        %s1261 = scalar_lea.sflag [#allocation7], %s1260
        %s1262 = sand.u32 %s449, 1
        %s1263 = smul.addr %s1262, 8
        %s1264 = scalar_lea.vmem [#allocation13], %s1263
        // Predicated region
        $region113: #{tpu_custom_call.1} parent=91 // pred_check
          %p1265 = pneg %p459
        $region114: #{tpu_custom_call.1} parent=91 // pred_check_branch
          %1267 = sbr.rel (%p1265) target = $region116
        $region115: #{tpu_custom_call.1} parent=91 // pred_region
          %1269 = vsyncadd %s1261, 0
          %s1270 = sadd.s32 %s42, %s41
          %s1271 = smul.addr %s1270, 8
          %s1272 = scalar_lea.hbm %s18, %s1271
          %s1274 = sshll.u32 %s1264, 4
          %s1275 = int_to_ptr.vmem [resolvable:$true] %s1274
          %s1276 = sshll.u32 %s1272, 4
          %s1277 = int_to_ptr.hbm [resolvable:$true] %s1276
          %1279 = dma.vmem_to_hbm [thread:$0]  %s1275, 128, %s1277, %s1261
        $region116: #{tpu_custom_call.1} parent=91 // pred_fallthru
          _
      $region92: #{tpu_custom_call.1} parent=5 // pred_fallthru
        _
      %p1280 = scmp.le.s32.totalorder 2, %s32
      // Predicated region
      $region117: #{tpu_custom_call.1} parent=5 // pred_check
        %p1281 = pneg %p1280
      $region118: #{tpu_custom_call.1} parent=5 // pred_check_branch
        %1283 = sbr.rel (%p1281) target = $region120
      $region119: #{tpu_custom_call.1} parent=5 // pred_region
        %s1284 = ssub.s32 %s32, 2
        // Predicated region
        $region121: #{tpu_custom_call.1} parent=119 // pred_check
          %p1285 = pneg %p465
        $region122: #{tpu_custom_call.1} parent=119 // pred_check_branch
          %1287 = sbr.rel (%p1285) target = $region124
        $region123: #{tpu_custom_call.1} parent=119 // pred_region
          %s1288 = sand.u32 %s450, 1
          %s1289 = scalar_lea.sflag [#allocation7], %s1288
          %s1290 = sand.u32 %s450, 1
          %s1291 = smul.addr %s1290, 8
          %s1292 = scalar_lea.vmem [#allocation13], %s1291
          %1294 = dma.done %s1289, 128
        $region124: #{tpu_custom_call.1} parent=119 // pred_fallthru
          _
      $region120: #{tpu_custom_call.1} parent=5 // pred_fallthru
        _
    $region6: #{tpu_custom_call.1} parent=1 // loop_footer
      %s36 = sadd.s32 1, %s32
    $region7: #{tpu_custom_call.1} parent=1 // loop_footer_branch
      %31 = sbr.rel target = $region3
    $region8: #{tpu_custom_call.1} parent=1 // loop_exit
      _
    %1295 = vsyncpa [#allocation6], 1
    %s1296 = scalar_lea.sflag [#allocation6], 1
    %1297 = vsyncpa %s1296, 1
    %1298 = vsyncpa [#allocation9], 1
    %1299 = vsyncpa [#allocation12], 1
    %1300 = vsyncpa [#allocation7], 1
    %s1301 = scalar_lea.sflag [#allocation7], 1
    %1302 = vsyncpa %s1301, 1

</llo_original>
